<compile_context>
chip_gen: v6e
topology: v6e:2x2x1
jax: 0.10.0
libtpu: 0.0.40
codegen_flags: <defaults>
</compile_context>

<pallas_src>
import numpy as np
import jax
import jax.numpy as jnp
from jax.experimental import pallas as pl
from jax.experimental.pallas import tpu as pltpu


def _cdiv(a: int, b: int) -> int:
    return -(-a // b)


def _bilinear_matrix(out_size: int, in_size: int) -> np.ndarray:
    """Row-stochastic (out_size, in_size) bilinear interpolation matrix.

    Matches torch/torchvision bilinear resize with antialias=False
    (align_corners=False): src = (dst + 0.5) * in/out - 0.5, clamped.
    """
    scale = in_size / out_size
    dst = np.arange(out_size)
    src = np.clip((dst + 0.5) * scale - 0.5, 0.0, in_size - 1)
    i0 = np.floor(src).astype(np.int64)
    i1 = np.minimum(i0 + 1, in_size - 1)
    frac = (src - i0).astype(np.float64)
    w = np.zeros((out_size, in_size), dtype=np.float64)
    np.add.at(w, (dst, i0), 1.0 - frac)
    np.add.at(w, (dst, i1), frac)
    return w


def _fused_matrices(H: int, W: int, h: int, w: int):
    """Host precompute (float64) of the fused row / column operators."""
    ah = _bilinear_matrix(h, H)            # (h, H) downsample rows
    aw = _bilinear_matrix(w, W)            # (w, W) downsample cols
    bh = _bilinear_matrix(H, h)            # (H, h) upsample rows
    bw = _bilinear_matrix(W, w)            # (W, w) upsample cols
    R = (bh @ ah).astype(np.float32)       # (H, H)
    C = (aw.T @ bw.T).astype(np.float32)   # (W, W)
    return R, C


def _random_resolution_kernel(x_ref, r_ref, c_ref, o_ref, wide_ref):
    # x_ref : (B, H, W) block of planes     r_ref : (H, H) fused row operator
    # o_ref : (B, H, W)                     c_ref : (W, W) fused column operator
    # wide_ref: VMEM (H, k*W) scratch used to relayout one chunk of k planes
    #           into a lane-dense operand for the row-pass matmul.
    B, H, W = x_ref.shape
    k = wide_ref.shape[1] // W
    n_chunks = B // k
    cdt = r_ref.dtype
    # Keep f32 semantics of the torch reference on the MXU; for bf16 operands
    # HIGHEST is a no-op, so this only affects the f32 path.
    prec = (jax.lax.Precision.HIGHEST if cdt == jnp.float32
            else jax.lax.Precision.DEFAULT)

    r = r_ref[...]        # hoisted: loaded once per grid step
    c = c_ref[...]

    def chunk_body(j, carry):
        start = pl.multiple_of(j * k, k)
        x_chunk = x_ref[pl.ds(start, k), :, :]                      # (k, H, W)
        # Column pass: one batched matmul over the whole chunk.
        col = jnp.dot(x_chunk.reshape(k * H, W).astype(cdt), c,
                      precision=prec,
                      preferred_element_type=jnp.float32)           # (k*H, W)
        col = col.astype(cdt)

        if k == 1:        # plane already lane-dense (W >= 256): no relayout
            out_p = jnp.dot(r, col, precision=prec,
                            preferred_element_type=jnp.float32)
            o_ref[start] = out_p.astype(o_ref.dtype)
            return carry

        # Relayout (k*H, W) -> (H, k*W) through VMEM so the row pass is ONE
        # lane-dense matmul instead of k tiny (H,H)@(H,W) matmuls.
        for b in range(k):
            wide_ref[:, b * W:(b + 1) * W] = col[b * H:(b + 1) * H, :]
        out_wide = jnp.dot(r, wide_ref[...], precision=prec,
                           preferred_element_type=jnp.float32)      # (H, k*W)
        for b in range(k):
            o_ref[start + b] = out_wide[:, b * W:(b + 1) * W].astype(o_ref.dtype)
        return carry

    jax.lax.fori_loop(0, n_chunks, chunk_body, 0)


def _vmem_capacity_bytes() -> int:
    try:
        return int(pltpu.get_tpu_info().vmem_capacity_bytes)
    except Exception:
        return 64 * 1024 * 1024        # conservative (v7x per-core VMEM)


def _num_tensorcores() -> int:
    try:
        kind = jax.devices()[0].device_kind.lower()
    except Exception:
        return 1
    return 2 if "v7" in kind else 1    # v7x: 2 TensorCores / chip


def _choose_blocking(nc, H, W, x_itemsize, w_itemsize, vmem_cap, num_cores):
    """Pick (planes per grid step B, planes per inner chunk k)."""
    # k: enough planes that the row-pass lane dim k*W covers a 256-wide MXU
    # stripe (v6e/v7x; also a multiple of 128 for v5e) without exceeding nc.
    k = max(1, min(nc, _cdiv(256, W)))
    budget = int(vmem_cap * 0.60)                    # headroom for Mosaic internals
    weight_bytes = (H * H + W * W) * w_itemsize      # single-buffered constants
    chunk_bytes = k * H * W * (2 * w_itemsize + 8)   # wide scratch + chunk values
    per_plane = 4 * H * W * x_itemsize               # in + out, double-buffered
    avail = max(0, budget - weight_bytes - chunk_bytes)
    bmax = max(k, (avail // per_plane) // k * k)
    B = int(min(bmax, _cdiv(nc, k) * k))             # never exceed (padded) nc
    # Dual-core parts: keep enough grid steps so "parallel" balances both TCs.
    if num_cores > 1:
        while B > k and _cdiv(nc, B) < num_cores:
            B -= k
    # TODO(synk): add a W-tiling grid axis for planes so large that even B == k
    # exceeds the VMEM budget (e.g. 1024x1024 f32).
    return B, k


def random_resolution(x: jax.Array, scale=(0.2, 1.0), seed: int = 0) -> jax.Array:
    """x: (N, C, H, W) float array. Returns the down->up resized (N, C, H, W)."""
    N, C, H, W = x.shape

    # Deterministic "random" params (host side, like RandomResolution.get_params).
    rng = np.random.RandomState(seed)
    side_ratio = rng.uniform(scale[0], scale[1])
    h = max(1, int(H * side_ratio))
    w = max(1, int(W * side_ratio))
    R_np, C_np = _fused_matrices(H, W, h, w)

    # bf16 MXU operands only when the caller already runs in bf16 (keeps the
    # f32 path numerically faithful to the torch reference).
    compute_dtype = jnp.bfloat16 if x.dtype == jnp.bfloat16 else jnp.float32
    w_itemsize = 2 if compute_dtype == jnp.bfloat16 else 4
    R = jnp.asarray(R_np, dtype=compute_dtype)
    Cm = jnp.asarray(C_np, dtype=compute_dtype)

    nc = N * C
    vmem_cap = _vmem_capacity_bytes()
    num_cores = _num_tensorcores()
    B, k = _choose_blocking(nc, H, W, x.dtype.itemsize, w_itemsize,
                            vmem_cap, num_cores)
    grid = _cdiv(nc, B)
    nc_pad = grid * B

    x_flat = x.reshape(nc, H, W)
    if nc_pad != nc:            # B need not divide N*C: pad, compute, slice.
        x_flat = jnp.pad(x_flat, ((0, nc_pad - nc), (0, 0), (0, 0)))

    def run(weight_kwargs):
        return pl.pallas_call(
            _random_resolution_kernel,
            out_shape=jax.ShapeDtypeStruct((nc_pad, H, W), x.dtype),
            grid_spec=pltpu.PrefetchScalarGridSpec(
                num_scalar_prefetch=0,
                grid=(grid,),
                in_specs=[
                    pl.BlockSpec((B, H, W), lambda i: (i, 0, 0)),
                    # Constant operators (index_map is constant): single-buffer.
                    pl.BlockSpec((H, H), lambda i: (0, 0), **weight_kwargs),
                    pl.BlockSpec((W, W), lambda i: (0, 0), **weight_kwargs),
                ],
                out_specs=pl.BlockSpec((B, H, W), lambda i: (i, 0, 0)),
                scratch_shapes=[pltpu.VMEM((H, k * W), compute_dtype)],
            ),
            compiler_params=pltpu.CompilerParams(
                dimension_semantics=("parallel",),
                vmem_limit_bytes=int(vmem_cap * 0.85)),
        )(x_flat, R, Cm)

    try:
        out = run({"pipeline_mode": pl.Buffered(1)})
    except Exception:
        out = run({})           # fallback if single-buffering is unavailable
    return out[:nc].reshape(N, C, H, W)


def _reference(x, scale=(0.2, 1.0), seed: int = 0) -> np.ndarray:
    """Host float64 reference: the original unfused down-then-up resize chain."""
    x_np = np.asarray(x, dtype=np.float64)
    N, C, H, W = x_np.shape
    rng = np.random.RandomState(seed)
    side_ratio = rng.uniform(scale[0], scale[1])
    h = max(1, int(H * side_ratio))
    w = max(1, int(W * side_ratio))
    ah = _bilinear_matrix(h, H)
    aw = _bilinear_matrix(w, W)
    bh = _bilinear_matrix(H, h)
    bw = _bilinear_matrix(W, w)
    down = np.einsum('ph,nchw->ncpw', ah, x_np)
    down = np.einsum('qw,ncpw->ncpq', aw, down)
    up = np.einsum('hp,ncpq->nchq', bh, down)
    up = np.einsum('wq,nchq->nchw', bw, up)
    return up.astype(np.float32)


if __name__ == "__main__":
    x = jax.random.uniform(jax.random.PRNGKey(0), (2, 4, 16, 16),
                           dtype=jnp.float32)
    out = jax.block_until_ready(random_resolution(x))
    assert out.shape == x.shape and out.dtype == x.dtype
    np.testing.assert_allclose(np.asarray(out), _reference(x),
                               rtol=1e-4, atol=1e-5)

    # Second check: N*C not a multiple of the block (exercises host padding)
    # and a multi-chunk inner loop on larger planes.
    x2 = jax.random.uniform(jax.random.PRNGKey(1), (2, 3, 64, 64),
                            dtype=jnp.float32)
    out2 = jax.block_until_ready(random_resolution(x2))
    np.testing.assert_allclose(np.asarray(out2), _reference(x2),
                               rtol=1e-4, atol=1e-5)

    print("KERNEL_OK")
</pallas_src>

<mosaic_0001>
module attributes {stable_mosaic.version = 11 : i64} {
  func.func @_random_resolution_kernel(%arg0: i32, %arg1: memref<8x16x16xf32, #tpu.memory_space<vmem>>, %arg2: memref<16x16xf32, #tpu.memory_space<vmem>>, %arg3: memref<16x16xf32, #tpu.memory_space<vmem>>, %arg4: memref<8x16x16xf32, #tpu.memory_space<vmem>>, %arg5: memref<16x128xf32, #tpu.memory_space<vmem>>) attributes {dimension_semantics = [#tpu.dimension_semantics<parallel>], iteration_bounds = array<i64: 1>, scalar_prefetch = 0 : i64, scratch_operands = 1 : i64, tpu.core_type = #tpu.core_type<tc>, window_params = [{transform_indices = @transform_0, window_bounds = array<i64: 8, 16, 16>}, {pipeline_mode = #tpu.pipeline_mode<synchronous>, transform_indices = @transform_1, window_bounds = array<i64: 16, 16>}, {pipeline_mode = #tpu.pipeline_mode<synchronous>, transform_indices = @transform_2, window_bounds = array<i64: 16, 16>}, {transform_indices = @transform_3, window_bounds = array<i64: 8, 16, 16>}]} {
    %c0 = arith.constant 0 : index
    %c0_0 = arith.constant 0 : index
    %0 = vector.load %arg2[%c0, %c0_0] : memref<16x16xf32, #tpu.memory_space<vmem>>, vector<16x16xf32>
    %c0_1 = arith.constant 0 : index
    %c0_2 = arith.constant 0 : index
    %1 = vector.load %arg3[%c0_1, %c0_2] : memref<16x16xf32, #tpu.memory_space<vmem>>, vector<16x16xf32>
    %c0_i32 = arith.constant 0 : i32
    %c8_i32 = arith.constant 8 : i32
    %2 = arith.muli %c0_i32, %c8_i32 : i32
    %3 = tpu.assume_multiple %2, 8 : i32
    %4 = arith.index_cast %3 : i32 to index
    %c0_3 = arith.constant 0 : index
    %c0_4 = arith.constant 0 : index
    %5 = vector.load %arg1[%4, %c0_3, %c0_4] : memref<8x16x16xf32, #tpu.memory_space<vmem>>, vector<8x16x16xf32>
    %6 = vector.shape_cast %5 : vector<8x16x16xf32> to vector<128x16xf32>
    %cst = arith.constant dense<0.000000e+00> : vector<128x16xf32>
    %7 = tpu.matmul %6, %1, %cst {dimension_numbers = #tpu.dot_dimension_numbers<[1], [0], [0], [1], [0, 0, 1, 1], [], []>, precision = #tpu.contract_precision<fp32>} : vector<128x16xf32>, vector<16x16xf32>, vector<128x16xf32> -> vector<128x16xf32>
    %8 = vector.extract_strided_slice %7 {offsets = [0, 0], sizes = [16, 16], strides = [1, 1]} : vector<128x16xf32> to vector<16x16xf32>
    %c0_5 = arith.constant 0 : index
    %c0_6 = arith.constant 0 : index
    %9 = vector.load %arg5[%c0_5, %c0_6] : memref<16x128xf32, #tpu.memory_space<vmem>>, vector<16x16xf32>
    tpu.vector_store %arg5[%c0_5, %c0_6], %8 {strides = array<i32>} : memref<16x128xf32, #tpu.memory_space<vmem>>, vector<16x16xf32>,
    %10 = vector.extract_strided_slice %7 {offsets = [16, 0], sizes = [16, 16], strides = [1, 1]} : vector<128x16xf32> to vector<16x16xf32>
    %c0_7 = arith.constant 0 : index
    %c16 = arith.constant 16 : index
    %11 = vector.load %arg5[%c0_7, %c16] : memref<16x128xf32, #tpu.memory_space<vmem>>, vector<16x16xf32>
    tpu.vector_store %arg5[%c0_7, %c16], %10 {strides = array<i32>} : memref<16x128xf32, #tpu.memory_space<vmem>>, vector<16x16xf32>,
    %12 = vector.extract_strided_slice %7 {offsets = [32, 0], sizes = [16, 16], strides = [1, 1]} : vector<128x16xf32> to vector<16x16xf32>
    %c0_8 = arith.constant 0 : index
    %c32 = arith.constant 32 : index
    %13 = vector.load %arg5[%c0_8, %c32] : memref<16x128xf32, #tpu.memory_space<vmem>>, vector<16x16xf32>
    tpu.vector_store %arg5[%c0_8, %c32], %12 {strides = array<i32>} : memref<16x128xf32, #tpu.memory_space<vmem>>, vector<16x16xf32>,
    %14 = vector.extract_strided_slice %7 {offsets = [48, 0], sizes = [16, 16], strides = [1, 1]} : vector<128x16xf32> to vector<16x16xf32>
    %c0_9 = arith.constant 0 : index
    %c48 = arith.constant 48 : index
    %15 = vector.load %arg5[%c0_9, %c48] : memref<16x128xf32, #tpu.memory_space<vmem>>, vector<16x16xf32>
    tpu.vector_store %arg5[%c0_9, %c48], %14 {strides = array<i32>} : memref<16x128xf32, #tpu.memory_space<vmem>>, vector<16x16xf32>,
    %16 = vector.extract_strided_slice %7 {offsets = [64, 0], sizes = [16, 16], strides = [1, 1]} : vector<128x16xf32> to vector<16x16xf32>
    %c0_10 = arith.constant 0 : index
    %c64 = arith.constant 64 : index
    %17 = vector.load %arg5[%c0_10, %c64] : memref<16x128xf32, #tpu.memory_space<vmem>>, vector<16x16xf32>
    tpu.vector_store %arg5[%c0_10, %c64], %16 {strides = array<i32>} : memref<16x128xf32, #tpu.memory_space<vmem>>, vector<16x16xf32>,
    %18 = vector.extract_strided_slice %7 {offsets = [80, 0], sizes = [16, 16], strides = [1, 1]} : vector<128x16xf32> to vector<16x16xf32>
    %c0_11 = arith.constant 0 : index
    %c80 = arith.constant 80 : index
    %19 = vector.load %arg5[%c0_11, %c80] : memref<16x128xf32, #tpu.memory_space<vmem>>, vector<16x16xf32>
    tpu.vector_store %arg5[%c0_11, %c80], %18 {strides = array<i32>} : memref<16x128xf32, #tpu.memory_space<vmem>>, vector<16x16xf32>,
    %20 = vector.extract_strided_slice %7 {offsets = [96, 0], sizes = [16, 16], strides = [1, 1]} : vector<128x16xf32> to vector<16x16xf32>
    %c0_12 = arith.constant 0 : index
    %c96 = arith.constant 96 : index
    %21 = vector.load %arg5[%c0_12, %c96] : memref<16x128xf32, #tpu.memory_space<vmem>>, vector<16x16xf32>
    tpu.vector_store %arg5[%c0_12, %c96], %20 {strides = array<i32>} : memref<16x128xf32, #tpu.memory_space<vmem>>, vector<16x16xf32>,
    %22 = vector.extract_strided_slice %7 {offsets = [112, 0], sizes = [16, 16], strides = [1, 1]} : vector<128x16xf32> to vector<16x16xf32>
    %c0_13 = arith.constant 0 : index
    %c112 = arith.constant 112 : index
    %23 = vector.load %arg5[%c0_13, %c112] : memref<16x128xf32, #tpu.memory_space<vmem>>, vector<16x16xf32>
    tpu.vector_store %arg5[%c0_13, %c112], %22 {strides = array<i32>} : memref<16x128xf32, #tpu.memory_space<vmem>>, vector<16x16xf32>,
    %c0_14 = arith.constant 0 : index
    %c0_15 = arith.constant 0 : index
    %24 = vector.load %arg5[%c0_14, %c0_15] : memref<16x128xf32, #tpu.memory_space<vmem>>, vector<16x128xf32>
    %cst_16 = arith.constant dense<0.000000e+00> : vector<16x128xf32>
    %25 = tpu.matmul %0, %24, %cst_16 {dimension_numbers = #tpu.dot_dimension_numbers<[1], [0], [0], [1], [0, 0, 1, 1], [], []>, precision = #tpu.contract_precision<fp32>} : vector<16x16xf32>, vector<16x128xf32>, vector<16x128xf32> -> vector<16x128xf32>
    %26 = vector.extract_strided_slice %25 {offsets = [0, 0], sizes = [16, 16], strides = [1, 1]} : vector<16x128xf32> to vector<16x16xf32>
    %c0_i32_17 = arith.constant 0 : i32
    %27 = arith.addi %3, %c0_i32_17 : i32
    %28 = arith.index_cast %27 : i32 to index
    %c0_18 = arith.constant 0 : index
    %c0_19 = arith.constant 0 : index
    %29 = vector.load %arg4[%28, %c0_18, %c0_19] : memref<8x16x16xf32, #tpu.memory_space<vmem>>, vector<1x16x16xf32>
    %30 = vector.shape_cast %29 : vector<1x16x16xf32> to vector<16x16xf32>
    %31 = vector.shape_cast %26 : vector<16x16xf32> to vector<1x16x16xf32>
    tpu.vector_store %arg4[%28, %c0_18, %c0_19], %31 {strides = array<i32>} : memref<8x16x16xf32, #tpu.memory_space<vmem>>, vector<1x16x16xf32>,
    %32 = vector.extract_strided_slice %25 {offsets = [0, 16], sizes = [16, 16], strides = [1, 1]} : vector<16x128xf32> to vector<16x16xf32>
    %c1_i32 = arith.constant 1 : i32
    %33 = arith.addi %3, %c1_i32 : i32
    %34 = arith.index_cast %33 : i32 to index
    %c0_20 = arith.constant 0 : index
    %c0_21 = arith.constant 0 : index
    %35 = vector.load %arg4[%34, %c0_20, %c0_21] : memref<8x16x16xf32, #tpu.memory_space<vmem>>, vector<1x16x16xf32>
    %36 = vector.shape_cast %35 : vector<1x16x16xf32> to vector<16x16xf32>
    %37 = vector.shape_cast %32 : vector<16x16xf32> to vector<1x16x16xf32>
    tpu.vector_store %arg4[%34, %c0_20, %c0_21], %37 {strides = array<i32>} : memref<8x16x16xf32, #tpu.memory_space<vmem>>, vector<1x16x16xf32>,
    %38 = vector.extract_strided_slice %25 {offsets = [0, 32], sizes = [16, 16], strides = [1, 1]} : vector<16x128xf32> to vector<16x16xf32>
    %c2_i32 = arith.constant 2 : i32
    %39 = arith.addi %3, %c2_i32 : i32
    %40 = arith.index_cast %39 : i32 to index
    %c0_22 = arith.constant 0 : index
    %c0_23 = arith.constant 0 : index
    %41 = vector.load %arg4[%40, %c0_22, %c0_23] : memref<8x16x16xf32, #tpu.memory_space<vmem>>, vector<1x16x16xf32>
    %42 = vector.shape_cast %41 : vector<1x16x16xf32> to vector<16x16xf32>
    %43 = vector.shape_cast %38 : vector<16x16xf32> to vector<1x16x16xf32>
    tpu.vector_store %arg4[%40, %c0_22, %c0_23], %43 {strides = array<i32>} : memref<8x16x16xf32, #tpu.memory_space<vmem>>, vector<1x16x16xf32>,
    %44 = vector.extract_strided_slice %25 {offsets = [0, 48], sizes = [16, 16], strides = [1, 1]} : vector<16x128xf32> to vector<16x16xf32>
    %c3_i32 = arith.constant 3 : i32
    %45 = arith.addi %3, %c3_i32 : i32
    %46 = arith.index_cast %45 : i32 to index
    %c0_24 = arith.constant 0 : index
    %c0_25 = arith.constant 0 : index
    %47 = vector.load %arg4[%46, %c0_24, %c0_25] : memref<8x16x16xf32, #tpu.memory_space<vmem>>, vector<1x16x16xf32>
    %48 = vector.shape_cast %47 : vector<1x16x16xf32> to vector<16x16xf32>
    %49 = vector.shape_cast %44 : vector<16x16xf32> to vector<1x16x16xf32>
    tpu.vector_store %arg4[%46, %c0_24, %c0_25], %49 {strides = array<i32>} : memref<8x16x16xf32, #tpu.memory_space<vmem>>, vector<1x16x16xf32>,
    %50 = vector.extract_strided_slice %25 {offsets = [0, 64], sizes = [16, 16], strides = [1, 1]} : vector<16x128xf32> to vector<16x16xf32>
    %c4_i32 = arith.constant 4 : i32
    %51 = arith.addi %3, %c4_i32 : i32
    %52 = arith.index_cast %51 : i32 to index
    %c0_26 = arith.constant 0 : index
    %c0_27 = arith.constant 0 : index
    %53 = vector.load %arg4[%52, %c0_26, %c0_27] : memref<8x16x16xf32, #tpu.memory_space<vmem>>, vector<1x16x16xf32>
    %54 = vector.shape_cast %53 : vector<1x16x16xf32> to vector<16x16xf32>
    %55 = vector.shape_cast %50 : vector<16x16xf32> to vector<1x16x16xf32>
    tpu.vector_store %arg4[%52, %c0_26, %c0_27], %55 {strides = array<i32>} : memref<8x16x16xf32, #tpu.memory_space<vmem>>, vector<1x16x16xf32>,
    %56 = vector.extract_strided_slice %25 {offsets = [0, 80], sizes = [16, 16], strides = [1, 1]} : vector<16x128xf32> to vector<16x16xf32>
    %c5_i32 = arith.constant 5 : i32
    %57 = arith.addi %3, %c5_i32 : i32
    %58 = arith.index_cast %57 : i32 to index
    %c0_28 = arith.constant 0 : index
    %c0_29 = arith.constant 0 : index
    %59 = vector.load %arg4[%58, %c0_28, %c0_29] : memref<8x16x16xf32, #tpu.memory_space<vmem>>, vector<1x16x16xf32>
    %60 = vector.shape_cast %59 : vector<1x16x16xf32> to vector<16x16xf32>
    %61 = vector.shape_cast %56 : vector<16x16xf32> to vector<1x16x16xf32>
    tpu.vector_store %arg4[%58, %c0_28, %c0_29], %61 {strides = array<i32>} : memref<8x16x16xf32, #tpu.memory_space<vmem>>, vector<1x16x16xf32>,
    %62 = vector.extract_strided_slice %25 {offsets = [0, 96], sizes = [16, 16], strides = [1, 1]} : vector<16x128xf32> to vector<16x16xf32>
    %c6_i32 = arith.constant 6 : i32
    %63 = arith.addi %3, %c6_i32 : i32
    %64 = arith.index_cast %63 : i32 to index
    %c0_30 = arith.constant 0 : index
    %c0_31 = arith.constant 0 : index
    %65 = vector.load %arg4[%64, %c0_30, %c0_31] : memref<8x16x16xf32, #tpu.memory_space<vmem>>, vector<1x16x16xf32>
    %66 = vector.shape_cast %65 : vector<1x16x16xf32> to vector<16x16xf32>
    %67 = vector.shape_cast %62 : vector<16x16xf32> to vector<1x16x16xf32>
    tpu.vector_store %arg4[%64, %c0_30, %c0_31], %67 {strides = array<i32>} : memref<8x16x16xf32, #tpu.memory_space<vmem>>, vector<1x16x16xf32>,
    %68 = vector.extract_strided_slice %25 {offsets = [0, 112], sizes = [16, 16], strides = [1, 1]} : vector<16x128xf32> to vector<16x16xf32>
    %c7_i32 = arith.constant 7 : i32
    %69 = arith.addi %3, %c7_i32 : i32
    %70 = arith.index_cast %69 : i32 to index
    %c0_32 = arith.constant 0 : index
    %c0_33 = arith.constant 0 : index
    %71 = vector.load %arg4[%70, %c0_32, %c0_33] : memref<8x16x16xf32, #tpu.memory_space<vmem>>, vector<1x16x16xf32>
    %72 = vector.shape_cast %71 : vector<1x16x16xf32> to vector<16x16xf32>
    %73 = vector.shape_cast %68 : vector<16x16xf32> to vector<1x16x16xf32>
    tpu.vector_store %arg4[%70, %c0_32, %c0_33], %73 {strides = array<i32>} : memref<8x16x16xf32, #tpu.memory_space<vmem>>, vector<1x16x16xf32>,
    %c1_i32_34 = arith.constant 1 : i32
    return
  }
  func.func @transform_0(%arg0: i32) -> (i32, i32, i32) {
    %c0_i32 = arith.constant 0 : i32
    %c0_i32_0 = arith.constant 0 : i32
    %c0_i32_1 = arith.constant 0 : i32
    return %arg0, %c0_i32, %c0_i32_0 : i32, i32, i32
  }
  func.func @transform_1(%arg0: i32) -> (i32, i32) {
    %c0_i32 = arith.constant 0 : i32
    %c0_i32_0 = arith.constant 0 : i32
    %c0_i32_1 = arith.constant 0 : i32
    return %c0_i32, %c0_i32_0 : i32, i32
  }
  func.func @transform_2(%arg0: i32) -> (i32, i32) {
    %c0_i32 = arith.constant 0 : i32
    %c0_i32_0 = arith.constant 0 : i32
    %c0_i32_1 = arith.constant 0 : i32
    return %c0_i32, %c0_i32_0 : i32, i32
  }
  func.func @transform_3(%arg0: i32) -> (i32, i32, i32) {
    %c0_i32 = arith.constant 0 : i32
    %c0_i32_0 = arith.constant 0 : i32
    %c0_i32_1 = arith.constant 0 : i32
    return %arg0, %c0_i32, %c0_i32_0 : i32, i32, i32
  }
}

module attributes {stable_mosaic.version = 11 : i64} {
  func.func @_random_resolution_kernel(%arg0: i32, %arg1: memref<8x16x16xf32, #tpu.memory_space<vmem>>, %arg2: memref<16x16xf32, #tpu.memory_space<vmem>>, %arg3: memref<16x16xf32, #tpu.memory_space<vmem>>, %arg4: memref<8x16x16xf32, #tpu.memory_space<vmem>>, %arg5: memref<16x128xf32, #tpu.memory_space<vmem>>) attributes {dimension_semantics = [#tpu.dimension_semantics<parallel>], iteration_bounds = array<i64: 1>, scalar_prefetch = 0 : i64, scratch_operands = 1 : i64, tpu.core_type = #tpu.core_type<tc>, window_params = [{transform_indices = @transform_0, window_bounds = array<i64: 8, 16, 16>}, {pipeline_mode = #tpu.pipeline_mode<synchronous>, transform_indices = @transform_1, window_bounds = array<i64: 16, 16>}, {pipeline_mode = #tpu.pipeline_mode<synchronous>, transform_indices = @transform_2, window_bounds = array<i64: 16, 16>}, {transform_indices = @transform_3, window_bounds = array<i64: 8, 16, 16>}]} {
    %c0 = arith.constant 0 : index
    %c0_0 = arith.constant 0 : index
    %0 = vector.load %arg2[%c0, %c0_0] : memref<16x16xf32, #tpu.memory_space<vmem>>, vector<16x16xf32>
    %c0_1 = arith.constant 0 : index
    %c0_2 = arith.constant 0 : index
    %1 = vector.load %arg3[%c0_1, %c0_2] : memref<16x16xf32, #tpu.memory_space<vmem>>, vector<16x16xf32>
    %c0_i32 = arith.constant 0 : i32
    %c8_i32 = arith.constant 8 : i32
    %2 = arith.muli %c0_i32, %c8_i32 : i32
    %3 = tpu.assume_multiple %2, 8 : i32
    %4 = arith.index_cast %3 : i32 to index
    %c0_3 = arith.constant 0 : index
    %c0_4 = arith.constant 0 : index
    %5 = vector.load %arg1[%4, %c0_3, %c0_4] : memref<8x16x16xf32, #tpu.memory_space<vmem>>, vector<8x16x16xf32>
    %6 = vector.shape_cast %5 : vector<8x16x16xf32> to vector<128x16xf32>
    %cst = arith.constant dense<0.000000e+00> : vector<128x16xf32>
    %7 = tpu.matmul %6, %1, %cst {dimension_numbers = #tpu.dot_dimension_numbers<[1], [0], [0], [1], [0, 0, 1, 1], [], []>, precision = #tpu.contract_precision<fp32>} : vector<128x16xf32>, vector<16x16xf32>, vector<128x16xf32> -> vector<128x16xf32>
    %8 = vector.extract_strided_slice %7 {offsets = [0, 0], sizes = [16, 16], strides = [1, 1]} : vector<128x16xf32> to vector<16x16xf32>
    %c0_5 = arith.constant 0 : index
    %c0_6 = arith.constant 0 : index
    %9 = vector.load %arg5[%c0_5, %c0_6] : memref<16x128xf32, #tpu.memory_space<vmem>>, vector<16x16xf32>
    tpu.vector_store %arg5[%c0_5, %c0_6], %8 {strides = array<i32>} : memref<16x128xf32, #tpu.memory_space<vmem>>, vector<16x16xf32>,
    %10 = vector.extract_strided_slice %7 {offsets = [16, 0], sizes = [16, 16], strides = [1, 1]} : vector<128x16xf32> to vector<16x16xf32>
    %c0_7 = arith.constant 0 : index
    %c16 = arith.constant 16 : index
    %11 = vector.load %arg5[%c0_7, %c16] : memref<16x128xf32, #tpu.memory_space<vmem>>, vector<16x16xf32>
    tpu.vector_store %arg5[%c0_7, %c16], %10 {strides = array<i32>} : memref<16x128xf32, #tpu.memory_space<vmem>>, vector<16x16xf32>,
    %12 = vector.extract_strided_slice %7 {offsets = [32, 0], sizes = [16, 16], strides = [1, 1]} : vector<128x16xf32> to vector<16x16xf32>
    %c0_8 = arith.constant 0 : index
    %c32 = arith.constant 32 : index
    %13 = vector.load %arg5[%c0_8, %c32] : memref<16x128xf32, #tpu.memory_space<vmem>>, vector<16x16xf32>
    tpu.vector_store %arg5[%c0_8, %c32], %12 {strides = array<i32>} : memref<16x128xf32, #tpu.memory_space<vmem>>, vector<16x16xf32>,
    %14 = vector.extract_strided_slice %7 {offsets = [48, 0], sizes = [16, 16], strides = [1, 1]} : vector<128x16xf32> to vector<16x16xf32>
    %c0_9 = arith.constant 0 : index
    %c48 = arith.constant 48 : index
    %15 = vector.load %arg5[%c0_9, %c48] : memref<16x128xf32, #tpu.memory_space<vmem>>, vector<16x16xf32>
    tpu.vector_store %arg5[%c0_9, %c48], %14 {strides = array<i32>} : memref<16x128xf32, #tpu.memory_space<vmem>>, vector<16x16xf32>,
    %16 = vector.extract_strided_slice %7 {offsets = [64, 0], sizes = [16, 16], strides = [1, 1]} : vector<128x16xf32> to vector<16x16xf32>
    %c0_10 = arith.constant 0 : index
    %c64 = arith.constant 64 : index
    %17 = vector.load %arg5[%c0_10, %c64] : memref<16x128xf32, #tpu.memory_space<vmem>>, vector<16x16xf32>
    tpu.vector_store %arg5[%c0_10, %c64], %16 {strides = array<i32>} : memref<16x128xf32, #tpu.memory_space<vmem>>, vector<16x16xf32>,
    %18 = vector.extract_strided_slice %7 {offsets = [80, 0], sizes = [16, 16], strides = [1, 1]} : vector<128x16xf32> to vector<16x16xf32>
    %c0_11 = arith.constant 0 : index
    %c80 = arith.constant 80 : index
    %19 = vector.load %arg5[%c0_11, %c80] : memref<16x128xf32, #tpu.memory_space<vmem>>, vector<16x16xf32>
    tpu.vector_store %arg5[%c0_11, %c80], %18 {strides = array<i32>} : memref<16x128xf32, #tpu.memory_space<vmem>>, vector<16x16xf32>,
    %20 = vector.extract_strided_slice %7 {offsets = [96, 0], sizes = [16, 16], strides = [1, 1]} : vector<128x16xf32> to vector<16x16xf32>
    %c0_12 = arith.constant 0 : index
    %c96 = arith.constant 96 : index
    %21 = vector.load %arg5[%c0_12, %c96] : memref<16x128xf32, #tpu.memory_space<vmem>>, vector<16x16xf32>
    tpu.vector_store %arg5[%c0_12, %c96], %20 {strides = array<i32>} : memref<16x128xf32, #tpu.memory_space<vmem>>, vector<16x16xf32>,
    %22 = vector.extract_strided_slice %7 {offsets = [112, 0], sizes = [16, 16], strides = [1, 1]} : vector<128x16xf32> to vector<16x16xf32>
    %c0_13 = arith.constant 0 : index
    %c112 = arith.constant 112 : index
    %23 = vector.load %arg5[%c0_13, %c112] : memref<16x128xf32, #tpu.memory_space<vmem>>, vector<16x16xf32>
    tpu.vector_store %arg5[%c0_13, %c112], %22 {strides = array<i32>} : memref<16x128xf32, #tpu.memory_space<vmem>>, vector<16x16xf32>,
    %c0_14 = arith.constant 0 : index
    %c0_15 = arith.constant 0 : index
    %24 = vector.load %arg5[%c0_14, %c0_15] : memref<16x128xf32, #tpu.memory_space<vmem>>, vector<16x128xf32>
    %cst_16 = arith.constant dense<0.000000e+00> : vector<16x128xf32>
    %25 = tpu.matmul %0, %24, %cst_16 {dimension_numbers = #tpu.dot_dimension_numbers<[1], [0], [0], [1], [0, 0, 1, 1], [], []>, precision = #tpu.contract_precision<fp32>} : vector<16x16xf32>, vector<16x128xf32>, vector<16x128xf32> -> vector<16x128xf32>
    %26 = vector.extract_strided_slice %25 {offsets = [0, 0], sizes = [16, 16], strides = [1, 1]} : vector<16x128xf32> to vector<16x16xf32>
    %c0_i32_17 = arith.constant 0 : i32
    %27 = arith.addi %3, %c0_i32_17 : i32
    %28 = arith.index_cast %27 : i32 to index
    %c0_18 = arith.constant 0 : index
    %c0_19 = arith.constant 0 : index
    %29 = vector.load %arg4[%28, %c0_18, %c0_19] : memref<8x16x16xf32, #tpu.memory_space<vmem>>, vector<1x16x16xf32>
    %30 = vector.shape_cast %29 : vector<1x16x16xf32> to vector<16x16xf32>
    %31 = vector.shape_cast %26 : vector<16x16xf32> to vector<1x16x16xf32>
    tpu.vector_store %arg4[%28, %c0_18, %c0_19], %31 {strides = array<i32>} : memref<8x16x16xf32, #tpu.memory_space<vmem>>, vector<1x16x16xf32>,
    %32 = vector.extract_strided_slice %25 {offsets = [0, 16], sizes = [16, 16], strides = [1, 1]} : vector<16x128xf32> to vector<16x16xf32>
    %c1_i32 = arith.constant 1 : i32
    %33 = arith.addi %3, %c1_i32 : i32
    %34 = arith.index_cast %33 : i32 to index
    %c0_20 = arith.constant 0 : index
    %c0_21 = arith.constant 0 : index
    %35 = vector.load %arg4[%34, %c0_20, %c0_21] : memref<8x16x16xf32, #tpu.memory_space<vmem>>, vector<1x16x16xf32>
    %36 = vector.shape_cast %35 : vector<1x16x16xf32> to vector<16x16xf32>
    %37 = vector.shape_cast %32 : vector<16x16xf32> to vector<1x16x16xf32>
    tpu.vector_store %arg4[%34, %c0_20, %c0_21], %37 {strides = array<i32>} : memref<8x16x16xf32, #tpu.memory_space<vmem>>, vector<1x16x16xf32>,
    %38 = vector.extract_strided_slice %25 {offsets = [0, 32], sizes = [16, 16], strides = [1, 1]} : vector<16x128xf32> to vector<16x16xf32>
    %c2_i32 = arith.constant 2 : i32
    %39 = arith.addi %3, %c2_i32 : i32
    %40 = arith.index_cast %39 : i32 to index
    %c0_22 = arith.constant 0 : index
    %c0_23 = arith.constant 0 : index
    %41 = vector.load %arg4[%40, %c0_22, %c0_23] : memref<8x16x16xf32, #tpu.memory_space<vmem>>, vector<1x16x16xf32>
    %42 = vector.shape_cast %41 : vector<1x16x16xf32> to vector<16x16xf32>
    %43 = vector.shape_cast %38 : vector<16x16xf32> to vector<1x16x16xf32>
    tpu.vector_store %arg4[%40, %c0_22, %c0_23], %43 {strides = array<i32>} : memref<8x16x16xf32, #tpu.memory_space<vmem>>, vector<1x16x16xf32>,
    %44 = vector.extract_strided_slice %25 {offsets = [0, 48], sizes = [16, 16], strides = [1, 1]} : vector<16x128xf32> to vector<16x16xf32>
    %c3_i32 = arith.constant 3 : i32
    %45 = arith.addi %3, %c3_i32 : i32
    %46 = arith.index_cast %45 : i32 to index
    %c0_24 = arith.constant 0 : index
    %c0_25 = arith.constant 0 : index
    %47 = vector.load %arg4[%46, %c0_24, %c0_25] : memref<8x16x16xf32, #tpu.memory_space<vmem>>, vector<1x16x16xf32>
    %48 = vector.shape_cast %47 : vector<1x16x16xf32> to vector<16x16xf32>
    %49 = vector.shape_cast %44 : vector<16x16xf32> to vector<1x16x16xf32>
    tpu.vector_store %arg4[%46, %c0_24, %c0_25], %49 {strides = array<i32>} : memref<8x16x16xf32, #tpu.memory_space<vmem>>, vector<1x16x16xf32>,
    %50 = vector.extract_strided_slice %25 {offsets = [0, 64], sizes = [16, 16], strides = [1, 1]} : vector<16x128xf32> to vector<16x16xf32>
    %c4_i32 = arith.constant 4 : i32
    %51 = arith.addi %3, %c4_i32 : i32
    %52 = arith.index_cast %51 : i32 to index
    %c0_26 = arith.constant 0 : index
    %c0_27 = arith.constant 0 : index
    %53 = vector.load %arg4[%52, %c0_26, %c0_27] : memref<8x16x16xf32, #tpu.memory_space<vmem>>, vector<1x16x16xf32>
    %54 = vector.shape_cast %53 : vector<1x16x16xf32> to vector<16x16xf32>
    %55 = vector.shape_cast %50 : vector<16x16xf32> to vector<1x16x16xf32>
    tpu.vector_store %arg4[%52, %c0_26, %c0_27], %55 {strides = array<i32>} : memref<8x16x16xf32, #tpu.memory_space<vmem>>, vector<1x16x16xf32>,
    %56 = vector.extract_strided_slice %25 {offsets = [0, 80], sizes = [16, 16], strides = [1, 1]} : vector<16x128xf32> to vector<16x16xf32>
    %c5_i32 = arith.constant 5 : i32
    %57 = arith.addi %3, %c5_i32 : i32
    %58 = arith.index_cast %57 : i32 to index
    %c0_28 = arith.constant 0 : index
    %c0_29 = arith.constant 0 : index
    %59 = vector.load %arg4[%58, %c0_28, %c0_29] : memref<8x16x16xf32, #tpu.memory_space<vmem>>, vector<1x16x16xf32>
    %60 = vector.shape_cast %59 : vector<1x16x16xf32> to vector<16x16xf32>
    %61 = vector.shape_cast %56 : vector<16x16xf32> to vector<1x16x16xf32>
    tpu.vector_store %arg4[%58, %c0_28, %c0_29], %61 {strides = array<i32>} : memref<8x16x16xf32, #tpu.memory_space<vmem>>, vector<1x16x16xf32>,
    %62 = vector.extract_strided_slice %25 {offsets = [0, 96], sizes = [16, 16], strides = [1, 1]} : vector<16x128xf32> to vector<16x16xf32>
    %c6_i32 = arith.constant 6 : i32
    %63 = arith.addi %3, %c6_i32 : i32
    %64 = arith.index_cast %63 : i32 to index
    %c0_30 = arith.constant 0 : index
    %c0_31 = arith.constant 0 : index
    %65 = vector.load %arg4[%64, %c0_30, %c0_31] : memref<8x16x16xf32, #tpu.memory_space<vmem>>, vector<1x16x16xf32>
    %66 = vector.shape_cast %65 : vector<1x16x16xf32> to vector<16x16xf32>
    %67 = vector.shape_cast %62 : vector<16x16xf32> to vector<1x16x16xf32>
    tpu.vector_store %arg4[%64, %c0_30, %c0_31], %67 {strides = array<i32>} : memref<8x16x16xf32, #tpu.memory_space<vmem>>, vector<1x16x16xf32>,
    %68 = vector.extract_strided_slice %25 {offsets = [0, 112], sizes = [16, 16], strides = [1, 1]} : vector<16x128xf32> to vector<16x16xf32>
    %c7_i32 = arith.constant 7 : i32
    %69 = arith.addi %3, %c7_i32 : i32
    %70 = arith.index_cast %69 : i32 to index
    %c0_32 = arith.constant 0 : index
    %c0_33 = arith.constant 0 : index
    %71 = vector.load %arg4[%70, %c0_32, %c0_33] : memref<8x16x16xf32, #tpu.memory_space<vmem>>, vector<1x16x16xf32>
    %72 = vector.shape_cast %71 : vector<1x16x16xf32> to vector<16x16xf32>
    %73 = vector.shape_cast %68 : vector<16x16xf32> to vector<1x16x16xf32>
    tpu.vector_store %arg4[%70, %c0_32, %c0_33], %73 {strides = array<i32>} : memref<8x16x16xf32, #tpu.memory_space<vmem>>, vector<1x16x16xf32>,
    %c1_i32_34 = arith.constant 1 : i32
    return
  }
  func.func @transform_0(%arg0: i32) -> (i32, i32, i32) {
    %c0_i32 = arith.constant 0 : i32
    %c0_i32_0 = arith.constant 0 : i32
    %c0_i32_1 = arith.constant 0 : i32
    return %arg0, %c0_i32, %c0_i32_0 : i32, i32, i32
  }
  func.func @transform_1(%arg0: i32) -> (i32, i32) {
    %c0_i32 = arith.constant 0 : i32
    %c0_i32_0 = arith.constant 0 : i32
    %c0_i32_1 = arith.constant 0 : i32
    return %c0_i32, %c0_i32_0 : i32, i32
  }
  func.func @transform_2(%arg0: i32) -> (i32, i32) {
    %c0_i32 = arith.constant 0 : i32
    %c0_i32_0 = arith.constant 0 : i32
    %c0_i32_1 = arith.constant 0 : i32
    return %c0_i32, %c0_i32_0 : i32, i32
  }
  func.func @transform_3(%arg0: i32) -> (i32, i32, i32) {
    %c0_i32 = arith.constant 0 : i32
    %c0_i32_0 = arith.constant 0 : i32
    %c0_i32_1 = arith.constant 0 : i32
    return %arg0, %c0_i32, %c0_i32_0 : i32, i32, i32
  }
}

</mosaic_0001>

<llo_original>
// kernel: tpu_custom_call.1
$region0: #{tpu_custom_call.1}
  #allocation0 [shape = 'u32[]', space=smem, size = 0x4, offset = 0x4, fixed_abs, tag = 'smem constant byte address 0x4 - core index']
  #allocation1 [shape = 'u32[144,128]{1,0:T(1,128)}', space=vmem, size = 0x12000, scoped, tag = 'internal scratch']
  #allocation2 [shape = 'f32[16,128]{1,0:T(8,128)}', space=vmem, size = 0x2000, scoped, tag = 'scratch operand']
  %s0 = inlined_call_operand.hbm [shape: f32[8,16,16], index: 0, kind: input, shape index: {}]
  %s1 = inlined_call_operand.hbm [shape: f32[16,16], index: 1, kind: input, shape index: {}]
  %s2 = inlined_call_operand.hbm [shape: f32[16,16], index: 2, kind: input, shape index: {}]
  %s3 = inlined_call_operand.hbm [shape: f32[8,16,16], index: 3, kind: output, shape index: {}]
  %s4 = sld [smem:[#allocation0]]
  $region34: #{tpu_custom_call.1} parent=0
    _
  %s6 = ssub.s32 1, %s4
  %s7 = scalar_select 0, %s6, %s4
  $region1: #{tpu_custom_call.1} parent=0
    #allocation3 [shape = 'u8[65536]{0}', space=vmem, size = 0x10000, scoped, tag = 'input window, operand 0, single buffered']
    #allocation4 [shape = 's32[1]{0}', space=sflag, size = 0x4, scoped, tag = 'scoped memory for tpu_custom_call.1']
    #allocation5 [shape = 's32[1]{0}', space=sflag, size = 0x4, scoped, tag = 'scoped memory for tpu_custom_call.1']
    #allocation6 [shape = 'u8[8192]{0}', space=vmem, size = 0x2000, scoped, tag = 'input window, operand 1, single buffered']
    #allocation7 [shape = 's32[1]{0}', space=sflag, size = 0x4, scoped, tag = 'scoped memory for tpu_custom_call.1']
    #allocation8 [shape = 'u8[8192]{0}', space=vmem, size = 0x2000, scoped, tag = 'input window, operand 2, single buffered']
    #allocation9 [shape = 'u8[65536]{0}', space=vmem, size = 0x10000, scoped, tag = 'output window, operand 0, single buffered']
    %8 = vsyncpa [#allocation4], 0
    %9 = vsyncpa [#allocation7], 0
    %10 = vsyncpa [#allocation5], 0
    // Predicated region
    $region2: #{tpu_custom_call.1} parent=1 // pred_check
      _
    $region3: #{tpu_custom_call.1} parent=1 // pred_check_branch
      %12 = sbr.rel (0) target = $region5
    $region4: #{tpu_custom_call.1} parent=1 // pred_region
      %s14 = ssub.s32 2048, 2048
      %15 = vsyncadd [#allocation4], %s14
      %s16 = sshll.u32 [#allocation3], 4
      %s17 = int_to_ptr.vmem [resolvable:$true] %s16
      %22 = dma.hbm_to_vmem [thread:$0]  %s0, 2048, %s17, [#allocation4], 128, 128, 8
    $region5: #{tpu_custom_call.1} parent=1 // pred_fallthru
      _
    // Predicated region
    $region6: #{tpu_custom_call.1} parent=1 // pred_check
      _
    $region7: #{tpu_custom_call.1} parent=1 // pred_check_branch
      %24 = sbr.rel (0) target = $region9
    $region8: #{tpu_custom_call.1} parent=1 // pred_region
      %s26 = ssub.s32 256, 256
      %27 = vsyncadd [#allocation7], %s26
      %s28 = sshll.u32 [#allocation6], 4
      %s29 = int_to_ptr.vmem [resolvable:$true] %s28
      %34 = dma.hbm_to_vmem [thread:$0]  %s1, 256, %s29, [#allocation7], 128, 128, 8
    $region9: #{tpu_custom_call.1} parent=1 // pred_fallthru
      _
    // Predicated region
    $region10: #{tpu_custom_call.1} parent=1 // pred_check
      _
    $region11: #{tpu_custom_call.1} parent=1 // pred_check_branch
      %36 = sbr.rel (0) target = $region13
    $region12: #{tpu_custom_call.1} parent=1 // pred_region
      %s38 = ssub.s32 256, 256
      %39 = vsyncadd [#allocation7], %s38
      %s40 = sshll.u32 [#allocation8], 4
      %s41 = int_to_ptr.vmem [resolvable:$true] %s40
      %46 = dma.hbm_to_vmem [thread:$0]  %s2, 256, %s41, [#allocation7], 128, 128, 8
    $region13: #{tpu_custom_call.1} parent=1 // pred_fallthru
      _
    // Predicated region
    $region14: #{tpu_custom_call.1} parent=1 // pred_check
      _
    $region15: #{tpu_custom_call.1} parent=1 // pred_check_branch
      %48 = sbr.rel (0) target = $region17
    $region16: #{tpu_custom_call.1} parent=1 // pred_region
      %49 = dma.done [#allocation4], 2048
    $region17: #{tpu_custom_call.1} parent=1 // pred_fallthru
      _
    // Predicated region
    $region18: #{tpu_custom_call.1} parent=1 // pred_check
      _
    $region19: #{tpu_custom_call.1} parent=1 // pred_check_branch
      %51 = sbr.rel (0) target = $region21
    $region20: #{tpu_custom_call.1} parent=1 // pred_region
      %52 = dma.done [#allocation7], 256
    $region21: #{tpu_custom_call.1} parent=1 // pred_fallthru
      _
    // Predicated region
    $region22: #{tpu_custom_call.1} parent=1 // pred_check
      _
    $region23: #{tpu_custom_call.1} parent=1 // pred_check_branch
      %54 = sbr.rel (0) target = $region25
    $region24: #{tpu_custom_call.1} parent=1 // pred_region
      %55 = dma.done [#allocation7], 256
    $region25: #{tpu_custom_call.1} parent=1 // pred_fallthru
      _
    %v56 = vld [vmem:[#allocation6] sm:$0xff]
    %v57 = vld [vmem:[#allocation6 + $0x8] sm:$0xff]
    %v58 = vld [vmem:[#allocation8] sm:$0xff]
    %v59 = vld [vmem:[#allocation8 + $0x8] sm:$0xff]
    %s60 = smul.u32 0, 16
    %s61 = scalar_lea.vmem [#allocation3], %s60
    %v62 = vld [vmem:[%s61] sm:$0xff]
    %v63 = vld [vmem:[%s61 + $0x8] sm:$0xff]
    %v64 = vld [vmem:[%s61 + $0x10] sm:$0xff]
    %v65 = vld [vmem:[%s61 + $0x18] sm:$0xff]
    %v66 = vld [vmem:[%s61 + $0x20] sm:$0xff]
    %v67 = vld [vmem:[%s61 + $0x28] sm:$0xff]
    %v68 = vld [vmem:[%s61 + $0x30] sm:$0xff]
    %v69 = vld [vmem:[%s61 + $0x38] sm:$0xff]
    %v70 = vld [vmem:[%s61 + $0x40] sm:$0xff]
    %v71 = vld [vmem:[%s61 + $0x48] sm:$0xff]
    %v72 = vld [vmem:[%s61 + $0x50] sm:$0xff]
    %v73 = vld [vmem:[%s61 + $0x58] sm:$0xff]
    %v74 = vld [vmem:[%s61 + $0x60] sm:$0xff]
    %v75 = vld [vmem:[%s61 + $0x68] sm:$0xff]
    %v76 = vld [vmem:[%s61 + $0x70] sm:$0xff]
    %v77 = vld [vmem:[%s61 + $0x78] sm:$0xff]
    %vm78 = vcmask 130048
    %v80 = vsel %vm78, %v62, 0
    %v83 = vsel %vm78, %v63, 0
    %v86 = vsel %vm78, %v64, 0
    %v89 = vsel %vm78, %v65, 0
    %v92 = vsel %vm78, %v66, 0
    %v95 = vsel %vm78, %v67, 0
    %v98 = vsel %vm78, %v68, 0
    %v101 = vsel %vm78, %v69, 0
    %v104 = vsel %vm78, %v70, 0
    %v107 = vsel %vm78, %v71, 0
    %v110 = vsel %vm78, %v72, 0
    %v113 = vsel %vm78, %v73, 0
    %v116 = vsel %vm78, %v74, 0
    %v119 = vsel %vm78, %v75, 0
    %v122 = vsel %vm78, %v76, 0
    %v125 = vsel %vm78, %v77, 0
    %127 = vmatprep.subr.mxu0 0.0
    %128 = vmatpush1.msra.mxu0 0.0
    %129 = vmatprep.subr.mxu0 0.0
    %130 = vmatpush1.msra.mxu0 0.0
    %131 = vmatprep.subr.mxu0 0.0
    %132 = vmatpush1.msra.mxu0 0.0
    %133 = vmatprep.subr.mxu0 0.0
    %134 = vmatpush1.msra.mxu0 0.0
    %135 = vmatprep.subr.mxu0 0.0
    %136 = vmatpush1.msra.mxu0 0.0
    %137 = vmatprep.subr.mxu0 0.0
    %138 = vmatpush1.msra.mxu0 0.0
    %139 = vmatprep.subr.mxu0 0.0
    %140 = vmatpush1.msra.mxu0 0.0
    %141 = vmatprep.subr.mxu0 0.0
    %142 = vmatpush1.msra.mxu0 0.0
    %143 = vmatprep.subr.mxu0 0.0
    %144 = vmatpush1.msra.mxu0 0.0
    %145 = vmatprep.subr.mxu0 0.0
    %146 = vmatpush1.msra.mxu0 0.0
    %147 = vmatprep.subr.mxu0 0.0
    %148 = vmatpush1.msra.mxu0 0.0
    %149 = vmatprep.subr.mxu0 0.0
    %150 = vmatpush1.msra.mxu0 0.0
    %151 = vmatprep.subr.mxu0 0.0
    %152 = vmatpush1.msra.mxu0 0.0
    %153 = vmatprep.subr.mxu0 0.0
    %154 = vmatpush1.msra.mxu0 0.0
    %155 = vmatprep.subr.mxu0 0.0
    %v156 = vand.u32 %v59, 4294901760
    %157 = vmatpush1.msra.mxu0 %v156
    %158 = vmatprep.subr.mxu0 0.0
    %v159 = vand.u32 %v58, 4294901760
    %160 = vmatpush1.msra.mxu0 %v159
    %161 = vmatprep.subr.mxu0 0.0
    %162 = vmatpush2.msra.mxu0 0.0
    %163 = vmatprep.subr.mxu0 0.0
    %164 = vmatpush2.msra.mxu0 0.0
    %165 = vmatprep.subr.mxu0 0.0
    %166 = vmatpush2.msra.mxu0 0.0
    %167 = vmatprep.subr.mxu0 0.0
    %168 = vmatpush2.msra.mxu0 0.0
    %169 = vmatprep.subr.mxu0 0.0
    %170 = vmatpush2.msra.mxu0 0.0
    %171 = vmatprep.subr.mxu0 0.0
    %172 = vmatpush2.msra.mxu0 0.0
    %173 = vmatprep.subr.mxu0 0.0
    %174 = vmatpush2.msra.mxu0 0.0
    %175 = vmatprep.subr.mxu0 0.0
    %176 = vmatpush2.msra.mxu0 0.0
    %177 = vmatprep.subr.mxu0 0.0
    %178 = vmatpush2.msra.mxu0 0.0
    %179 = vmatprep.subr.mxu0 0.0
    %180 = vmatpush2.msra.mxu0 0.0
    %181 = vmatprep.subr.mxu0 0.0
    %182 = vmatpush2.msra.mxu0 0.0
    %183 = vmatprep.subr.mxu0 0.0
    %184 = vmatpush2.msra.mxu0 0.0
    %185 = vmatprep.subr.mxu0 0.0
    %186 = vmatpush2.msra.mxu0 0.0
    %187 = vmatprep.subr.mxu0 0.0
    %188 = vmatpush2.msra.mxu0 0.0
    %189 = vmatprep.subr.mxu0 0.0
    %190 = vmatpush2.msra.mxu0 0.0
    %191 = vmatprep.subr.mxu0 0.0
    %192 = vmatpush2.msra.mxu0 0.0
    %193 = vmatprep.mubr.f32.mxu0 0.0
    %v194 = vand.u32 %v80, 4294901760
    %v195 = vsub.f32 %v80, %v194
    %v196 = vand.u32 %v195, 4294901760
    %v197 = vsub.f32 %v195, %v196
    %v198 = vand.u32 %v197, 4294901760
    %199 = vmatmul.mubr.f32.gmra.mxu0 %v198
    %v200 = vpop.f32.mrf.mxu0
    %v201 = vadd.f32 0.0, %v200
    %v202 = vpop.f32.mrf.mxu0
    %203 = vmatprep.mubr.f32.mxu0 0.0
    %v204 = vand.u32 %v83, 4294901760
    %v205 = vsub.f32 %v83, %v204
    %v206 = vand.u32 %v205, 4294901760
    %v207 = vsub.f32 %v205, %v206
    %v208 = vand.u32 %v207, 4294901760
    %209 = vmatmul.mubr.f32.gmra.mxu0 %v208
    %v210 = vpop.f32.mrf.mxu0
    %v211 = vadd.f32 0.0, %v210
    %v212 = vpop.f32.mrf.mxu0
    %213 = vmatprep.mubr.f32.mxu0 0.0
    %v214 = vand.u32 %v86, 4294901760
    %v215 = vsub.f32 %v86, %v214
    %v216 = vand.u32 %v215, 4294901760
    %v217 = vsub.f32 %v215, %v216
    %v218 = vand.u32 %v217, 4294901760
    %219 = vmatmul.mubr.f32.gmra.mxu0 %v218
    %v220 = vpop.f32.mrf.mxu0
    %v221 = vadd.f32 0.0, %v220
    %v222 = vpop.f32.mrf.mxu0
    %223 = vmatprep.mubr.f32.mxu0 0.0
    %v224 = vand.u32 %v89, 4294901760
    %v225 = vsub.f32 %v89, %v224
    %v226 = vand.u32 %v225, 4294901760
    %v227 = vsub.f32 %v225, %v226
    %v228 = vand.u32 %v227, 4294901760
    %229 = vmatmul.mubr.f32.gmra.mxu0 %v228
    %v230 = vpop.f32.mrf.mxu0
    %v231 = vadd.f32 0.0, %v230
    %v232 = vpop.f32.mrf.mxu0
    %233 = vmatprep.mubr.f32.mxu0 0.0
    %v234 = vand.u32 %v92, 4294901760
    %v235 = vsub.f32 %v92, %v234
    %v236 = vand.u32 %v235, 4294901760
    %v237 = vsub.f32 %v235, %v236
    %v238 = vand.u32 %v237, 4294901760
    %239 = vmatmul.mubr.f32.gmra.mxu0 %v238
    %v240 = vpop.f32.mrf.mxu0
    %v241 = vadd.f32 0.0, %v240
    %v242 = vpop.f32.mrf.mxu0
    %243 = vmatprep.mubr.f32.mxu0 0.0
    %v244 = vand.u32 %v95, 4294901760
    %v245 = vsub.f32 %v95, %v244
    %v246 = vand.u32 %v245, 4294901760
    %v247 = vsub.f32 %v245, %v246
    %v248 = vand.u32 %v247, 4294901760
    %249 = vmatmul.mubr.f32.gmra.mxu0 %v248
    %v250 = vpop.f32.mrf.mxu0
    %v251 = vadd.f32 0.0, %v250
    %v252 = vpop.f32.mrf.mxu0
    %253 = vmatprep.mubr.f32.mxu0 0.0
    %v254 = vand.u32 %v98, 4294901760
    %v255 = vsub.f32 %v98, %v254
    %v256 = vand.u32 %v255, 4294901760
    %v257 = vsub.f32 %v255, %v256
    %v258 = vand.u32 %v257, 4294901760
    %259 = vmatmul.mubr.f32.gmra.mxu0 %v258
    %v260 = vpop.f32.mrf.mxu0
    %v261 = vadd.f32 0.0, %v260
    %v262 = vpop.f32.mrf.mxu0
    %263 = vmatprep.mubr.f32.mxu0 0.0
    %v264 = vand.u32 %v101, 4294901760
    %v265 = vsub.f32 %v101, %v264
    %v266 = vand.u32 %v265, 4294901760
    %v267 = vsub.f32 %v265, %v266
    %v268 = vand.u32 %v267, 4294901760
    %269 = vmatmul.mubr.f32.gmra.mxu0 %v268
    %v270 = vpop.f32.mrf.mxu0
    %v271 = vadd.f32 0.0, %v270
    %v272 = vpop.f32.mrf.mxu0
    %273 = vmatprep.mubr.f32.mxu0 0.0
    %v274 = vand.u32 %v104, 4294901760
    %v275 = vsub.f32 %v104, %v274
    %v276 = vand.u32 %v275, 4294901760
    %v277 = vsub.f32 %v275, %v276
    %v278 = vand.u32 %v277, 4294901760
    %279 = vmatmul.mubr.f32.gmra.mxu0 %v278
    %v280 = vpop.f32.mrf.mxu0
    %v281 = vadd.f32 0.0, %v280
    %v282 = vpop.f32.mrf.mxu0
    %283 = vmatprep.mubr.f32.mxu0 0.0
    %v284 = vand.u32 %v107, 4294901760
    %v285 = vsub.f32 %v107, %v284
    %v286 = vand.u32 %v285, 4294901760
    %v287 = vsub.f32 %v285, %v286
    %v288 = vand.u32 %v287, 4294901760
    %289 = vmatmul.mubr.f32.gmra.mxu0 %v288
    %v290 = vpop.f32.mrf.mxu0
    %v291 = vadd.f32 0.0, %v290
    %v292 = vpop.f32.mrf.mxu0
    %293 = vmatprep.mubr.f32.mxu0 0.0
    %v294 = vand.u32 %v110, 4294901760
    %v295 = vsub.f32 %v110, %v294
    %v296 = vand.u32 %v295, 4294901760
    %v297 = vsub.f32 %v295, %v296
    %v298 = vand.u32 %v297, 4294901760
    %299 = vmatmul.mubr.f32.gmra.mxu0 %v298
    %v300 = vpop.f32.mrf.mxu0
    %v301 = vadd.f32 0.0, %v300
    %v302 = vpop.f32.mrf.mxu0
    %303 = vmatprep.mubr.f32.mxu0 0.0
    %v304 = vand.u32 %v113, 4294901760
    %v305 = vsub.f32 %v113, %v304
    %v306 = vand.u32 %v305, 4294901760
    %v307 = vsub.f32 %v305, %v306
    %v308 = vand.u32 %v307, 4294901760
    %309 = vmatmul.mubr.f32.gmra.mxu0 %v308
    %v310 = vpop.f32.mrf.mxu0
    %v311 = vadd.f32 0.0, %v310
    %v312 = vpop.f32.mrf.mxu0
    %313 = vmatprep.mubr.f32.mxu0 0.0
    %v314 = vand.u32 %v116, 4294901760
    %v315 = vsub.f32 %v116, %v314
    %v316 = vand.u32 %v315, 4294901760
    %v317 = vsub.f32 %v315, %v316
    %v318 = vand.u32 %v317, 4294901760
    %319 = vmatmul.mubr.f32.gmra.mxu0 %v318
    %v320 = vpop.f32.mrf.mxu0
    %v321 = vadd.f32 0.0, %v320
    %v322 = vpop.f32.mrf.mxu0
    %323 = vmatprep.mubr.f32.mxu0 0.0
    %v324 = vand.u32 %v119, 4294901760
    %v325 = vsub.f32 %v119, %v324
    %v326 = vand.u32 %v325, 4294901760
    %v327 = vsub.f32 %v325, %v326
    %v328 = vand.u32 %v327, 4294901760
    %329 = vmatmul.mubr.f32.gmra.mxu0 %v328
    %v330 = vpop.f32.mrf.mxu0
    %v331 = vadd.f32 0.0, %v330
    %v332 = vpop.f32.mrf.mxu0
    %333 = vmatprep.mubr.f32.mxu0 0.0
    %v334 = vand.u32 %v122, 4294901760
    %v335 = vsub.f32 %v122, %v334
    %v336 = vand.u32 %v335, 4294901760
    %v337 = vsub.f32 %v335, %v336
    %v338 = vand.u32 %v337, 4294901760
    %339 = vmatmul.mubr.f32.gmra.mxu0 %v338
    %v340 = vpop.f32.mrf.mxu0
    %v341 = vadd.f32 0.0, %v340
    %v342 = vpop.f32.mrf.mxu0
    %343 = vmatprep.mubr.f32.mxu0 0.0
    %v344 = vand.u32 %v125, 4294901760
    %v345 = vsub.f32 %v125, %v344
    %v346 = vand.u32 %v345, 4294901760
    %v347 = vsub.f32 %v345, %v346
    %v348 = vand.u32 %v347, 4294901760
    %349 = vmatmul.mubr.f32.gmra.mxu0 %v348
    %v350 = vpop.f32.mrf.mxu0
    %v351 = vadd.f32 0.0, %v350
    %v352 = vpop.f32.mrf.mxu0
    %353 = vdwg.mxu0
    %354 = vmatprep.subr.mxu0 0.0
    %355 = vmatpush1.msra.mxu0 0.0
    %356 = vmatprep.subr.mxu0 0.0
    %357 = vmatpush1.msra.mxu0 0.0
    %358 = vmatprep.subr.mxu0 0.0
    %359 = vmatpush1.msra.mxu0 0.0
    %360 = vmatprep.subr.mxu0 0.0
    %361 = vmatpush1.msra.mxu0 0.0
    %362 = vmatprep.subr.mxu0 0.0
    %363 = vmatpush1.msra.mxu0 0.0
    %364 = vmatprep.subr.mxu0 0.0
    %365 = vmatpush1.msra.mxu0 0.0
    %366 = vmatprep.subr.mxu0 0.0
    %367 = vmatpush1.msra.mxu0 0.0
    %368 = vmatprep.subr.mxu0 0.0
    %369 = vmatpush1.msra.mxu0 0.0
    %370 = vmatprep.subr.mxu0 0.0
    %371 = vmatpush1.msra.mxu0 0.0
    %372 = vmatprep.subr.mxu0 0.0
    %373 = vmatpush1.msra.mxu0 0.0
    %374 = vmatprep.subr.mxu0 0.0
    %375 = vmatpush1.msra.mxu0 0.0
    %376 = vmatprep.subr.mxu0 0.0
    %377 = vmatpush1.msra.mxu0 0.0
    %378 = vmatprep.subr.mxu0 0.0
    %379 = vmatpush1.msra.mxu0 0.0
    %380 = vmatprep.subr.mxu0 0.0
    %381 = vmatpush1.msra.mxu0 0.0
    %382 = vmatprep.subr.mxu0 0.0
    %v383 = vand.u32 %v59, 4294901760
    %v384 = vsub.f32 %v59, %v383
    %v385 = vand.u32 %v384, 4294901760
    %v386 = vsub.f32 %v384, %v385
    %v387 = vand.u32 %v386, 4294901760
    %388 = vmatpush1.msra.mxu0 %v387
    %389 = vmatprep.subr.mxu0 0.0
    %v390 = vand.u32 %v58, 4294901760
    %v391 = vsub.f32 %v58, %v390
    %v392 = vand.u32 %v391, 4294901760
    %v393 = vsub.f32 %v391, %v392
    %v394 = vand.u32 %v393, 4294901760
    %395 = vmatpush1.msra.mxu0 %v394
    %396 = vmatprep.subr.mxu0 0.0
    %397 = vmatpush2.msra.mxu0 0.0
    %398 = vmatprep.subr.mxu0 0.0
    %399 = vmatpush2.msra.mxu0 0.0
    %400 = vmatprep.subr.mxu0 0.0
    %401 = vmatpush2.msra.mxu0 0.0
    %402 = vmatprep.subr.mxu0 0.0
    %403 = vmatpush2.msra.mxu0 0.0
    %404 = vmatprep.subr.mxu0 0.0
    %405 = vmatpush2.msra.mxu0 0.0
    %406 = vmatprep.subr.mxu0 0.0
    %407 = vmatpush2.msra.mxu0 0.0
    %408 = vmatprep.subr.mxu0 0.0
    %409 = vmatpush2.msra.mxu0 0.0
    %410 = vmatprep.subr.mxu0 0.0
    %411 = vmatpush2.msra.mxu0 0.0
    %412 = vmatprep.subr.mxu0 0.0
    %413 = vmatpush2.msra.mxu0 0.0
    %414 = vmatprep.subr.mxu0 0.0
    %415 = vmatpush2.msra.mxu0 0.0
    %416 = vmatprep.subr.mxu0 0.0
    %417 = vmatpush2.msra.mxu0 0.0
    %418 = vmatprep.subr.mxu0 0.0
    %419 = vmatpush2.msra.mxu0 0.0
    %420 = vmatprep.subr.mxu0 0.0
    %421 = vmatpush2.msra.mxu0 0.0
    %422 = vmatprep.subr.mxu0 0.0
    %423 = vmatpush2.msra.mxu0 0.0
    %424 = vmatprep.subr.mxu0 0.0
    %425 = vmatpush2.msra.mxu0 0.0
    %426 = vmatprep.subr.mxu0 0.0
    %427 = vmatpush2.msra.mxu0 0.0
    %428 = vmatprep.mubr.f32.mxu0 0.0
    %v429 = vand.u32 %v80, 4294901760
    %430 = vmatmul.mubr.f32.gmra.mxu0 %v429
    %v431 = vpop.f32.mrf.mxu0
    %v432 = vadd.f32 %v201, %v431
    %v433 = vpop.f32.mrf.mxu0
    %434 = vmatprep.mubr.f32.mxu0 0.0
    %v435 = vand.u32 %v83, 4294901760
    %436 = vmatmul.mubr.f32.gmra.mxu0 %v435
    %v437 = vpop.f32.mrf.mxu0
    %v438 = vadd.f32 %v211, %v437
    %v439 = vpop.f32.mrf.mxu0
    %440 = vmatprep.mubr.f32.mxu0 0.0
    %v441 = vand.u32 %v86, 4294901760
    %442 = vmatmul.mubr.f32.gmra.mxu0 %v441
    %v443 = vpop.f32.mrf.mxu0
    %v444 = vadd.f32 %v221, %v443
    %v445 = vpop.f32.mrf.mxu0
    %446 = vmatprep.mubr.f32.mxu0 0.0
    %v447 = vand.u32 %v89, 4294901760
    %448 = vmatmul.mubr.f32.gmra.mxu0 %v447
    %v449 = vpop.f32.mrf.mxu0
    %v450 = vadd.f32 %v231, %v449
    %v451 = vpop.f32.mrf.mxu0
    %452 = vmatprep.mubr.f32.mxu0 0.0
    %v453 = vand.u32 %v92, 4294901760
    %454 = vmatmul.mubr.f32.gmra.mxu0 %v453
    %v455 = vpop.f32.mrf.mxu0
    %v456 = vadd.f32 %v241, %v455
    %v457 = vpop.f32.mrf.mxu0
    %458 = vmatprep.mubr.f32.mxu0 0.0
    %v459 = vand.u32 %v95, 4294901760
    %460 = vmatmul.mubr.f32.gmra.mxu0 %v459
    %v461 = vpop.f32.mrf.mxu0
    %v462 = vadd.f32 %v251, %v461
    %v463 = vpop.f32.mrf.mxu0
    %464 = vmatprep.mubr.f32.mxu0 0.0
    %v465 = vand.u32 %v98, 4294901760
    %466 = vmatmul.mubr.f32.gmra.mxu0 %v465
    %v467 = vpop.f32.mrf.mxu0
    %v468 = vadd.f32 %v261, %v467
    %v469 = vpop.f32.mrf.mxu0
    %470 = vmatprep.mubr.f32.mxu0 0.0
    %v471 = vand.u32 %v101, 4294901760
    %472 = vmatmul.mubr.f32.gmra.mxu0 %v471
    %v473 = vpop.f32.mrf.mxu0
    %v474 = vadd.f32 %v271, %v473
    %v475 = vpop.f32.mrf.mxu0
    %476 = vmatprep.mubr.f32.mxu0 0.0
    %v477 = vand.u32 %v104, 4294901760
    %478 = vmatmul.mubr.f32.gmra.mxu0 %v477
    %v479 = vpop.f32.mrf.mxu0
    %v480 = vadd.f32 %v281, %v479
    %v481 = vpop.f32.mrf.mxu0
    %482 = vmatprep.mubr.f32.mxu0 0.0
    %v483 = vand.u32 %v107, 4294901760
    %484 = vmatmul.mubr.f32.gmra.mxu0 %v483
    %v485 = vpop.f32.mrf.mxu0
    %v486 = vadd.f32 %v291, %v485
    %v487 = vpop.f32.mrf.mxu0
    %488 = vmatprep.mubr.f32.mxu0 0.0
    %v489 = vand.u32 %v110, 4294901760
    %490 = vmatmul.mubr.f32.gmra.mxu0 %v489
    %v491 = vpop.f32.mrf.mxu0
    %v492 = vadd.f32 %v301, %v491
    %v493 = vpop.f32.mrf.mxu0
    %494 = vmatprep.mubr.f32.mxu0 0.0
    %v495 = vand.u32 %v113, 4294901760
    %496 = vmatmul.mubr.f32.gmra.mxu0 %v495
    %v497 = vpop.f32.mrf.mxu0
    %v498 = vadd.f32 %v311, %v497
    %v499 = vpop.f32.mrf.mxu0
    %500 = vmatprep.mubr.f32.mxu0 0.0
    %v501 = vand.u32 %v116, 4294901760
    %502 = vmatmul.mubr.f32.gmra.mxu0 %v501
    %v503 = vpop.f32.mrf.mxu0
    %v504 = vadd.f32 %v321, %v503
    %v505 = vpop.f32.mrf.mxu0
    %506 = vmatprep.mubr.f32.mxu0 0.0
    %v507 = vand.u32 %v119, 4294901760
    %508 = vmatmul.mubr.f32.gmra.mxu0 %v507
    %v509 = vpop.f32.mrf.mxu0
    %v510 = vadd.f32 %v331, %v509
    %v511 = vpop.f32.mrf.mxu0
    %512 = vmatprep.mubr.f32.mxu0 0.0
    %v513 = vand.u32 %v122, 4294901760
    %514 = vmatmul.mubr.f32.gmra.mxu0 %v513
    %v515 = vpop.f32.mrf.mxu0
    %v516 = vadd.f32 %v341, %v515
    %v517 = vpop.f32.mrf.mxu0
    %518 = vmatprep.mubr.f32.mxu0 0.0
    %v519 = vand.u32 %v125, 4294901760
    %520 = vmatmul.mubr.f32.gmra.mxu0 %v519
    %v521 = vpop.f32.mrf.mxu0
    %v522 = vadd.f32 %v351, %v521
    %v523 = vpop.f32.mrf.mxu0
    %524 = vdwg.mxu0
    %525 = vmatprep.subr.mxu0 0.0
    %526 = vmatpush1.msra.mxu0 0.0
    %527 = vmatprep.subr.mxu0 0.0
    %528 = vmatpush1.msra.mxu0 0.0
    %529 = vmatprep.subr.mxu0 0.0
    %530 = vmatpush1.msra.mxu0 0.0
    %531 = vmatprep.subr.mxu0 0.0
    %532 = vmatpush1.msra.mxu0 0.0
    %533 = vmatprep.subr.mxu0 0.0
    %534 = vmatpush1.msra.mxu0 0.0
    %535 = vmatprep.subr.mxu0 0.0
    %536 = vmatpush1.msra.mxu0 0.0
    %537 = vmatprep.subr.mxu0 0.0
    %538 = vmatpush1.msra.mxu0 0.0
    %539 = vmatprep.subr.mxu0 0.0
    %540 = vmatpush1.msra.mxu0 0.0
    %541 = vmatprep.subr.mxu0 0.0
    %542 = vmatpush1.msra.mxu0 0.0
    %543 = vmatprep.subr.mxu0 0.0
    %544 = vmatpush1.msra.mxu0 0.0
    %545 = vmatprep.subr.mxu0 0.0
    %546 = vmatpush1.msra.mxu0 0.0
    %547 = vmatprep.subr.mxu0 0.0
    %548 = vmatpush1.msra.mxu0 0.0
    %549 = vmatprep.subr.mxu0 0.0
    %550 = vmatpush1.msra.mxu0 0.0
    %551 = vmatprep.subr.mxu0 0.0
    %552 = vmatpush1.msra.mxu0 0.0
    %553 = vmatprep.subr.mxu0 0.0
    %v554 = vand.u32 %v59, 4294901760
    %v555 = vsub.f32 %v59, %v554
    %556 = vmatpush1.msra.mxu0 %v555
    %557 = vmatprep.subr.mxu0 0.0
    %v558 = vand.u32 %v58, 4294901760
    %v559 = vsub.f32 %v58, %v558
    %560 = vmatpush1.msra.mxu0 %v559
    %561 = vmatprep.subr.mxu0 0.0
    %562 = vmatpush2.msra.mxu0 0.0
    %563 = vmatprep.subr.mxu0 0.0
    %564 = vmatpush2.msra.mxu0 0.0
    %565 = vmatprep.subr.mxu0 0.0
    %566 = vmatpush2.msra.mxu0 0.0
    %567 = vmatprep.subr.mxu0 0.0
    %568 = vmatpush2.msra.mxu0 0.0
    %569 = vmatprep.subr.mxu0 0.0
    %570 = vmatpush2.msra.mxu0 0.0
    %571 = vmatprep.subr.mxu0 0.0
    %572 = vmatpush2.msra.mxu0 0.0
    %573 = vmatprep.subr.mxu0 0.0
    %574 = vmatpush2.msra.mxu0 0.0
    %575 = vmatprep.subr.mxu0 0.0
    %576 = vmatpush2.msra.mxu0 0.0
    %577 = vmatprep.subr.mxu0 0.0
    %578 = vmatpush2.msra.mxu0 0.0
    %579 = vmatprep.subr.mxu0 0.0
    %580 = vmatpush2.msra.mxu0 0.0
    %581 = vmatprep.subr.mxu0 0.0
    %582 = vmatpush2.msra.mxu0 0.0
    %583 = vmatprep.subr.mxu0 0.0
    %584 = vmatpush2.msra.mxu0 0.0
    %585 = vmatprep.subr.mxu0 0.0
    %586 = vmatpush2.msra.mxu0 0.0
    %587 = vmatprep.subr.mxu0 0.0
    %588 = vmatpush2.msra.mxu0 0.0
    %589 = vmatprep.subr.mxu0 0.0
    %590 = vmatpush2.msra.mxu0 0.0
    %591 = vmatprep.subr.mxu0 0.0
    %592 = vmatpush2.msra.mxu0 0.0
    %593 = vmatprep.mubr.f32.mxu0 0.0
    %v594 = vand.u32 %v80, 4294901760
    %v595 = vsub.f32 %v80, %v594
    %596 = vmatmul.mubr.f32.gmra.mxu0 %v595
    %v597 = vpop.f32.mrf.mxu0
    %v598 = vadd.f32 %v432, %v597
    %v599 = vpop.f32.mrf.mxu0
    %600 = vmatprep.mubr.f32.mxu0 0.0
    %v601 = vand.u32 %v83, 4294901760
    %v602 = vsub.f32 %v83, %v601
    %603 = vmatmul.mubr.f32.gmra.mxu0 %v602
    %v604 = vpop.f32.mrf.mxu0
    %v605 = vadd.f32 %v438, %v604
    %v606 = vpop.f32.mrf.mxu0
    %607 = vmatprep.mubr.f32.mxu0 0.0
    %v608 = vand.u32 %v86, 4294901760
    %v609 = vsub.f32 %v86, %v608
    %610 = vmatmul.mubr.f32.gmra.mxu0 %v609
    %v611 = vpop.f32.mrf.mxu0
    %v612 = vadd.f32 %v444, %v611
    %v613 = vpop.f32.mrf.mxu0
    %614 = vmatprep.mubr.f32.mxu0 0.0
    %v615 = vand.u32 %v89, 4294901760
    %v616 = vsub.f32 %v89, %v615
    %617 = vmatmul.mubr.f32.gmra.mxu0 %v616
    %v618 = vpop.f32.mrf.mxu0
    %v619 = vadd.f32 %v450, %v618
    %v620 = vpop.f32.mrf.mxu0
    %621 = vmatprep.mubr.f32.mxu0 0.0
    %v622 = vand.u32 %v92, 4294901760
    %v623 = vsub.f32 %v92, %v622
    %624 = vmatmul.mubr.f32.gmra.mxu0 %v623
    %v625 = vpop.f32.mrf.mxu0
    %v626 = vadd.f32 %v456, %v625
    %v627 = vpop.f32.mrf.mxu0
    %628 = vmatprep.mubr.f32.mxu0 0.0
    %v629 = vand.u32 %v95, 4294901760
    %v630 = vsub.f32 %v95, %v629
    %631 = vmatmul.mubr.f32.gmra.mxu0 %v630
    %v632 = vpop.f32.mrf.mxu0
    %v633 = vadd.f32 %v462, %v632
    %v634 = vpop.f32.mrf.mxu0
    %635 = vmatprep.mubr.f32.mxu0 0.0
    %v636 = vand.u32 %v98, 4294901760
    %v637 = vsub.f32 %v98, %v636
    %638 = vmatmul.mubr.f32.gmra.mxu0 %v637
    %v639 = vpop.f32.mrf.mxu0
    %v640 = vadd.f32 %v468, %v639
    %v641 = vpop.f32.mrf.mxu0
    %642 = vmatprep.mubr.f32.mxu0 0.0
    %v643 = vand.u32 %v101, 4294901760
    %v644 = vsub.f32 %v101, %v643
    %645 = vmatmul.mubr.f32.gmra.mxu0 %v644
    %v646 = vpop.f32.mrf.mxu0
    %v647 = vadd.f32 %v474, %v646
    %v648 = vpop.f32.mrf.mxu0
    %649 = vmatprep.mubr.f32.mxu0 0.0
    %v650 = vand.u32 %v104, 4294901760
    %v651 = vsub.f32 %v104, %v650
    %652 = vmatmul.mubr.f32.gmra.mxu0 %v651
    %v653 = vpop.f32.mrf.mxu0
    %v654 = vadd.f32 %v480, %v653
    %v655 = vpop.f32.mrf.mxu0
    %656 = vmatprep.mubr.f32.mxu0 0.0
    %v657 = vand.u32 %v107, 4294901760
    %v658 = vsub.f32 %v107, %v657
    %659 = vmatmul.mubr.f32.gmra.mxu0 %v658
    %v660 = vpop.f32.mrf.mxu0
    %v661 = vadd.f32 %v486, %v660
    %v662 = vpop.f32.mrf.mxu0
    %663 = vmatprep.mubr.f32.mxu0 0.0
    %v664 = vand.u32 %v110, 4294901760
    %v665 = vsub.f32 %v110, %v664
    %666 = vmatmul.mubr.f32.gmra.mxu0 %v665
    %v667 = vpop.f32.mrf.mxu0
    %v668 = vadd.f32 %v492, %v667
    %v669 = vpop.f32.mrf.mxu0
    %670 = vmatprep.mubr.f32.mxu0 0.0
    %v671 = vand.u32 %v113, 4294901760
    %v672 = vsub.f32 %v113, %v671
    %673 = vmatmul.mubr.f32.gmra.mxu0 %v672
    %v674 = vpop.f32.mrf.mxu0
    %v675 = vadd.f32 %v498, %v674
    %v676 = vpop.f32.mrf.mxu0
    %677 = vmatprep.mubr.f32.mxu0 0.0
    %v678 = vand.u32 %v116, 4294901760
    %v679 = vsub.f32 %v116, %v678
    %680 = vmatmul.mubr.f32.gmra.mxu0 %v679
    %v681 = vpop.f32.mrf.mxu0
    %v682 = vadd.f32 %v504, %v681
    %v683 = vpop.f32.mrf.mxu0
    %684 = vmatprep.mubr.f32.mxu0 0.0
    %v685 = vand.u32 %v119, 4294901760
    %v686 = vsub.f32 %v119, %v685
    %687 = vmatmul.mubr.f32.gmra.mxu0 %v686
    %v688 = vpop.f32.mrf.mxu0
    %v689 = vadd.f32 %v510, %v688
    %v690 = vpop.f32.mrf.mxu0
    %691 = vmatprep.mubr.f32.mxu0 0.0
    %v692 = vand.u32 %v122, 4294901760
    %v693 = vsub.f32 %v122, %v692
    %694 = vmatmul.mubr.f32.gmra.mxu0 %v693
    %v695 = vpop.f32.mrf.mxu0
    %v696 = vadd.f32 %v516, %v695
    %v697 = vpop.f32.mrf.mxu0
    %698 = vmatprep.mubr.f32.mxu0 0.0
    %v699 = vand.u32 %v125, 4294901760
    %v700 = vsub.f32 %v125, %v699
    %701 = vmatmul.mubr.f32.gmra.mxu0 %v700
    %v702 = vpop.f32.mrf.mxu0
    %v703 = vadd.f32 %v522, %v702
    %v704 = vpop.f32.mrf.mxu0
    %705 = vdwg.mxu0
    %706 = vmatprep.subr.mxu0 0.0
    %707 = vmatpush1.msra.mxu0 0.0
    %708 = vmatprep.subr.mxu0 0.0
    %709 = vmatpush1.msra.mxu0 0.0
    %710 = vmatprep.subr.mxu0 0.0
    %711 = vmatpush1.msra.mxu0 0.0
    %712 = vmatprep.subr.mxu0 0.0
    %713 = vmatpush1.msra.mxu0 0.0
    %714 = vmatprep.subr.mxu0 0.0
    %715 = vmatpush1.msra.mxu0 0.0
    %716 = vmatprep.subr.mxu0 0.0
    %717 = vmatpush1.msra.mxu0 0.0
    %718 = vmatprep.subr.mxu0 0.0
    %719 = vmatpush1.msra.mxu0 0.0
    %720 = vmatprep.subr.mxu0 0.0
    %721 = vmatpush1.msra.mxu0 0.0
    %722 = vmatprep.subr.mxu0 0.0
    %723 = vmatpush1.msra.mxu0 0.0
    %724 = vmatprep.subr.mxu0 0.0
    %725 = vmatpush1.msra.mxu0 0.0
    %726 = vmatprep.subr.mxu0 0.0
    %727 = vmatpush1.msra.mxu0 0.0
    %728 = vmatprep.subr.mxu0 0.0
    %729 = vmatpush1.msra.mxu0 0.0
    %730 = vmatprep.subr.mxu0 0.0
    %731 = vmatpush1.msra.mxu0 0.0
    %732 = vmatprep.subr.mxu0 0.0
    %733 = vmatpush1.msra.mxu0 0.0
    %734 = vmatprep.subr.mxu0 0.0
    %v735 = vand.u32 %v59, 4294901760
    %736 = vmatpush1.msra.mxu0 %v735
    %737 = vmatprep.subr.mxu0 0.0
    %v738 = vand.u32 %v58, 4294901760
    %739 = vmatpush1.msra.mxu0 %v738
    %740 = vmatprep.subr.mxu0 0.0
    %741 = vmatpush2.msra.mxu0 0.0
    %742 = vmatprep.subr.mxu0 0.0
    %743 = vmatpush2.msra.mxu0 0.0
    %744 = vmatprep.subr.mxu0 0.0
    %745 = vmatpush2.msra.mxu0 0.0
    %746 = vmatprep.subr.mxu0 0.0
    %747 = vmatpush2.msra.mxu0 0.0
    %748 = vmatprep.subr.mxu0 0.0
    %749 = vmatpush2.msra.mxu0 0.0
    %750 = vmatprep.subr.mxu0 0.0
    %751 = vmatpush2.msra.mxu0 0.0
    %752 = vmatprep.subr.mxu0 0.0
    %753 = vmatpush2.msra.mxu0 0.0
    %754 = vmatprep.subr.mxu0 0.0
    %755 = vmatpush2.msra.mxu0 0.0
    %756 = vmatprep.subr.mxu0 0.0
    %757 = vmatpush2.msra.mxu0 0.0
    %758 = vmatprep.subr.mxu0 0.0
    %759 = vmatpush2.msra.mxu0 0.0
    %760 = vmatprep.subr.mxu0 0.0
    %761 = vmatpush2.msra.mxu0 0.0
    %762 = vmatprep.subr.mxu0 0.0
    %763 = vmatpush2.msra.mxu0 0.0
    %764 = vmatprep.subr.mxu0 0.0
    %765 = vmatpush2.msra.mxu0 0.0
    %766 = vmatprep.subr.mxu0 0.0
    %767 = vmatpush2.msra.mxu0 0.0
    %768 = vmatprep.subr.mxu0 0.0
    %769 = vmatpush2.msra.mxu0 0.0
    %770 = vmatprep.subr.mxu0 0.0
    %771 = vmatpush2.msra.mxu0 0.0
    %772 = vmatprep.mubr.f32.mxu0 0.0
    %v773 = vand.u32 %v80, 4294901760
    %v774 = vsub.f32 %v80, %v773
    %v775 = vand.u32 %v774, 4294901760
    %776 = vmatmul.mubr.f32.gmra.mxu0 %v775
    %v777 = vpop.f32.mrf.mxu0
    %v778 = vadd.f32 %v598, %v777
    %v779 = vpop.f32.mrf.mxu0
    %780 = vmatprep.mubr.f32.mxu0 0.0
    %v781 = vand.u32 %v83, 4294901760
    %v782 = vsub.f32 %v83, %v781
    %v783 = vand.u32 %v782, 4294901760
    %784 = vmatmul.mubr.f32.gmra.mxu0 %v783
    %v785 = vpop.f32.mrf.mxu0
    %v786 = vadd.f32 %v605, %v785
    %v787 = vpop.f32.mrf.mxu0
    %788 = vmatprep.mubr.f32.mxu0 0.0
    %v789 = vand.u32 %v86, 4294901760
    %v790 = vsub.f32 %v86, %v789
    %v791 = vand.u32 %v790, 4294901760
    %792 = vmatmul.mubr.f32.gmra.mxu0 %v791
    %v793 = vpop.f32.mrf.mxu0
    %v794 = vadd.f32 %v612, %v793
    %v795 = vpop.f32.mrf.mxu0
    %796 = vmatprep.mubr.f32.mxu0 0.0
    %v797 = vand.u32 %v89, 4294901760
    %v798 = vsub.f32 %v89, %v797
    %v799 = vand.u32 %v798, 4294901760
    %800 = vmatmul.mubr.f32.gmra.mxu0 %v799
    %v801 = vpop.f32.mrf.mxu0
    %v802 = vadd.f32 %v619, %v801
    %v803 = vpop.f32.mrf.mxu0
    %804 = vmatprep.mubr.f32.mxu0 0.0
    %v805 = vand.u32 %v92, 4294901760
    %v806 = vsub.f32 %v92, %v805
    %v807 = vand.u32 %v806, 4294901760
    %808 = vmatmul.mubr.f32.gmra.mxu0 %v807
    %v809 = vpop.f32.mrf.mxu0
    %v810 = vadd.f32 %v626, %v809
    %v811 = vpop.f32.mrf.mxu0
    %812 = vmatprep.mubr.f32.mxu0 0.0
    %v813 = vand.u32 %v95, 4294901760
    %v814 = vsub.f32 %v95, %v813
    %v815 = vand.u32 %v814, 4294901760
    %816 = vmatmul.mubr.f32.gmra.mxu0 %v815
    %v817 = vpop.f32.mrf.mxu0
    %v818 = vadd.f32 %v633, %v817
    %v819 = vpop.f32.mrf.mxu0
    %820 = vmatprep.mubr.f32.mxu0 0.0
    %v821 = vand.u32 %v98, 4294901760
    %v822 = vsub.f32 %v98, %v821
    %v823 = vand.u32 %v822, 4294901760
    %824 = vmatmul.mubr.f32.gmra.mxu0 %v823
    %v825 = vpop.f32.mrf.mxu0
    %v826 = vadd.f32 %v640, %v825
    %v827 = vpop.f32.mrf.mxu0
    %828 = vmatprep.mubr.f32.mxu0 0.0
    %v829 = vand.u32 %v101, 4294901760
    %v830 = vsub.f32 %v101, %v829
    %v831 = vand.u32 %v830, 4294901760
    %832 = vmatmul.mubr.f32.gmra.mxu0 %v831
    %v833 = vpop.f32.mrf.mxu0
    %v834 = vadd.f32 %v647, %v833
    %v835 = vpop.f32.mrf.mxu0
    %836 = vmatprep.mubr.f32.mxu0 0.0
    %v837 = vand.u32 %v104, 4294901760
    %v838 = vsub.f32 %v104, %v837
    %v839 = vand.u32 %v838, 4294901760
    %840 = vmatmul.mubr.f32.gmra.mxu0 %v839
    %v841 = vpop.f32.mrf.mxu0
    %v842 = vadd.f32 %v654, %v841
    %v843 = vpop.f32.mrf.mxu0
    %844 = vmatprep.mubr.f32.mxu0 0.0
    %v845 = vand.u32 %v107, 4294901760
    %v846 = vsub.f32 %v107, %v845
    %v847 = vand.u32 %v846, 4294901760
    %848 = vmatmul.mubr.f32.gmra.mxu0 %v847
    %v849 = vpop.f32.mrf.mxu0
    %v850 = vadd.f32 %v661, %v849
    %v851 = vpop.f32.mrf.mxu0
    %852 = vmatprep.mubr.f32.mxu0 0.0
    %v853 = vand.u32 %v110, 4294901760
    %v854 = vsub.f32 %v110, %v853
    %v855 = vand.u32 %v854, 4294901760
    %856 = vmatmul.mubr.f32.gmra.mxu0 %v855
    %v857 = vpop.f32.mrf.mxu0
    %v858 = vadd.f32 %v668, %v857
    %v859 = vpop.f32.mrf.mxu0
    %860 = vmatprep.mubr.f32.mxu0 0.0
    %v861 = vand.u32 %v113, 4294901760
    %v862 = vsub.f32 %v113, %v861
    %v863 = vand.u32 %v862, 4294901760
    %864 = vmatmul.mubr.f32.gmra.mxu0 %v863
    %v865 = vpop.f32.mrf.mxu0
    %v866 = vadd.f32 %v675, %v865
    %v867 = vpop.f32.mrf.mxu0
    %868 = vmatprep.mubr.f32.mxu0 0.0
    %v869 = vand.u32 %v116, 4294901760
    %v870 = vsub.f32 %v116, %v869
    %v871 = vand.u32 %v870, 4294901760
    %872 = vmatmul.mubr.f32.gmra.mxu0 %v871
    %v873 = vpop.f32.mrf.mxu0
    %v874 = vadd.f32 %v682, %v873
    %v875 = vpop.f32.mrf.mxu0
    %876 = vmatprep.mubr.f32.mxu0 0.0
    %v877 = vand.u32 %v119, 4294901760
    %v878 = vsub.f32 %v119, %v877
    %v879 = vand.u32 %v878, 4294901760
    %880 = vmatmul.mubr.f32.gmra.mxu0 %v879
    %v881 = vpop.f32.mrf.mxu0
    %v882 = vadd.f32 %v689, %v881
    %v883 = vpop.f32.mrf.mxu0
    %884 = vmatprep.mubr.f32.mxu0 0.0
    %v885 = vand.u32 %v122, 4294901760
    %v886 = vsub.f32 %v122, %v885
    %v887 = vand.u32 %v886, 4294901760
    %888 = vmatmul.mubr.f32.gmra.mxu0 %v887
    %v889 = vpop.f32.mrf.mxu0
    %v890 = vadd.f32 %v696, %v889
    %v891 = vpop.f32.mrf.mxu0
    %892 = vmatprep.mubr.f32.mxu0 0.0
    %v893 = vand.u32 %v125, 4294901760
    %v894 = vsub.f32 %v125, %v893
    %v895 = vand.u32 %v894, 4294901760
    %896 = vmatmul.mubr.f32.gmra.mxu0 %v895
    %v897 = vpop.f32.mrf.mxu0
    %v898 = vadd.f32 %v703, %v897
    %v899 = vpop.f32.mrf.mxu0
    %900 = vdwg.mxu0
    %901 = vmatprep.subr.mxu0 0.0
    %902 = vmatpush1.msra.mxu0 0.0
    %903 = vmatprep.subr.mxu0 0.0
    %904 = vmatpush1.msra.mxu0 0.0
    %905 = vmatprep.subr.mxu0 0.0
    %906 = vmatpush1.msra.mxu0 0.0
    %907 = vmatprep.subr.mxu0 0.0
    %908 = vmatpush1.msra.mxu0 0.0
    %909 = vmatprep.subr.mxu0 0.0
    %910 = vmatpush1.msra.mxu0 0.0
    %911 = vmatprep.subr.mxu0 0.0
    %912 = vmatpush1.msra.mxu0 0.0
    %913 = vmatprep.subr.mxu0 0.0
    %914 = vmatpush1.msra.mxu0 0.0
    %915 = vmatprep.subr.mxu0 0.0
    %916 = vmatpush1.msra.mxu0 0.0
    %917 = vmatprep.subr.mxu0 0.0
    %918 = vmatpush1.msra.mxu0 0.0
    %919 = vmatprep.subr.mxu0 0.0
    %920 = vmatpush1.msra.mxu0 0.0
    %921 = vmatprep.subr.mxu0 0.0
    %922 = vmatpush1.msra.mxu0 0.0
    %923 = vmatprep.subr.mxu0 0.0
    %924 = vmatpush1.msra.mxu0 0.0
    %925 = vmatprep.subr.mxu0 0.0
    %926 = vmatpush1.msra.mxu0 0.0
    %927 = vmatprep.subr.mxu0 0.0
    %928 = vmatpush1.msra.mxu0 0.0
    %929 = vmatprep.subr.mxu0 0.0
    %v930 = vand.u32 %v59, 4294901760
    %v931 = vsub.f32 %v59, %v930
    %v932 = vand.u32 %v931, 4294901760
    %933 = vmatpush1.msra.mxu0 %v932
    %934 = vmatprep.subr.mxu0 0.0
    %v935 = vand.u32 %v58, 4294901760
    %v936 = vsub.f32 %v58, %v935
    %v937 = vand.u32 %v936, 4294901760
    %938 = vmatpush1.msra.mxu0 %v937
    %939 = vmatprep.subr.mxu0 0.0
    %940 = vmatpush2.msra.mxu0 0.0
    %941 = vmatprep.subr.mxu0 0.0
    %942 = vmatpush2.msra.mxu0 0.0
    %943 = vmatprep.subr.mxu0 0.0
    %944 = vmatpush2.msra.mxu0 0.0
    %945 = vmatprep.subr.mxu0 0.0
    %946 = vmatpush2.msra.mxu0 0.0
    %947 = vmatprep.subr.mxu0 0.0
    %948 = vmatpush2.msra.mxu0 0.0
    %949 = vmatprep.subr.mxu0 0.0
    %950 = vmatpush2.msra.mxu0 0.0
    %951 = vmatprep.subr.mxu0 0.0
    %952 = vmatpush2.msra.mxu0 0.0
    %953 = vmatprep.subr.mxu0 0.0
    %954 = vmatpush2.msra.mxu0 0.0
    %955 = vmatprep.subr.mxu0 0.0
    %956 = vmatpush2.msra.mxu0 0.0
    %957 = vmatprep.subr.mxu0 0.0
    %958 = vmatpush2.msra.mxu0 0.0
    %959 = vmatprep.subr.mxu0 0.0
    %960 = vmatpush2.msra.mxu0 0.0
    %961 = vmatprep.subr.mxu0 0.0
    %962 = vmatpush2.msra.mxu0 0.0
    %963 = vmatprep.subr.mxu0 0.0
    %964 = vmatpush2.msra.mxu0 0.0
    %965 = vmatprep.subr.mxu0 0.0
    %966 = vmatpush2.msra.mxu0 0.0
    %967 = vmatprep.subr.mxu0 0.0
    %968 = vmatpush2.msra.mxu0 0.0
    %969 = vmatprep.subr.mxu0 0.0
    %970 = vmatpush2.msra.mxu0 0.0
    %971 = vmatprep.mubr.f32.mxu0 0.0
    %v972 = vand.u32 %v80, 4294901760
    %973 = vmatmul.mubr.f32.gmra.mxu0 %v972
    %v974 = vpop.f32.mrf.mxu0
    %v975 = vadd.f32 %v778, %v974
    %v976 = vpop.f32.mrf.mxu0
    %977 = vmatprep.mubr.f32.mxu0 0.0
    %v978 = vand.u32 %v83, 4294901760
    %979 = vmatmul.mubr.f32.gmra.mxu0 %v978
    %v980 = vpop.f32.mrf.mxu0
    %v981 = vadd.f32 %v786, %v980
    %v982 = vpop.f32.mrf.mxu0
    %983 = vmatprep.mubr.f32.mxu0 0.0
    %v984 = vand.u32 %v86, 4294901760
    %985 = vmatmul.mubr.f32.gmra.mxu0 %v984
    %v986 = vpop.f32.mrf.mxu0
    %v987 = vadd.f32 %v794, %v986
    %v988 = vpop.f32.mrf.mxu0
    %989 = vmatprep.mubr.f32.mxu0 0.0
    %v990 = vand.u32 %v89, 4294901760
    %991 = vmatmul.mubr.f32.gmra.mxu0 %v990
    %v992 = vpop.f32.mrf.mxu0
    %v993 = vadd.f32 %v802, %v992
    %v994 = vpop.f32.mrf.mxu0
    %995 = vmatprep.mubr.f32.mxu0 0.0
    %v996 = vand.u32 %v92, 4294901760
    %997 = vmatmul.mubr.f32.gmra.mxu0 %v996
    %v998 = vpop.f32.mrf.mxu0
    %v999 = vadd.f32 %v810, %v998
    %v1000 = vpop.f32.mrf.mxu0
    %1001 = vmatprep.mubr.f32.mxu0 0.0
    %v1002 = vand.u32 %v95, 4294901760
    %1003 = vmatmul.mubr.f32.gmra.mxu0 %v1002
    %v1004 = vpop.f32.mrf.mxu0
    %v1005 = vadd.f32 %v818, %v1004
    %v1006 = vpop.f32.mrf.mxu0
    %1007 = vmatprep.mubr.f32.mxu0 0.0
    %v1008 = vand.u32 %v98, 4294901760
    %1009 = vmatmul.mubr.f32.gmra.mxu0 %v1008
    %v1010 = vpop.f32.mrf.mxu0
    %v1011 = vadd.f32 %v826, %v1010
    %v1012 = vpop.f32.mrf.mxu0
    %1013 = vmatprep.mubr.f32.mxu0 0.0
    %v1014 = vand.u32 %v101, 4294901760
    %1015 = vmatmul.mubr.f32.gmra.mxu0 %v1014
    %v1016 = vpop.f32.mrf.mxu0
    %v1017 = vadd.f32 %v834, %v1016
    %v1018 = vpop.f32.mrf.mxu0
    %1019 = vmatprep.mubr.f32.mxu0 0.0
    %v1020 = vand.u32 %v104, 4294901760
    %1021 = vmatmul.mubr.f32.gmra.mxu0 %v1020
    %v1022 = vpop.f32.mrf.mxu0
    %v1023 = vadd.f32 %v842, %v1022
    %v1024 = vpop.f32.mrf.mxu0
    %1025 = vmatprep.mubr.f32.mxu0 0.0
    %v1026 = vand.u32 %v107, 4294901760
    %1027 = vmatmul.mubr.f32.gmra.mxu0 %v1026
    %v1028 = vpop.f32.mrf.mxu0
    %v1029 = vadd.f32 %v850, %v1028
    %v1030 = vpop.f32.mrf.mxu0
    %1031 = vmatprep.mubr.f32.mxu0 0.0
    %v1032 = vand.u32 %v110, 4294901760
    %1033 = vmatmul.mubr.f32.gmra.mxu0 %v1032
    %v1034 = vpop.f32.mrf.mxu0
    %v1035 = vadd.f32 %v858, %v1034
    %v1036 = vpop.f32.mrf.mxu0
    %1037 = vmatprep.mubr.f32.mxu0 0.0
    %v1038 = vand.u32 %v113, 4294901760
    %1039 = vmatmul.mubr.f32.gmra.mxu0 %v1038
    %v1040 = vpop.f32.mrf.mxu0
    %v1041 = vadd.f32 %v866, %v1040
    %v1042 = vpop.f32.mrf.mxu0
    %1043 = vmatprep.mubr.f32.mxu0 0.0
    %v1044 = vand.u32 %v116, 4294901760
    %1045 = vmatmul.mubr.f32.gmra.mxu0 %v1044
    %v1046 = vpop.f32.mrf.mxu0
    %v1047 = vadd.f32 %v874, %v1046
    %v1048 = vpop.f32.mrf.mxu0
    %1049 = vmatprep.mubr.f32.mxu0 0.0
    %v1050 = vand.u32 %v119, 4294901760
    %1051 = vmatmul.mubr.f32.gmra.mxu0 %v1050
    %v1052 = vpop.f32.mrf.mxu0
    %v1053 = vadd.f32 %v882, %v1052
    %v1054 = vpop.f32.mrf.mxu0
    %1055 = vmatprep.mubr.f32.mxu0 0.0
    %v1056 = vand.u32 %v122, 4294901760
    %1057 = vmatmul.mubr.f32.gmra.mxu0 %v1056
    %v1058 = vpop.f32.mrf.mxu0
    %v1059 = vadd.f32 %v890, %v1058
    %v1060 = vpop.f32.mrf.mxu0
    %1061 = vmatprep.mubr.f32.mxu0 0.0
    %v1062 = vand.u32 %v125, 4294901760
    %1063 = vmatmul.mubr.f32.gmra.mxu0 %v1062
    %v1064 = vpop.f32.mrf.mxu0
    %v1065 = vadd.f32 %v898, %v1064
    %v1066 = vpop.f32.mrf.mxu0
    %1067 = vdwg.mxu0
    %1068 = vmatprep.subr.mxu0 0.0
    %1069 = vmatpush1.msra.mxu0 0.0
    %1070 = vmatprep.subr.mxu0 0.0
    %1071 = vmatpush1.msra.mxu0 0.0
    %1072 = vmatprep.subr.mxu0 0.0
    %1073 = vmatpush1.msra.mxu0 0.0
    %1074 = vmatprep.subr.mxu0 0.0
    %1075 = vmatpush1.msra.mxu0 0.0
    %1076 = vmatprep.subr.mxu0 0.0
    %1077 = vmatpush1.msra.mxu0 0.0
    %1078 = vmatprep.subr.mxu0 0.0
    %1079 = vmatpush1.msra.mxu0 0.0
    %1080 = vmatprep.subr.mxu0 0.0
    %1081 = vmatpush1.msra.mxu0 0.0
    %1082 = vmatprep.subr.mxu0 0.0
    %1083 = vmatpush1.msra.mxu0 0.0
    %1084 = vmatprep.subr.mxu0 0.0
    %1085 = vmatpush1.msra.mxu0 0.0
    %1086 = vmatprep.subr.mxu0 0.0
    %1087 = vmatpush1.msra.mxu0 0.0
    %1088 = vmatprep.subr.mxu0 0.0
    %1089 = vmatpush1.msra.mxu0 0.0
    %1090 = vmatprep.subr.mxu0 0.0
    %1091 = vmatpush1.msra.mxu0 0.0
    %1092 = vmatprep.subr.mxu0 0.0
    %1093 = vmatpush1.msra.mxu0 0.0
    %1094 = vmatprep.subr.mxu0 0.0
    %1095 = vmatpush1.msra.mxu0 0.0
    %1096 = vmatprep.subr.mxu0 0.0
    %v1097 = vand.u32 %v59, 4294901760
    %1098 = vmatpush1.msra.mxu0 %v1097
    %1099 = vmatprep.subr.mxu0 0.0
    %v1100 = vand.u32 %v58, 4294901760
    %1101 = vmatpush1.msra.mxu0 %v1100
    %1102 = vmatprep.subr.mxu0 0.0
    %1103 = vmatpush2.msra.mxu0 0.0
    %1104 = vmatprep.subr.mxu0 0.0
    %1105 = vmatpush2.msra.mxu0 0.0
    %1106 = vmatprep.subr.mxu0 0.0
    %1107 = vmatpush2.msra.mxu0 0.0
    %1108 = vmatprep.subr.mxu0 0.0
    %1109 = vmatpush2.msra.mxu0 0.0
    %1110 = vmatprep.subr.mxu0 0.0
    %1111 = vmatpush2.msra.mxu0 0.0
    %1112 = vmatprep.subr.mxu0 0.0
    %1113 = vmatpush2.msra.mxu0 0.0
    %1114 = vmatprep.subr.mxu0 0.0
    %1115 = vmatpush2.msra.mxu0 0.0
    %1116 = vmatprep.subr.mxu0 0.0
    %1117 = vmatpush2.msra.mxu0 0.0
    %1118 = vmatprep.subr.mxu0 0.0
    %1119 = vmatpush2.msra.mxu0 0.0
    %1120 = vmatprep.subr.mxu0 0.0
    %1121 = vmatpush2.msra.mxu0 0.0
    %1122 = vmatprep.subr.mxu0 0.0
    %1123 = vmatpush2.msra.mxu0 0.0
    %1124 = vmatprep.subr.mxu0 0.0
    %1125 = vmatpush2.msra.mxu0 0.0
    %1126 = vmatprep.subr.mxu0 0.0
    %1127 = vmatpush2.msra.mxu0 0.0
    %1128 = vmatprep.subr.mxu0 0.0
    %1129 = vmatpush2.msra.mxu0 0.0
    %1130 = vmatprep.subr.mxu0 0.0
    %1131 = vmatpush2.msra.mxu0 0.0
    %1132 = vmatprep.subr.mxu0 0.0
    %1133 = vmatpush2.msra.mxu0 0.0
    %1134 = vmatprep.mubr.f32.mxu0 0.0
    %v1135 = vand.u32 %v80, 4294901760
    %1136 = vmatmul.mubr.f32.gmra.mxu0 %v1135
    %v1137 = vpop.f32.mrf.mxu0
    %v1138 = vadd.f32 %v975, %v1137
    %v1139 = vpop.f32.mrf.mxu0
    %1140 = vmatprep.mubr.f32.mxu0 0.0
    %v1141 = vand.u32 %v83, 4294901760
    %1142 = vmatmul.mubr.f32.gmra.mxu0 %v1141
    %v1143 = vpop.f32.mrf.mxu0
    %v1144 = vadd.f32 %v981, %v1143
    %v1145 = vpop.f32.mrf.mxu0
    %1146 = vmatprep.mubr.f32.mxu0 0.0
    %v1147 = vand.u32 %v86, 4294901760
    %1148 = vmatmul.mubr.f32.gmra.mxu0 %v1147
    %v1149 = vpop.f32.mrf.mxu0
    %v1150 = vadd.f32 %v987, %v1149
    %v1151 = vpop.f32.mrf.mxu0
    %1152 = vmatprep.mubr.f32.mxu0 0.0
    %v1153 = vand.u32 %v89, 4294901760
    %1154 = vmatmul.mubr.f32.gmra.mxu0 %v1153
    %v1155 = vpop.f32.mrf.mxu0
    %v1156 = vadd.f32 %v993, %v1155
    %v1157 = vpop.f32.mrf.mxu0
    %1158 = vmatprep.mubr.f32.mxu0 0.0
    %v1159 = vand.u32 %v92, 4294901760
    %1160 = vmatmul.mubr.f32.gmra.mxu0 %v1159
    %v1161 = vpop.f32.mrf.mxu0
    %v1162 = vadd.f32 %v999, %v1161
    %v1163 = vpop.f32.mrf.mxu0
    %1164 = vmatprep.mubr.f32.mxu0 0.0
    %v1165 = vand.u32 %v95, 4294901760
    %1166 = vmatmul.mubr.f32.gmra.mxu0 %v1165
    %v1167 = vpop.f32.mrf.mxu0
    %v1168 = vadd.f32 %v1005, %v1167
    %v1169 = vpop.f32.mrf.mxu0
    %1170 = vmatprep.mubr.f32.mxu0 0.0
    %v1171 = vand.u32 %v98, 4294901760
    %1172 = vmatmul.mubr.f32.gmra.mxu0 %v1171
    %v1173 = vpop.f32.mrf.mxu0
    %v1174 = vadd.f32 %v1011, %v1173
    %v1175 = vpop.f32.mrf.mxu0
    %1176 = vmatprep.mubr.f32.mxu0 0.0
    %v1177 = vand.u32 %v101, 4294901760
    %1178 = vmatmul.mubr.f32.gmra.mxu0 %v1177
    %v1179 = vpop.f32.mrf.mxu0
    %v1180 = vadd.f32 %v1017, %v1179
    %v1181 = vpop.f32.mrf.mxu0
    %1182 = vmatprep.mubr.f32.mxu0 0.0
    %v1183 = vand.u32 %v104, 4294901760
    %1184 = vmatmul.mubr.f32.gmra.mxu0 %v1183
    %v1185 = vpop.f32.mrf.mxu0
    %v1186 = vadd.f32 %v1023, %v1185
    %v1187 = vpop.f32.mrf.mxu0
    %1188 = vmatprep.mubr.f32.mxu0 0.0
    %v1189 = vand.u32 %v107, 4294901760
    %1190 = vmatmul.mubr.f32.gmra.mxu0 %v1189
    %v1191 = vpop.f32.mrf.mxu0
    %v1192 = vadd.f32 %v1029, %v1191
    %v1193 = vpop.f32.mrf.mxu0
    %1194 = vmatprep.mubr.f32.mxu0 0.0
    %v1195 = vand.u32 %v110, 4294901760
    %1196 = vmatmul.mubr.f32.gmra.mxu0 %v1195
    %v1197 = vpop.f32.mrf.mxu0
    %v1198 = vadd.f32 %v1035, %v1197
    %v1199 = vpop.f32.mrf.mxu0
    %1200 = vmatprep.mubr.f32.mxu0 0.0
    %v1201 = vand.u32 %v113, 4294901760
    %1202 = vmatmul.mubr.f32.gmra.mxu0 %v1201
    %v1203 = vpop.f32.mrf.mxu0
    %v1204 = vadd.f32 %v1041, %v1203
    %v1205 = vpop.f32.mrf.mxu0
    %1206 = vmatprep.mubr.f32.mxu0 0.0
    %v1207 = vand.u32 %v116, 4294901760
    %1208 = vmatmul.mubr.f32.gmra.mxu0 %v1207
    %v1209 = vpop.f32.mrf.mxu0
    %v1210 = vadd.f32 %v1047, %v1209
    %v1211 = vpop.f32.mrf.mxu0
    %1212 = vmatprep.mubr.f32.mxu0 0.0
    %v1213 = vand.u32 %v119, 4294901760
    %1214 = vmatmul.mubr.f32.gmra.mxu0 %v1213
    %v1215 = vpop.f32.mrf.mxu0
    %v1216 = vadd.f32 %v1053, %v1215
    %v1217 = vpop.f32.mrf.mxu0
    %1218 = vmatprep.mubr.f32.mxu0 0.0
    %v1219 = vand.u32 %v122, 4294901760
    %1220 = vmatmul.mubr.f32.gmra.mxu0 %v1219
    %v1221 = vpop.f32.mrf.mxu0
    %v1222 = vadd.f32 %v1059, %v1221
    %v1223 = vpop.f32.mrf.mxu0
    %1224 = vmatprep.mubr.f32.mxu0 0.0
    %v1225 = vand.u32 %v125, 4294901760
    %1226 = vmatmul.mubr.f32.gmra.mxu0 %v1225
    %v1227 = vpop.f32.mrf.mxu0
    %v1228 = vadd.f32 %v1065, %v1227
    %v1229 = vpop.f32.mrf.mxu0
    %1230 = vdwg.mxu0
    %1231 = vst.msk [vmem:[#allocation2] sm:$0xff] %vm78, %v1138
    %1232 = vst.msk [vmem:[#allocation2 + $0x8] sm:$0xff] %vm78, %v1144
    %1235 = vrot.lane.b32.xlu0 %v1150, 16
    %v1236 = vpop.permute.xlu0 %1235
    %1237 = vrot.lane.b32.xlu0 %v1156, 16
    %v1238 = vpop.permute.xlu0 %1237
    %vm1241 = vcmask 261248
    %1242 = vst.msk [vmem:[#allocation2] sm:$0xff] %vm1241, %v1236
    %1243 = vst.msk [vmem:[#allocation2 + $0x8] sm:$0xff] %vm1241, %v1238
    %1246 = vrot.lane.b32.xlu0 %v1162, 32
    %v1247 = vpop.permute.xlu0 %1246
    %1248 = vrot.lane.b32.xlu0 %v1168, 32
    %v1249 = vpop.permute.xlu0 %1248
    %vm1252 = vcmask 392448
    %1253 = vst.msk [vmem:[#allocation2] sm:$0xff] %vm1252, %v1247
    %1254 = vst.msk [vmem:[#allocation2 + $0x8] sm:$0xff] %vm1252, %v1249
    %1257 = vrot.lane.b32.xlu0 %v1174, 48
    %v1258 = vpop.permute.xlu0 %1257
    %1259 = vrot.lane.b32.xlu0 %v1180, 48
    %v1260 = vpop.permute.xlu0 %1259
    %vm1263 = vcmask 523648
    %1264 = vst.msk [vmem:[#allocation2] sm:$0xff] %vm1263, %v1258
    %1265 = vst.msk [vmem:[#allocation2 + $0x8] sm:$0xff] %vm1263, %v1260
    %1268 = vrot.lane.b32.xlu0 %v1186, 64
    %v1269 = vpop.permute.xlu0 %1268
    %1270 = vrot.lane.b32.xlu0 %v1192, 64
    %v1271 = vpop.permute.xlu0 %1270
    %vm1274 = vcmask 654848
    %1275 = vst.msk [vmem:[#allocation2] sm:$0xff] %vm1274, %v1269
    %1276 = vst.msk [vmem:[#allocation2 + $0x8] sm:$0xff] %vm1274, %v1271
    %1279 = vrot.lane.b32.xlu0 %v1198, 80
    %v1280 = vpop.permute.xlu0 %1279
    %1281 = vrot.lane.b32.xlu0 %v1204, 80
    %v1282 = vpop.permute.xlu0 %1281
    %vm1285 = vcmask 786048
    %1286 = vst.msk [vmem:[#allocation2] sm:$0xff] %vm1285, %v1280
    %1287 = vst.msk [vmem:[#allocation2 + $0x8] sm:$0xff] %vm1285, %v1282
    %1290 = vrot.lane.b32.xlu0 %v1210, 96
    %v1291 = vpop.permute.xlu0 %1290
    %1292 = vrot.lane.b32.xlu0 %v1216, 96
    %v1293 = vpop.permute.xlu0 %1292
    %vm1296 = vcmask 917248
    %1297 = vst.msk [vmem:[#allocation2] sm:$0xff] %vm1296, %v1291
    %1298 = vst.msk [vmem:[#allocation2 + $0x8] sm:$0xff] %vm1296, %v1293
    %1301 = vrot.lane.b32.xlu0 %v1222, 112
    %v1302 = vpop.permute.xlu0 %1301
    %1303 = vrot.lane.b32.xlu0 %v1228, 112
    %v1304 = vpop.permute.xlu0 %1303
    %vm1307 = vcmask 1048448
    %1308 = vst.msk [vmem:[#allocation2] sm:$0xff] %vm1307, %v1302
    %1309 = vst.msk [vmem:[#allocation2 + $0x8] sm:$0xff] %vm1307, %v1304
    %v1310 = vld [vmem:[#allocation2] sm:$0xff]
    %v1311 = vld [vmem:[#allocation2 + $0x8] sm:$0xff]
    %v1313 = vsel %vm78, %v56, 0
    %v1316 = vsel %vm78, %v57, 0
    %1318 = vmatprep.subr.mxu0 0.0
    %1319 = vmatpush1.msra.mxu0 0.0
    %1320 = vmatprep.subr.mxu0 0.0
    %1321 = vmatpush1.msra.mxu0 0.0
    %1322 = vmatprep.subr.mxu0 0.0
    %1323 = vmatpush1.msra.mxu0 0.0
    %1324 = vmatprep.subr.mxu0 0.0
    %1325 = vmatpush1.msra.mxu0 0.0
    %1326 = vmatprep.subr.mxu0 0.0
    %1327 = vmatpush1.msra.mxu0 0.0
    %1328 = vmatprep.subr.mxu0 0.0
    %1329 = vmatpush1.msra.mxu0 0.0
    %1330 = vmatprep.subr.mxu0 0.0
    %1331 = vmatpush1.msra.mxu0 0.0
    %1332 = vmatprep.subr.mxu0 0.0
    %1333 = vmatpush1.msra.mxu0 0.0
    %1334 = vmatprep.subr.mxu0 0.0
    %1335 = vmatpush1.msra.mxu0 0.0
    %1336 = vmatprep.subr.mxu0 0.0
    %1337 = vmatpush1.msra.mxu0 0.0
    %1338 = vmatprep.subr.mxu0 0.0
    %1339 = vmatpush1.msra.mxu0 0.0
    %1340 = vmatprep.subr.mxu0 0.0
    %1341 = vmatpush1.msra.mxu0 0.0
    %1342 = vmatprep.subr.mxu0 0.0
    %1343 = vmatpush1.msra.mxu0 0.0
    %1344 = vmatprep.subr.mxu0 0.0
    %1345 = vmatpush1.msra.mxu0 0.0
    %1346 = vmatprep.subr.mxu0 0.0
    %v1347 = vand.u32 %v1311, 4294901760
    %1348 = vmatpush1.msra.mxu0 %v1347
    %1349 = vmatprep.subr.mxu0 0.0
    %v1350 = vand.u32 %v1310, 4294901760
    %1351 = vmatpush1.msra.mxu0 %v1350
    %1352 = vmatprep.subr.mxu0 0.0
    %1353 = vmatpush2.msra.mxu0 0.0
    %1354 = vmatprep.subr.mxu0 0.0
    %1355 = vmatpush2.msra.mxu0 0.0
    %1356 = vmatprep.subr.mxu0 0.0
    %1357 = vmatpush2.msra.mxu0 0.0
    %1358 = vmatprep.subr.mxu0 0.0
    %1359 = vmatpush2.msra.mxu0 0.0
    %1360 = vmatprep.subr.mxu0 0.0
    %1361 = vmatpush2.msra.mxu0 0.0
    %1362 = vmatprep.subr.mxu0 0.0
    %1363 = vmatpush2.msra.mxu0 0.0
    %1364 = vmatprep.subr.mxu0 0.0
    %1365 = vmatpush2.msra.mxu0 0.0
    %1366 = vmatprep.subr.mxu0 0.0
    %1367 = vmatpush2.msra.mxu0 0.0
    %1368 = vmatprep.subr.mxu0 0.0
    %1369 = vmatpush2.msra.mxu0 0.0
    %1370 = vmatprep.subr.mxu0 0.0
    %1371 = vmatpush2.msra.mxu0 0.0
    %1372 = vmatprep.subr.mxu0 0.0
    %1373 = vmatpush2.msra.mxu0 0.0
    %1374 = vmatprep.subr.mxu0 0.0
    %1375 = vmatpush2.msra.mxu0 0.0
    %1376 = vmatprep.subr.mxu0 0.0
    %1377 = vmatpush2.msra.mxu0 0.0
    %1378 = vmatprep.subr.mxu0 0.0
    %1379 = vmatpush2.msra.mxu0 0.0
    %1380 = vmatprep.subr.mxu0 0.0
    %1381 = vmatpush2.msra.mxu0 0.0
    %1382 = vmatprep.subr.mxu0 0.0
    %1383 = vmatpush2.msra.mxu0 0.0
    %1384 = vmatprep.mubr.f32.mxu0 0.0
    %v1385 = vand.u32 %v1313, 4294901760
    %v1386 = vsub.f32 %v1313, %v1385
    %v1387 = vand.u32 %v1386, 4294901760
    %v1388 = vsub.f32 %v1386, %v1387
    %v1389 = vand.u32 %v1388, 4294901760
    %1390 = vmatmul.mubr.f32.gmra.mxu0 %v1389
    %v1391 = vpop.f32.mrf.mxu0
    %v1392 = vadd.f32 0.0, %v1391
    %v1393 = vpop.f32.mrf.mxu0
    %1394 = vmatprep.mubr.f32.mxu0 0.0
    %v1395 = vand.u32 %v1316, 4294901760
    %v1396 = vsub.f32 %v1316, %v1395
    %v1397 = vand.u32 %v1396, 4294901760
    %v1398 = vsub.f32 %v1396, %v1397
    %v1399 = vand.u32 %v1398, 4294901760
    %1400 = vmatmul.mubr.f32.gmra.mxu0 %v1399
    %v1401 = vpop.f32.mrf.mxu0
    %v1402 = vadd.f32 0.0, %v1401
    %v1403 = vpop.f32.mrf.mxu0
    %1404 = vdwg.mxu0
    %1405 = vmatprep.subr.mxu0 0.0
    %1406 = vmatpush1.msra.mxu0 0.0
    %1407 = vmatprep.subr.mxu0 0.0
    %1408 = vmatpush1.msra.mxu0 0.0
    %1409 = vmatprep.subr.mxu0 0.0
    %1410 = vmatpush1.msra.mxu0 0.0
    %1411 = vmatprep.subr.mxu0 0.0
    %1412 = vmatpush1.msra.mxu0 0.0
    %1413 = vmatprep.subr.mxu0 0.0
    %1414 = vmatpush1.msra.mxu0 0.0
    %1415 = vmatprep.subr.mxu0 0.0
    %1416 = vmatpush1.msra.mxu0 0.0
    %1417 = vmatprep.subr.mxu0 0.0
    %1418 = vmatpush1.msra.mxu0 0.0
    %1419 = vmatprep.subr.mxu0 0.0
    %1420 = vmatpush1.msra.mxu0 0.0
    %1421 = vmatprep.subr.mxu0 0.0
    %1422 = vmatpush1.msra.mxu0 0.0
    %1423 = vmatprep.subr.mxu0 0.0
    %1424 = vmatpush1.msra.mxu0 0.0
    %1425 = vmatprep.subr.mxu0 0.0
    %1426 = vmatpush1.msra.mxu0 0.0
    %1427 = vmatprep.subr.mxu0 0.0
    %1428 = vmatpush1.msra.mxu0 0.0
    %1429 = vmatprep.subr.mxu0 0.0
    %1430 = vmatpush1.msra.mxu0 0.0
    %1431 = vmatprep.subr.mxu0 0.0
    %1432 = vmatpush1.msra.mxu0 0.0
    %1433 = vmatprep.subr.mxu0 0.0
    %v1434 = vand.u32 %v1311, 4294901760
    %v1435 = vsub.f32 %v1311, %v1434
    %v1436 = vand.u32 %v1435, 4294901760
    %v1437 = vsub.f32 %v1435, %v1436
    %v1438 = vand.u32 %v1437, 4294901760
    %1439 = vmatpush1.msra.mxu0 %v1438
    %1440 = vmatprep.subr.mxu0 0.0
    %v1441 = vand.u32 %v1310, 4294901760
    %v1442 = vsub.f32 %v1310, %v1441
    %v1443 = vand.u32 %v1442, 4294901760
    %v1444 = vsub.f32 %v1442, %v1443
    %v1445 = vand.u32 %v1444, 4294901760
    %1446 = vmatpush1.msra.mxu0 %v1445
    %1447 = vmatprep.subr.mxu0 0.0
    %1448 = vmatpush2.msra.mxu0 0.0
    %1449 = vmatprep.subr.mxu0 0.0
    %1450 = vmatpush2.msra.mxu0 0.0
    %1451 = vmatprep.subr.mxu0 0.0
    %1452 = vmatpush2.msra.mxu0 0.0
    %1453 = vmatprep.subr.mxu0 0.0
    %1454 = vmatpush2.msra.mxu0 0.0
    %1455 = vmatprep.subr.mxu0 0.0
    %1456 = vmatpush2.msra.mxu0 0.0
    %1457 = vmatprep.subr.mxu0 0.0
    %1458 = vmatpush2.msra.mxu0 0.0
    %1459 = vmatprep.subr.mxu0 0.0
    %1460 = vmatpush2.msra.mxu0 0.0
    %1461 = vmatprep.subr.mxu0 0.0
    %1462 = vmatpush2.msra.mxu0 0.0
    %1463 = vmatprep.subr.mxu0 0.0
    %1464 = vmatpush2.msra.mxu0 0.0
    %1465 = vmatprep.subr.mxu0 0.0
    %1466 = vmatpush2.msra.mxu0 0.0
    %1467 = vmatprep.subr.mxu0 0.0
    %1468 = vmatpush2.msra.mxu0 0.0
    %1469 = vmatprep.subr.mxu0 0.0
    %1470 = vmatpush2.msra.mxu0 0.0
    %1471 = vmatprep.subr.mxu0 0.0
    %1472 = vmatpush2.msra.mxu0 0.0
    %1473 = vmatprep.subr.mxu0 0.0
    %1474 = vmatpush2.msra.mxu0 0.0
    %1475 = vmatprep.subr.mxu0 0.0
    %1476 = vmatpush2.msra.mxu0 0.0
    %1477 = vmatprep.subr.mxu0 0.0
    %1478 = vmatpush2.msra.mxu0 0.0
    %1479 = vmatprep.mubr.f32.mxu0 0.0
    %v1480 = vand.u32 %v1313, 4294901760
    %1481 = vmatmul.mubr.f32.gmra.mxu0 %v1480
    %v1482 = vpop.f32.mrf.mxu0
    %v1483 = vadd.f32 %v1392, %v1482
    %v1484 = vpop.f32.mrf.mxu0
    %1485 = vmatprep.mubr.f32.mxu0 0.0
    %v1486 = vand.u32 %v1316, 4294901760
    %1487 = vmatmul.mubr.f32.gmra.mxu0 %v1486
    %v1488 = vpop.f32.mrf.mxu0
    %v1489 = vadd.f32 %v1402, %v1488
    %v1490 = vpop.f32.mrf.mxu0
    %1491 = vdwg.mxu0
    %1492 = vmatprep.subr.mxu0 0.0
    %1493 = vmatpush1.msra.mxu0 0.0
    %1494 = vmatprep.subr.mxu0 0.0
    %1495 = vmatpush1.msra.mxu0 0.0
    %1496 = vmatprep.subr.mxu0 0.0
    %1497 = vmatpush1.msra.mxu0 0.0
    %1498 = vmatprep.subr.mxu0 0.0
    %1499 = vmatpush1.msra.mxu0 0.0
    %1500 = vmatprep.subr.mxu0 0.0
    %1501 = vmatpush1.msra.mxu0 0.0
    %1502 = vmatprep.subr.mxu0 0.0
    %1503 = vmatpush1.msra.mxu0 0.0
    %1504 = vmatprep.subr.mxu0 0.0
    %1505 = vmatpush1.msra.mxu0 0.0
    %1506 = vmatprep.subr.mxu0 0.0
    %1507 = vmatpush1.msra.mxu0 0.0
    %1508 = vmatprep.subr.mxu0 0.0
    %1509 = vmatpush1.msra.mxu0 0.0
    %1510 = vmatprep.subr.mxu0 0.0
    %1511 = vmatpush1.msra.mxu0 0.0
    %1512 = vmatprep.subr.mxu0 0.0
    %1513 = vmatpush1.msra.mxu0 0.0
    %1514 = vmatprep.subr.mxu0 0.0
    %1515 = vmatpush1.msra.mxu0 0.0
    %1516 = vmatprep.subr.mxu0 0.0
    %1517 = vmatpush1.msra.mxu0 0.0
    %1518 = vmatprep.subr.mxu0 0.0
    %1519 = vmatpush1.msra.mxu0 0.0
    %1520 = vmatprep.subr.mxu0 0.0
    %v1521 = vand.u32 %v1311, 4294901760
    %v1522 = vsub.f32 %v1311, %v1521
    %1523 = vmatpush1.msra.mxu0 %v1522
    %1524 = vmatprep.subr.mxu0 0.0
    %v1525 = vand.u32 %v1310, 4294901760
    %v1526 = vsub.f32 %v1310, %v1525
    %1527 = vmatpush1.msra.mxu0 %v1526
    %1528 = vmatprep.subr.mxu0 0.0
    %1529 = vmatpush2.msra.mxu0 0.0
    %1530 = vmatprep.subr.mxu0 0.0
    %1531 = vmatpush2.msra.mxu0 0.0
    %1532 = vmatprep.subr.mxu0 0.0
    %1533 = vmatpush2.msra.mxu0 0.0
    %1534 = vmatprep.subr.mxu0 0.0
    %1535 = vmatpush2.msra.mxu0 0.0
    %1536 = vmatprep.subr.mxu0 0.0
    %1537 = vmatpush2.msra.mxu0 0.0
    %1538 = vmatprep.subr.mxu0 0.0
    %1539 = vmatpush2.msra.mxu0 0.0
    %1540 = vmatprep.subr.mxu0 0.0
    %1541 = vmatpush2.msra.mxu0 0.0
    %1542 = vmatprep.subr.mxu0 0.0
    %1543 = vmatpush2.msra.mxu0 0.0
    %1544 = vmatprep.subr.mxu0 0.0
    %1545 = vmatpush2.msra.mxu0 0.0
    %1546 = vmatprep.subr.mxu0 0.0
    %1547 = vmatpush2.msra.mxu0 0.0
    %1548 = vmatprep.subr.mxu0 0.0
    %1549 = vmatpush2.msra.mxu0 0.0
    %1550 = vmatprep.subr.mxu0 0.0
    %1551 = vmatpush2.msra.mxu0 0.0
    %1552 = vmatprep.subr.mxu0 0.0
    %1553 = vmatpush2.msra.mxu0 0.0
    %1554 = vmatprep.subr.mxu0 0.0
    %1555 = vmatpush2.msra.mxu0 0.0
    %1556 = vmatprep.subr.mxu0 0.0
    %1557 = vmatpush2.msra.mxu0 0.0
    %1558 = vmatprep.subr.mxu0 0.0
    %1559 = vmatpush2.msra.mxu0 0.0
    %1560 = vmatprep.mubr.f32.mxu0 0.0
    %v1561 = vand.u32 %v1313, 4294901760
    %v1562 = vsub.f32 %v1313, %v1561
    %1563 = vmatmul.mubr.f32.gmra.mxu0 %v1562
    %v1564 = vpop.f32.mrf.mxu0
    %v1565 = vadd.f32 %v1483, %v1564
    %v1566 = vpop.f32.mrf.mxu0
    %1567 = vmatprep.mubr.f32.mxu0 0.0
    %v1568 = vand.u32 %v1316, 4294901760
    %v1569 = vsub.f32 %v1316, %v1568
    %1570 = vmatmul.mubr.f32.gmra.mxu0 %v1569
    %v1571 = vpop.f32.mrf.mxu0
    %v1572 = vadd.f32 %v1489, %v1571
    %v1573 = vpop.f32.mrf.mxu0
    %1574 = vdwg.mxu0
    %1575 = vmatprep.subr.mxu0 0.0
    %1576 = vmatpush1.msra.mxu0 0.0
    %1577 = vmatprep.subr.mxu0 0.0
    %1578 = vmatpush1.msra.mxu0 0.0
    %1579 = vmatprep.subr.mxu0 0.0
    %1580 = vmatpush1.msra.mxu0 0.0
    %1581 = vmatprep.subr.mxu0 0.0
    %1582 = vmatpush1.msra.mxu0 0.0
    %1583 = vmatprep.subr.mxu0 0.0
    %1584 = vmatpush1.msra.mxu0 0.0
    %1585 = vmatprep.subr.mxu0 0.0
    %1586 = vmatpush1.msra.mxu0 0.0
    %1587 = vmatprep.subr.mxu0 0.0
    %1588 = vmatpush1.msra.mxu0 0.0
    %1589 = vmatprep.subr.mxu0 0.0
    %1590 = vmatpush1.msra.mxu0 0.0
    %1591 = vmatprep.subr.mxu0 0.0
    %1592 = vmatpush1.msra.mxu0 0.0
    %1593 = vmatprep.subr.mxu0 0.0
    %1594 = vmatpush1.msra.mxu0 0.0
    %1595 = vmatprep.subr.mxu0 0.0
    %1596 = vmatpush1.msra.mxu0 0.0
    %1597 = vmatprep.subr.mxu0 0.0
    %1598 = vmatpush1.msra.mxu0 0.0
    %1599 = vmatprep.subr.mxu0 0.0
    %1600 = vmatpush1.msra.mxu0 0.0
    %1601 = vmatprep.subr.mxu0 0.0
    %1602 = vmatpush1.msra.mxu0 0.0
    %1603 = vmatprep.subr.mxu0 0.0
    %v1604 = vand.u32 %v1311, 4294901760
    %1605 = vmatpush1.msra.mxu0 %v1604
    %1606 = vmatprep.subr.mxu0 0.0
    %v1607 = vand.u32 %v1310, 4294901760
    %1608 = vmatpush1.msra.mxu0 %v1607
    %1609 = vmatprep.subr.mxu0 0.0
    %1610 = vmatpush2.msra.mxu0 0.0
    %1611 = vmatprep.subr.mxu0 0.0
    %1612 = vmatpush2.msra.mxu0 0.0
    %1613 = vmatprep.subr.mxu0 0.0
    %1614 = vmatpush2.msra.mxu0 0.0
    %1615 = vmatprep.subr.mxu0 0.0
    %1616 = vmatpush2.msra.mxu0 0.0
    %1617 = vmatprep.subr.mxu0 0.0
    %1618 = vmatpush2.msra.mxu0 0.0
    %1619 = vmatprep.subr.mxu0 0.0
    %1620 = vmatpush2.msra.mxu0 0.0
    %1621 = vmatprep.subr.mxu0 0.0
    %1622 = vmatpush2.msra.mxu0 0.0
    %1623 = vmatprep.subr.mxu0 0.0
    %1624 = vmatpush2.msra.mxu0 0.0
    %1625 = vmatprep.subr.mxu0 0.0
    %1626 = vmatpush2.msra.mxu0 0.0
    %1627 = vmatprep.subr.mxu0 0.0
    %1628 = vmatpush2.msra.mxu0 0.0
    %1629 = vmatprep.subr.mxu0 0.0
    %1630 = vmatpush2.msra.mxu0 0.0
    %1631 = vmatprep.subr.mxu0 0.0
    %1632 = vmatpush2.msra.mxu0 0.0
    %1633 = vmatprep.subr.mxu0 0.0
    %1634 = vmatpush2.msra.mxu0 0.0
    %1635 = vmatprep.subr.mxu0 0.0
    %1636 = vmatpush2.msra.mxu0 0.0
    %1637 = vmatprep.subr.mxu0 0.0
    %1638 = vmatpush2.msra.mxu0 0.0
    %1639 = vmatprep.subr.mxu0 0.0
    %1640 = vmatpush2.msra.mxu0 0.0
    %1641 = vmatprep.mubr.f32.mxu0 0.0
    %v1642 = vand.u32 %v1313, 4294901760
    %v1643 = vsub.f32 %v1313, %v1642
    %v1644 = vand.u32 %v1643, 4294901760
    %1645 = vmatmul.mubr.f32.gmra.mxu0 %v1644
    %v1646 = vpop.f32.mrf.mxu0
    %v1647 = vadd.f32 %v1565, %v1646
    %v1648 = vpop.f32.mrf.mxu0
    %1649 = vmatprep.mubr.f32.mxu0 0.0
    %v1650 = vand.u32 %v1316, 4294901760
    %v1651 = vsub.f32 %v1316, %v1650
    %v1652 = vand.u32 %v1651, 4294901760
    %1653 = vmatmul.mubr.f32.gmra.mxu0 %v1652
    %v1654 = vpop.f32.mrf.mxu0
    %v1655 = vadd.f32 %v1572, %v1654
    %v1656 = vpop.f32.mrf.mxu0
    %1657 = vdwg.mxu0
    %1658 = vmatprep.subr.mxu0 0.0
    %1659 = vmatpush1.msra.mxu0 0.0
    %1660 = vmatprep.subr.mxu0 0.0
    %1661 = vmatpush1.msra.mxu0 0.0
    %1662 = vmatprep.subr.mxu0 0.0
    %1663 = vmatpush1.msra.mxu0 0.0
    %1664 = vmatprep.subr.mxu0 0.0
    %1665 = vmatpush1.msra.mxu0 0.0
    %1666 = vmatprep.subr.mxu0 0.0
    %1667 = vmatpush1.msra.mxu0 0.0
    %1668 = vmatprep.subr.mxu0 0.0
    %1669 = vmatpush1.msra.mxu0 0.0
    %1670 = vmatprep.subr.mxu0 0.0
    %1671 = vmatpush1.msra.mxu0 0.0
    %1672 = vmatprep.subr.mxu0 0.0
    %1673 = vmatpush1.msra.mxu0 0.0
    %1674 = vmatprep.subr.mxu0 0.0
    %1675 = vmatpush1.msra.mxu0 0.0
    %1676 = vmatprep.subr.mxu0 0.0
    %1677 = vmatpush1.msra.mxu0 0.0
    %1678 = vmatprep.subr.mxu0 0.0
    %1679 = vmatpush1.msra.mxu0 0.0
    %1680 = vmatprep.subr.mxu0 0.0
    %1681 = vmatpush1.msra.mxu0 0.0
    %1682 = vmatprep.subr.mxu0 0.0
    %1683 = vmatpush1.msra.mxu0 0.0
    %1684 = vmatprep.subr.mxu0 0.0
    %1685 = vmatpush1.msra.mxu0 0.0
    %1686 = vmatprep.subr.mxu0 0.0
    %v1687 = vand.u32 %v1311, 4294901760
    %v1688 = vsub.f32 %v1311, %v1687
    %v1689 = vand.u32 %v1688, 4294901760
    %1690 = vmatpush1.msra.mxu0 %v1689
    %1691 = vmatprep.subr.mxu0 0.0
    %v1692 = vand.u32 %v1310, 4294901760
    %v1693 = vsub.f32 %v1310, %v1692
    %v1694 = vand.u32 %v1693, 4294901760
    %1695 = vmatpush1.msra.mxu0 %v1694
    %1696 = vmatprep.subr.mxu0 0.0
    %1697 = vmatpush2.msra.mxu0 0.0
    %1698 = vmatprep.subr.mxu0 0.0
    %1699 = vmatpush2.msra.mxu0 0.0
    %1700 = vmatprep.subr.mxu0 0.0
    %1701 = vmatpush2.msra.mxu0 0.0
    %1702 = vmatprep.subr.mxu0 0.0
    %1703 = vmatpush2.msra.mxu0 0.0
    %1704 = vmatprep.subr.mxu0 0.0
    %1705 = vmatpush2.msra.mxu0 0.0
    %1706 = vmatprep.subr.mxu0 0.0
    %1707 = vmatpush2.msra.mxu0 0.0
    %1708 = vmatprep.subr.mxu0 0.0
    %1709 = vmatpush2.msra.mxu0 0.0
    %1710 = vmatprep.subr.mxu0 0.0
    %1711 = vmatpush2.msra.mxu0 0.0
    %1712 = vmatprep.subr.mxu0 0.0
    %1713 = vmatpush2.msra.mxu0 0.0
    %1714 = vmatprep.subr.mxu0 0.0
    %1715 = vmatpush2.msra.mxu0 0.0
    %1716 = vmatprep.subr.mxu0 0.0
    %1717 = vmatpush2.msra.mxu0 0.0
    %1718 = vmatprep.subr.mxu0 0.0
    %1719 = vmatpush2.msra.mxu0 0.0
    %1720 = vmatprep.subr.mxu0 0.0
    %1721 = vmatpush2.msra.mxu0 0.0
    %1722 = vmatprep.subr.mxu0 0.0
    %1723 = vmatpush2.msra.mxu0 0.0
    %1724 = vmatprep.subr.mxu0 0.0
    %1725 = vmatpush2.msra.mxu0 0.0
    %1726 = vmatprep.subr.mxu0 0.0
    %1727 = vmatpush2.msra.mxu0 0.0
    %1728 = vmatprep.mubr.f32.mxu0 0.0
    %v1729 = vand.u32 %v1313, 4294901760
    %1730 = vmatmul.mubr.f32.gmra.mxu0 %v1729
    %v1731 = vpop.f32.mrf.mxu0
    %v1732 = vadd.f32 %v1647, %v1731
    %v1733 = vpop.f32.mrf.mxu0
    %1734 = vmatprep.mubr.f32.mxu0 0.0
    %v1735 = vand.u32 %v1316, 4294901760
    %1736 = vmatmul.mubr.f32.gmra.mxu0 %v1735
    %v1737 = vpop.f32.mrf.mxu0
    %v1738 = vadd.f32 %v1655, %v1737
    %v1739 = vpop.f32.mrf.mxu0
    %1740 = vdwg.mxu0
    %1741 = vmatprep.subr.mxu0 0.0
    %1742 = vmatpush1.msra.mxu0 0.0
    %1743 = vmatprep.subr.mxu0 0.0
    %1744 = vmatpush1.msra.mxu0 0.0
    %1745 = vmatprep.subr.mxu0 0.0
    %1746 = vmatpush1.msra.mxu0 0.0
    %1747 = vmatprep.subr.mxu0 0.0
    %1748 = vmatpush1.msra.mxu0 0.0
    %1749 = vmatprep.subr.mxu0 0.0
    %1750 = vmatpush1.msra.mxu0 0.0
    %1751 = vmatprep.subr.mxu0 0.0
    %1752 = vmatpush1.msra.mxu0 0.0
    %1753 = vmatprep.subr.mxu0 0.0
    %1754 = vmatpush1.msra.mxu0 0.0
    %1755 = vmatprep.subr.mxu0 0.0
    %1756 = vmatpush1.msra.mxu0 0.0
    %1757 = vmatprep.subr.mxu0 0.0
    %1758 = vmatpush1.msra.mxu0 0.0
    %1759 = vmatprep.subr.mxu0 0.0
    %1760 = vmatpush1.msra.mxu0 0.0
    %1761 = vmatprep.subr.mxu0 0.0
    %1762 = vmatpush1.msra.mxu0 0.0
    %1763 = vmatprep.subr.mxu0 0.0
    %1764 = vmatpush1.msra.mxu0 0.0
    %1765 = vmatprep.subr.mxu0 0.0
    %1766 = vmatpush1.msra.mxu0 0.0
    %1767 = vmatprep.subr.mxu0 0.0
    %1768 = vmatpush1.msra.mxu0 0.0
    %1769 = vmatprep.subr.mxu0 0.0
    %v1770 = vand.u32 %v1311, 4294901760
    %1771 = vmatpush1.msra.mxu0 %v1770
    %1772 = vmatprep.subr.mxu0 0.0
    %v1773 = vand.u32 %v1310, 4294901760
    %1774 = vmatpush1.msra.mxu0 %v1773
    %1775 = vmatprep.subr.mxu0 0.0
    %1776 = vmatpush2.msra.mxu0 0.0
    %1777 = vmatprep.subr.mxu0 0.0
    %1778 = vmatpush2.msra.mxu0 0.0
    %1779 = vmatprep.subr.mxu0 0.0
    %1780 = vmatpush2.msra.mxu0 0.0
    %1781 = vmatprep.subr.mxu0 0.0
    %1782 = vmatpush2.msra.mxu0 0.0
    %1783 = vmatprep.subr.mxu0 0.0
    %1784 = vmatpush2.msra.mxu0 0.0
    %1785 = vmatprep.subr.mxu0 0.0
    %1786 = vmatpush2.msra.mxu0 0.0
    %1787 = vmatprep.subr.mxu0 0.0
    %1788 = vmatpush2.msra.mxu0 0.0
    %1789 = vmatprep.subr.mxu0 0.0
    %1790 = vmatpush2.msra.mxu0 0.0
    %1791 = vmatprep.subr.mxu0 0.0
    %1792 = vmatpush2.msra.mxu0 0.0
    %1793 = vmatprep.subr.mxu0 0.0
    %1794 = vmatpush2.msra.mxu0 0.0
    %1795 = vmatprep.subr.mxu0 0.0
    %1796 = vmatpush2.msra.mxu0 0.0
    %1797 = vmatprep.subr.mxu0 0.0
    %1798 = vmatpush2.msra.mxu0 0.0
    %1799 = vmatprep.subr.mxu0 0.0
    %1800 = vmatpush2.msra.mxu0 0.0
    %1801 = vmatprep.subr.mxu0 0.0
    %1802 = vmatpush2.msra.mxu0 0.0
    %1803 = vmatprep.subr.mxu0 0.0
    %1804 = vmatpush2.msra.mxu0 0.0
    %1805 = vmatprep.subr.mxu0 0.0
    %1806 = vmatpush2.msra.mxu0 0.0
    %1807 = vmatprep.mubr.f32.mxu0 0.0
    %v1808 = vand.u32 %v1313, 4294901760
    %1809 = vmatmul.mubr.f32.gmra.mxu0 %v1808
    %v1810 = vpop.f32.mrf.mxu0
    %v1811 = vadd.f32 %v1732, %v1810
    %v1812 = vpop.f32.mrf.mxu0
    %1813 = vmatprep.mubr.f32.mxu0 0.0
    %v1814 = vand.u32 %v1316, 4294901760
    %1815 = vmatmul.mubr.f32.gmra.mxu0 %v1814
    %v1816 = vpop.f32.mrf.mxu0
    %v1817 = vadd.f32 %v1738, %v1816
    %v1818 = vpop.f32.mrf.mxu0
    %1819 = vdwg.mxu0
    %s1820 = scalar_lea.vmem [#allocation9], %s60
    %1821 = vst.msk [vmem:[%s1820] sm:$0xff] %vm78, %v1811
    %1822 = vst.msk [vmem:[%s1820 + $0x8] sm:$0xff] %vm78, %v1817
    %s1823 = sadd.s32 0, 1
    %1826 = vrot.lane.b32.xlu0 %v1811, 112
    %v1827 = vpop.permute.xlu0 %1826
    %1828 = vrot.lane.b32.xlu0 %v1817, 112
    %v1829 = vpop.permute.xlu0 %1828
    %s1832 = smul.u32 %s1823, 16
    %s1833 = scalar_lea.vmem [#allocation9], %s1832
    %1834 = vst.msk [vmem:[%s1833] sm:$0xff] %vm78, %v1827
    %1835 = vst.msk [vmem:[%s1833 + $0x8] sm:$0xff] %vm78, %v1829
    %s1836 = sadd.s32 0, 2
    %1837 = vrot.lane.b32.xlu0 %v1811, 96
    %v1838 = vpop.permute.xlu0 %1837
    %1839 = vrot.lane.b32.xlu0 %v1817, 96
    %v1840 = vpop.permute.xlu0 %1839
    %s1843 = smul.u32 %s1836, 16
    %s1844 = scalar_lea.vmem [#allocation9], %s1843
    %1845 = vst.msk [vmem:[%s1844] sm:$0xff] %vm78, %v1838
    %1846 = vst.msk [vmem:[%s1844 + $0x8] sm:$0xff] %vm78, %v1840
    %s1847 = sadd.s32 0, 3
    %1848 = vrot.lane.b32.xlu0 %v1811, 80
    %v1849 = vpop.permute.xlu0 %1848
    %1850 = vrot.lane.b32.xlu0 %v1817, 80
    %v1851 = vpop.permute.xlu0 %1850
    %s1854 = smul.u32 %s1847, 16
    %s1855 = scalar_lea.vmem [#allocation9], %s1854
    %1856 = vst.msk [vmem:[%s1855] sm:$0xff] %vm78, %v1849
    %1857 = vst.msk [vmem:[%s1855 + $0x8] sm:$0xff] %vm78, %v1851
    %s1858 = sadd.s32 0, 4
    %1859 = vrot.lane.b32.xlu0 %v1811, 64
    %v1860 = vpop.permute.xlu0 %1859
    %1861 = vrot.lane.b32.xlu0 %v1817, 64
    %v1862 = vpop.permute.xlu0 %1861
    %s1865 = smul.u32 %s1858, 16
    %s1866 = scalar_lea.vmem [#allocation9], %s1865
    %1867 = vst.msk [vmem:[%s1866] sm:$0xff] %vm78, %v1860
    %1868 = vst.msk [vmem:[%s1866 + $0x8] sm:$0xff] %vm78, %v1862
    %s1869 = sadd.s32 0, 5
    %1870 = vrot.lane.b32.xlu0 %v1811, 48
    %v1871 = vpop.permute.xlu0 %1870
    %1872 = vrot.lane.b32.xlu0 %v1817, 48
    %v1873 = vpop.permute.xlu0 %1872
    %s1876 = smul.u32 %s1869, 16
    %s1877 = scalar_lea.vmem [#allocation9], %s1876
    %1878 = vst.msk [vmem:[%s1877] sm:$0xff] %vm78, %v1871
    %1879 = vst.msk [vmem:[%s1877 + $0x8] sm:$0xff] %vm78, %v1873
    %s1880 = sadd.s32 0, 6
    %1881 = vrot.lane.b32.xlu0 %v1811, 32
    %v1882 = vpop.permute.xlu0 %1881
    %1883 = vrot.lane.b32.xlu0 %v1817, 32
    %v1884 = vpop.permute.xlu0 %1883
    %s1887 = smul.u32 %s1880, 16
    %s1888 = scalar_lea.vmem [#allocation9], %s1887
    %1889 = vst.msk [vmem:[%s1888] sm:$0xff] %vm78, %v1882
    %1890 = vst.msk [vmem:[%s1888 + $0x8] sm:$0xff] %vm78, %v1884
    %s1891 = sadd.s32 0, 7
    %1892 = vrot.lane.b32.xlu0 %v1811, 16
    %v1893 = vpop.permute.xlu0 %1892
    %1894 = vrot.lane.b32.xlu0 %v1817, 16
    %v1895 = vpop.permute.xlu0 %1894
    %s1898 = smul.u32 %s1891, 16
    %s1899 = scalar_lea.vmem [#allocation9], %s1898
    %1900 = vst.msk [vmem:[%s1899] sm:$0xff] %vm78, %v1893
    %1901 = vst.msk [vmem:[%s1899 + $0x8] sm:$0xff] %vm78, %v1895
    // Predicated region
    $region26: #{tpu_custom_call.1} parent=1 // pred_check
      _
    $region27: #{tpu_custom_call.1} parent=1 // pred_check_branch
      %1903 = sbr.rel (0) target = $region29
    $region28: #{tpu_custom_call.1} parent=1 // pred_region
      %s1905 = ssub.s32 2048, 2048
      %1906 = vsyncadd [#allocation5], %s1905
      %s1907 = sshll.u32 [#allocation9], 4
      %s1908 = int_to_ptr.vmem [resolvable:$true] %s1907
      %1913 = dma.vmem_to_hbm [thread:$0]  %s1908, 2048, %s3, [#allocation5], 128, 128, 8
    $region29: #{tpu_custom_call.1} parent=1 // pred_fallthru
      _
    // Predicated region
    $region30: #{tpu_custom_call.1} parent=1 // pred_check
      _
    $region31: #{tpu_custom_call.1} parent=1 // pred_check_branch
      %1915 = sbr.rel (0) target = $region33
    $region32: #{tpu_custom_call.1} parent=1 // pred_region
      %1916 = dma.done [#allocation5], 2048
    $region33: #{tpu_custom_call.1} parent=1 // pred_fallthru
      _
    %1917 = vsyncpa [#allocation4], 1
    %1918 = vsyncpa [#allocation7], 1
    %1919 = vsyncpa [#allocation5], 1

// kernel: tpu_custom_call.1
$region0: #{tpu_custom_call.1}
  #allocation0 [shape = 'u32[]', space=smem, size = 0x4, offset = 0x4, fixed_abs, tag = 'smem constant byte address 0x4 - core index']
  #allocation1 [shape = 'u32[144,128]{1,0:T(1,128)}', space=vmem, size = 0x12000, scoped, tag = 'internal scratch']
  #allocation2 [shape = 'f32[16,128]{1,0:T(8,128)}', space=vmem, size = 0x2000, scoped, tag = 'scratch operand']
  %s0 = inlined_call_operand.hbm [shape: f32[8,16,16], index: 0, kind: input, shape index: {}]
  %s1 = inlined_call_operand.hbm [shape: f32[16,16], index: 1, kind: input, shape index: {}]
  %s2 = inlined_call_operand.hbm [shape: f32[16,16], index: 2, kind: input, shape index: {}]
  %s3 = inlined_call_operand.hbm [shape: f32[8,16,16], index: 3, kind: output, shape index: {}]
  %s4 = sld [smem:[#allocation0]]
  $region34: #{tpu_custom_call.1} parent=0
    _
  %s6 = ssub.s32 1, %s4
  %s7 = scalar_select 0, %s6, %s4
  $region1: #{tpu_custom_call.1} parent=0
    #allocation3 [shape = 'u8[65536]{0}', space=vmem, size = 0x10000, scoped, tag = 'input window, operand 0, single buffered']
    #allocation4 [shape = 's32[1]{0}', space=sflag, size = 0x4, scoped, tag = 'scoped memory for tpu_custom_call.1']
    #allocation5 [shape = 's32[1]{0}', space=sflag, size = 0x4, scoped, tag = 'scoped memory for tpu_custom_call.1']
    #allocation6 [shape = 'u8[8192]{0}', space=vmem, size = 0x2000, scoped, tag = 'input window, operand 1, single buffered']
    #allocation7 [shape = 's32[1]{0}', space=sflag, size = 0x4, scoped, tag = 'scoped memory for tpu_custom_call.1']
    #allocation8 [shape = 'u8[8192]{0}', space=vmem, size = 0x2000, scoped, tag = 'input window, operand 2, single buffered']
    #allocation9 [shape = 'u8[65536]{0}', space=vmem, size = 0x10000, scoped, tag = 'output window, operand 0, single buffered']
    %8 = vsyncpa [#allocation4], 0
    %9 = vsyncpa [#allocation7], 0
    %10 = vsyncpa [#allocation5], 0
    // Predicated region
    $region2: #{tpu_custom_call.1} parent=1 // pred_check
      _
    $region3: #{tpu_custom_call.1} parent=1 // pred_check_branch
      %12 = sbr.rel (0) target = $region5
    $region4: #{tpu_custom_call.1} parent=1 // pred_region
      %s14 = ssub.s32 2048, 2048
      %15 = vsyncadd [#allocation4], %s14
      %s16 = sshll.u32 [#allocation3], 4
      %s17 = int_to_ptr.vmem [resolvable:$true] %s16
      %22 = dma.hbm_to_vmem [thread:$0]  %s0, 2048, %s17, [#allocation4], 128, 128, 8
    $region5: #{tpu_custom_call.1} parent=1 // pred_fallthru
      _
    // Predicated region
    $region6: #{tpu_custom_call.1} parent=1 // pred_check
      _
    $region7: #{tpu_custom_call.1} parent=1 // pred_check_branch
      %24 = sbr.rel (0) target = $region9
    $region8: #{tpu_custom_call.1} parent=1 // pred_region
      %s26 = ssub.s32 256, 256
      %27 = vsyncadd [#allocation7], %s26
      %s28 = sshll.u32 [#allocation6], 4
      %s29 = int_to_ptr.vmem [resolvable:$true] %s28
      %34 = dma.hbm_to_vmem [thread:$0]  %s1, 256, %s29, [#allocation7], 128, 128, 8
    $region9: #{tpu_custom_call.1} parent=1 // pred_fallthru
      _
    // Predicated region
    $region10: #{tpu_custom_call.1} parent=1 // pred_check
      _
    $region11: #{tpu_custom_call.1} parent=1 // pred_check_branch
      %36 = sbr.rel (0) target = $region13
    $region12: #{tpu_custom_call.1} parent=1 // pred_region
      %s38 = ssub.s32 256, 256
      %39 = vsyncadd [#allocation7], %s38
      %s40 = sshll.u32 [#allocation8], 4
      %s41 = int_to_ptr.vmem [resolvable:$true] %s40
      %46 = dma.hbm_to_vmem [thread:$0]  %s2, 256, %s41, [#allocation7], 128, 128, 8
    $region13: #{tpu_custom_call.1} parent=1 // pred_fallthru
      _
    // Predicated region
    $region14: #{tpu_custom_call.1} parent=1 // pred_check
      _
    $region15: #{tpu_custom_call.1} parent=1 // pred_check_branch
      %48 = sbr.rel (0) target = $region17
    $region16: #{tpu_custom_call.1} parent=1 // pred_region
      %49 = dma.done [#allocation4], 2048
    $region17: #{tpu_custom_call.1} parent=1 // pred_fallthru
      _
    // Predicated region
    $region18: #{tpu_custom_call.1} parent=1 // pred_check
      _
    $region19: #{tpu_custom_call.1} parent=1 // pred_check_branch
      %51 = sbr.rel (0) target = $region21
    $region20: #{tpu_custom_call.1} parent=1 // pred_region
      %52 = dma.done [#allocation7], 256
    $region21: #{tpu_custom_call.1} parent=1 // pred_fallthru
      _
    // Predicated region
    $region22: #{tpu_custom_call.1} parent=1 // pred_check
      _
    $region23: #{tpu_custom_call.1} parent=1 // pred_check_branch
      %54 = sbr.rel (0) target = $region25
    $region24: #{tpu_custom_call.1} parent=1 // pred_region
      %55 = dma.done [#allocation7], 256
    $region25: #{tpu_custom_call.1} parent=1 // pred_fallthru
      _
    %v56 = vld [vmem:[#allocation6] sm:$0xff]
    %v57 = vld [vmem:[#allocation6 + $0x8] sm:$0xff]
    %v58 = vld [vmem:[#allocation8] sm:$0xff]
    %v59 = vld [vmem:[#allocation8 + $0x8] sm:$0xff]
    %s60 = smul.u32 0, 16
    %s61 = scalar_lea.vmem [#allocation3], %s60
    %v62 = vld [vmem:[%s61] sm:$0xff]
    %v63 = vld [vmem:[%s61 + $0x8] sm:$0xff]
    %v64 = vld [vmem:[%s61 + $0x10] sm:$0xff]
    %v65 = vld [vmem:[%s61 + $0x18] sm:$0xff]
    %v66 = vld [vmem:[%s61 + $0x20] sm:$0xff]
    %v67 = vld [vmem:[%s61 + $0x28] sm:$0xff]
    %v68 = vld [vmem:[%s61 + $0x30] sm:$0xff]
    %v69 = vld [vmem:[%s61 + $0x38] sm:$0xff]
    %v70 = vld [vmem:[%s61 + $0x40] sm:$0xff]
    %v71 = vld [vmem:[%s61 + $0x48] sm:$0xff]
    %v72 = vld [vmem:[%s61 + $0x50] sm:$0xff]
    %v73 = vld [vmem:[%s61 + $0x58] sm:$0xff]
    %v74 = vld [vmem:[%s61 + $0x60] sm:$0xff]
    %v75 = vld [vmem:[%s61 + $0x68] sm:$0xff]
    %v76 = vld [vmem:[%s61 + $0x70] sm:$0xff]
    %v77 = vld [vmem:[%s61 + $0x78] sm:$0xff]
    %vm78 = vcmask 130048
    %v80 = vsel %vm78, %v62, 0
    %v83 = vsel %vm78, %v63, 0
    %v86 = vsel %vm78, %v64, 0
    %v89 = vsel %vm78, %v65, 0
    %v92 = vsel %vm78, %v66, 0
    %v95 = vsel %vm78, %v67, 0
    %v98 = vsel %vm78, %v68, 0
    %v101 = vsel %vm78, %v69, 0
    %v104 = vsel %vm78, %v70, 0
    %v107 = vsel %vm78, %v71, 0
    %v110 = vsel %vm78, %v72, 0
    %v113 = vsel %vm78, %v73, 0
    %v116 = vsel %vm78, %v74, 0
    %v119 = vsel %vm78, %v75, 0
    %v122 = vsel %vm78, %v76, 0
    %v125 = vsel %vm78, %v77, 0
    %127 = vmatprep.subr.mxu0 0.0
    %128 = vmatpush1.msra.mxu0 0.0
    %129 = vmatprep.subr.mxu0 0.0
    %130 = vmatpush1.msra.mxu0 0.0
    %131 = vmatprep.subr.mxu0 0.0
    %132 = vmatpush1.msra.mxu0 0.0
    %133 = vmatprep.subr.mxu0 0.0
    %134 = vmatpush1.msra.mxu0 0.0
    %135 = vmatprep.subr.mxu0 0.0
    %136 = vmatpush1.msra.mxu0 0.0
    %137 = vmatprep.subr.mxu0 0.0
    %138 = vmatpush1.msra.mxu0 0.0
    %139 = vmatprep.subr.mxu0 0.0
    %140 = vmatpush1.msra.mxu0 0.0
    %141 = vmatprep.subr.mxu0 0.0
    %142 = vmatpush1.msra.mxu0 0.0
    %143 = vmatprep.subr.mxu0 0.0
    %144 = vmatpush1.msra.mxu0 0.0
    %145 = vmatprep.subr.mxu0 0.0
    %146 = vmatpush1.msra.mxu0 0.0
    %147 = vmatprep.subr.mxu0 0.0
    %148 = vmatpush1.msra.mxu0 0.0
    %149 = vmatprep.subr.mxu0 0.0
    %150 = vmatpush1.msra.mxu0 0.0
    %151 = vmatprep.subr.mxu0 0.0
    %152 = vmatpush1.msra.mxu0 0.0
    %153 = vmatprep.subr.mxu0 0.0
    %154 = vmatpush1.msra.mxu0 0.0
    %155 = vmatprep.subr.mxu0 0.0
    %v156 = vand.u32 %v59, 4294901760
    %157 = vmatpush1.msra.mxu0 %v156
    %158 = vmatprep.subr.mxu0 0.0
    %v159 = vand.u32 %v58, 4294901760
    %160 = vmatpush1.msra.mxu0 %v159
    %161 = vmatprep.subr.mxu0 0.0
    %162 = vmatpush2.msra.mxu0 0.0
    %163 = vmatprep.subr.mxu0 0.0
    %164 = vmatpush2.msra.mxu0 0.0
    %165 = vmatprep.subr.mxu0 0.0
    %166 = vmatpush2.msra.mxu0 0.0
    %167 = vmatprep.subr.mxu0 0.0
    %168 = vmatpush2.msra.mxu0 0.0
    %169 = vmatprep.subr.mxu0 0.0
    %170 = vmatpush2.msra.mxu0 0.0
    %171 = vmatprep.subr.mxu0 0.0
    %172 = vmatpush2.msra.mxu0 0.0
    %173 = vmatprep.subr.mxu0 0.0
    %174 = vmatpush2.msra.mxu0 0.0
    %175 = vmatprep.subr.mxu0 0.0
    %176 = vmatpush2.msra.mxu0 0.0
    %177 = vmatprep.subr.mxu0 0.0
    %178 = vmatpush2.msra.mxu0 0.0
    %179 = vmatprep.subr.mxu0 0.0
    %180 = vmatpush2.msra.mxu0 0.0
    %181 = vmatprep.subr.mxu0 0.0
    %182 = vmatpush2.msra.mxu0 0.0
    %183 = vmatprep.subr.mxu0 0.0
    %184 = vmatpush2.msra.mxu0 0.0
    %185 = vmatprep.subr.mxu0 0.0
    %186 = vmatpush2.msra.mxu0 0.0
    %187 = vmatprep.subr.mxu0 0.0
    %188 = vmatpush2.msra.mxu0 0.0
    %189 = vmatprep.subr.mxu0 0.0
    %190 = vmatpush2.msra.mxu0 0.0
    %191 = vmatprep.subr.mxu0 0.0
    %192 = vmatpush2.msra.mxu0 0.0
    %193 = vmatprep.mubr.f32.mxu0 0.0
    %v194 = vand.u32 %v80, 4294901760
    %v195 = vsub.f32 %v80, %v194
    %v196 = vand.u32 %v195, 4294901760
    %v197 = vsub.f32 %v195, %v196
    %v198 = vand.u32 %v197, 4294901760
    %199 = vmatmul.mubr.f32.gmra.mxu0 %v198
    %v200 = vpop.f32.mrf.mxu0
    %v201 = vadd.f32 0.0, %v200
    %v202 = vpop.f32.mrf.mxu0
    %203 = vmatprep.mubr.f32.mxu0 0.0
    %v204 = vand.u32 %v83, 4294901760
    %v205 = vsub.f32 %v83, %v204
    %v206 = vand.u32 %v205, 4294901760
    %v207 = vsub.f32 %v205, %v206
    %v208 = vand.u32 %v207, 4294901760
    %209 = vmatmul.mubr.f32.gmra.mxu0 %v208
    %v210 = vpop.f32.mrf.mxu0
    %v211 = vadd.f32 0.0, %v210
    %v212 = vpop.f32.mrf.mxu0
    %213 = vmatprep.mubr.f32.mxu0 0.0
    %v214 = vand.u32 %v86, 4294901760
    %v215 = vsub.f32 %v86, %v214
    %v216 = vand.u32 %v215, 4294901760
    %v217 = vsub.f32 %v215, %v216
    %v218 = vand.u32 %v217, 4294901760
    %219 = vmatmul.mubr.f32.gmra.mxu0 %v218
    %v220 = vpop.f32.mrf.mxu0
    %v221 = vadd.f32 0.0, %v220
    %v222 = vpop.f32.mrf.mxu0
    %223 = vmatprep.mubr.f32.mxu0 0.0
    %v224 = vand.u32 %v89, 4294901760
    %v225 = vsub.f32 %v89, %v224
    %v226 = vand.u32 %v225, 4294901760
    %v227 = vsub.f32 %v225, %v226
    %v228 = vand.u32 %v227, 4294901760
    %229 = vmatmul.mubr.f32.gmra.mxu0 %v228
    %v230 = vpop.f32.mrf.mxu0
    %v231 = vadd.f32 0.0, %v230
    %v232 = vpop.f32.mrf.mxu0
    %233 = vmatprep.mubr.f32.mxu0 0.0
    %v234 = vand.u32 %v92, 4294901760
    %v235 = vsub.f32 %v92, %v234
    %v236 = vand.u32 %v235, 4294901760
    %v237 = vsub.f32 %v235, %v236
    %v238 = vand.u32 %v237, 4294901760
    %239 = vmatmul.mubr.f32.gmra.mxu0 %v238
    %v240 = vpop.f32.mrf.mxu0
    %v241 = vadd.f32 0.0, %v240
    %v242 = vpop.f32.mrf.mxu0
    %243 = vmatprep.mubr.f32.mxu0 0.0
    %v244 = vand.u32 %v95, 4294901760
    %v245 = vsub.f32 %v95, %v244
    %v246 = vand.u32 %v245, 4294901760
    %v247 = vsub.f32 %v245, %v246
    %v248 = vand.u32 %v247, 4294901760
    %249 = vmatmul.mubr.f32.gmra.mxu0 %v248
    %v250 = vpop.f32.mrf.mxu0
    %v251 = vadd.f32 0.0, %v250
    %v252 = vpop.f32.mrf.mxu0
    %253 = vmatprep.mubr.f32.mxu0 0.0
    %v254 = vand.u32 %v98, 4294901760
    %v255 = vsub.f32 %v98, %v254
    %v256 = vand.u32 %v255, 4294901760
    %v257 = vsub.f32 %v255, %v256
    %v258 = vand.u32 %v257, 4294901760
    %259 = vmatmul.mubr.f32.gmra.mxu0 %v258
    %v260 = vpop.f32.mrf.mxu0
    %v261 = vadd.f32 0.0, %v260
    %v262 = vpop.f32.mrf.mxu0
    %263 = vmatprep.mubr.f32.mxu0 0.0
    %v264 = vand.u32 %v101, 4294901760
    %v265 = vsub.f32 %v101, %v264
    %v266 = vand.u32 %v265, 4294901760
    %v267 = vsub.f32 %v265, %v266
    %v268 = vand.u32 %v267, 4294901760
    %269 = vmatmul.mubr.f32.gmra.mxu0 %v268
    %v270 = vpop.f32.mrf.mxu0
    %v271 = vadd.f32 0.0, %v270
    %v272 = vpop.f32.mrf.mxu0
    %273 = vmatprep.mubr.f32.mxu0 0.0
    %v274 = vand.u32 %v104, 4294901760
    %v275 = vsub.f32 %v104, %v274
    %v276 = vand.u32 %v275, 4294901760
    %v277 = vsub.f32 %v275, %v276
    %v278 = vand.u32 %v277, 4294901760
    %279 = vmatmul.mubr.f32.gmra.mxu0 %v278
    %v280 = vpop.f32.mrf.mxu0
    %v281 = vadd.f32 0.0, %v280
    %v282 = vpop.f32.mrf.mxu0
    %283 = vmatprep.mubr.f32.mxu0 0.0
    %v284 = vand.u32 %v107, 4294901760
    %v285 = vsub.f32 %v107, %v284
    %v286 = vand.u32 %v285, 4294901760
    %v287 = vsub.f32 %v285, %v286
    %v288 = vand.u32 %v287, 4294901760
    %289 = vmatmul.mubr.f32.gmra.mxu0 %v288
    %v290 = vpop.f32.mrf.mxu0
    %v291 = vadd.f32 0.0, %v290
    %v292 = vpop.f32.mrf.mxu0
    %293 = vmatprep.mubr.f32.mxu0 0.0
    %v294 = vand.u32 %v110, 4294901760
    %v295 = vsub.f32 %v110, %v294
    %v296 = vand.u32 %v295, 4294901760
    %v297 = vsub.f32 %v295, %v296
    %v298 = vand.u32 %v297, 4294901760
    %299 = vmatmul.mubr.f32.gmra.mxu0 %v298
    %v300 = vpop.f32.mrf.mxu0
    %v301 = vadd.f32 0.0, %v300
    %v302 = vpop.f32.mrf.mxu0
    %303 = vmatprep.mubr.f32.mxu0 0.0
    %v304 = vand.u32 %v113, 4294901760
    %v305 = vsub.f32 %v113, %v304
    %v306 = vand.u32 %v305, 4294901760
    %v307 = vsub.f32 %v305, %v306
    %v308 = vand.u32 %v307, 4294901760
    %309 = vmatmul.mubr.f32.gmra.mxu0 %v308
    %v310 = vpop.f32.mrf.mxu0
    %v311 = vadd.f32 0.0, %v310
    %v312 = vpop.f32.mrf.mxu0
    %313 = vmatprep.mubr.f32.mxu0 0.0
    %v314 = vand.u32 %v116, 4294901760
    %v315 = vsub.f32 %v116, %v314
    %v316 = vand.u32 %v315, 4294901760
    %v317 = vsub.f32 %v315, %v316
    %v318 = vand.u32 %v317, 4294901760
    %319 = vmatmul.mubr.f32.gmra.mxu0 %v318
    %v320 = vpop.f32.mrf.mxu0
    %v321 = vadd.f32 0.0, %v320
    %v322 = vpop.f32.mrf.mxu0
    %323 = vmatprep.mubr.f32.mxu0 0.0
    %v324 = vand.u32 %v119, 4294901760
    %v325 = vsub.f32 %v119, %v324
    %v326 = vand.u32 %v325, 4294901760
    %v327 = vsub.f32 %v325, %v326
    %v328 = vand.u32 %v327, 4294901760
    %329 = vmatmul.mubr.f32.gmra.mxu0 %v328
    %v330 = vpop.f32.mrf.mxu0
    %v331 = vadd.f32 0.0, %v330
    %v332 = vpop.f32.mrf.mxu0
    %333 = vmatprep.mubr.f32.mxu0 0.0
    %v334 = vand.u32 %v122, 4294901760
    %v335 = vsub.f32 %v122, %v334
    %v336 = vand.u32 %v335, 4294901760
    %v337 = vsub.f32 %v335, %v336
    %v338 = vand.u32 %v337, 4294901760
    %339 = vmatmul.mubr.f32.gmra.mxu0 %v338
    %v340 = vpop.f32.mrf.mxu0
    %v341 = vadd.f32 0.0, %v340
    %v342 = vpop.f32.mrf.mxu0
    %343 = vmatprep.mubr.f32.mxu0 0.0
    %v344 = vand.u32 %v125, 4294901760
    %v345 = vsub.f32 %v125, %v344
    %v346 = vand.u32 %v345, 4294901760
    %v347 = vsub.f32 %v345, %v346
    %v348 = vand.u32 %v347, 4294901760
    %349 = vmatmul.mubr.f32.gmra.mxu0 %v348
    %v350 = vpop.f32.mrf.mxu0
    %v351 = vadd.f32 0.0, %v350
    %v352 = vpop.f32.mrf.mxu0
    %353 = vdwg.mxu0
    %354 = vmatprep.subr.mxu0 0.0
    %355 = vmatpush1.msra.mxu0 0.0
    %356 = vmatprep.subr.mxu0 0.0
    %357 = vmatpush1.msra.mxu0 0.0
    %358 = vmatprep.subr.mxu0 0.0
    %359 = vmatpush1.msra.mxu0 0.0
    %360 = vmatprep.subr.mxu0 0.0
    %361 = vmatpush1.msra.mxu0 0.0
    %362 = vmatprep.subr.mxu0 0.0
    %363 = vmatpush1.msra.mxu0 0.0
    %364 = vmatprep.subr.mxu0 0.0
    %365 = vmatpush1.msra.mxu0 0.0
    %366 = vmatprep.subr.mxu0 0.0
    %367 = vmatpush1.msra.mxu0 0.0
    %368 = vmatprep.subr.mxu0 0.0
    %369 = vmatpush1.msra.mxu0 0.0
    %370 = vmatprep.subr.mxu0 0.0
    %371 = vmatpush1.msra.mxu0 0.0
    %372 = vmatprep.subr.mxu0 0.0
    %373 = vmatpush1.msra.mxu0 0.0
    %374 = vmatprep.subr.mxu0 0.0
    %375 = vmatpush1.msra.mxu0 0.0
    %376 = vmatprep.subr.mxu0 0.0
    %377 = vmatpush1.msra.mxu0 0.0
    %378 = vmatprep.subr.mxu0 0.0
    %379 = vmatpush1.msra.mxu0 0.0
    %380 = vmatprep.subr.mxu0 0.0
    %381 = vmatpush1.msra.mxu0 0.0
    %382 = vmatprep.subr.mxu0 0.0
    %v383 = vand.u32 %v59, 4294901760
    %v384 = vsub.f32 %v59, %v383
    %v385 = vand.u32 %v384, 4294901760
    %v386 = vsub.f32 %v384, %v385
    %v387 = vand.u32 %v386, 4294901760
    %388 = vmatpush1.msra.mxu0 %v387
    %389 = vmatprep.subr.mxu0 0.0
    %v390 = vand.u32 %v58, 4294901760
    %v391 = vsub.f32 %v58, %v390
    %v392 = vand.u32 %v391, 4294901760
    %v393 = vsub.f32 %v391, %v392
    %v394 = vand.u32 %v393, 4294901760
    %395 = vmatpush1.msra.mxu0 %v394
    %396 = vmatprep.subr.mxu0 0.0
    %397 = vmatpush2.msra.mxu0 0.0
    %398 = vmatprep.subr.mxu0 0.0
    %399 = vmatpush2.msra.mxu0 0.0
    %400 = vmatprep.subr.mxu0 0.0
    %401 = vmatpush2.msra.mxu0 0.0
    %402 = vmatprep.subr.mxu0 0.0
    %403 = vmatpush2.msra.mxu0 0.0
    %404 = vmatprep.subr.mxu0 0.0
    %405 = vmatpush2.msra.mxu0 0.0
    %406 = vmatprep.subr.mxu0 0.0
    %407 = vmatpush2.msra.mxu0 0.0
    %408 = vmatprep.subr.mxu0 0.0
    %409 = vmatpush2.msra.mxu0 0.0
    %410 = vmatprep.subr.mxu0 0.0
    %411 = vmatpush2.msra.mxu0 0.0
    %412 = vmatprep.subr.mxu0 0.0
    %413 = vmatpush2.msra.mxu0 0.0
    %414 = vmatprep.subr.mxu0 0.0
    %415 = vmatpush2.msra.mxu0 0.0
    %416 = vmatprep.subr.mxu0 0.0
    %417 = vmatpush2.msra.mxu0 0.0
    %418 = vmatprep.subr.mxu0 0.0
    %419 = vmatpush2.msra.mxu0 0.0
    %420 = vmatprep.subr.mxu0 0.0
    %421 = vmatpush2.msra.mxu0 0.0
    %422 = vmatprep.subr.mxu0 0.0
    %423 = vmatpush2.msra.mxu0 0.0
    %424 = vmatprep.subr.mxu0 0.0
    %425 = vmatpush2.msra.mxu0 0.0
    %426 = vmatprep.subr.mxu0 0.0
    %427 = vmatpush2.msra.mxu0 0.0
    %428 = vmatprep.mubr.f32.mxu0 0.0
    %v429 = vand.u32 %v80, 4294901760
    %430 = vmatmul.mubr.f32.gmra.mxu0 %v429
    %v431 = vpop.f32.mrf.mxu0
    %v432 = vadd.f32 %v201, %v431
    %v433 = vpop.f32.mrf.mxu0
    %434 = vmatprep.mubr.f32.mxu0 0.0
    %v435 = vand.u32 %v83, 4294901760
    %436 = vmatmul.mubr.f32.gmra.mxu0 %v435
    %v437 = vpop.f32.mrf.mxu0
    %v438 = vadd.f32 %v211, %v437
    %v439 = vpop.f32.mrf.mxu0
    %440 = vmatprep.mubr.f32.mxu0 0.0
    %v441 = vand.u32 %v86, 4294901760
    %442 = vmatmul.mubr.f32.gmra.mxu0 %v441
    %v443 = vpop.f32.mrf.mxu0
    %v444 = vadd.f32 %v221, %v443
    %v445 = vpop.f32.mrf.mxu0
    %446 = vmatprep.mubr.f32.mxu0 0.0
    %v447 = vand.u32 %v89, 4294901760
    %448 = vmatmul.mubr.f32.gmra.mxu0 %v447
    %v449 = vpop.f32.mrf.mxu0
    %v450 = vadd.f32 %v231, %v449
    %v451 = vpop.f32.mrf.mxu0
    %452 = vmatprep.mubr.f32.mxu0 0.0
    %v453 = vand.u32 %v92, 4294901760
    %454 = vmatmul.mubr.f32.gmra.mxu0 %v453
    %v455 = vpop.f32.mrf.mxu0
    %v456 = vadd.f32 %v241, %v455
    %v457 = vpop.f32.mrf.mxu0
    %458 = vmatprep.mubr.f32.mxu0 0.0
    %v459 = vand.u32 %v95, 4294901760
    %460 = vmatmul.mubr.f32.gmra.mxu0 %v459
    %v461 = vpop.f32.mrf.mxu0
    %v462 = vadd.f32 %v251, %v461
    %v463 = vpop.f32.mrf.mxu0
    %464 = vmatprep.mubr.f32.mxu0 0.0
    %v465 = vand.u32 %v98, 4294901760
    %466 = vmatmul.mubr.f32.gmra.mxu0 %v465
    %v467 = vpop.f32.mrf.mxu0
    %v468 = vadd.f32 %v261, %v467
    %v469 = vpop.f32.mrf.mxu0
    %470 = vmatprep.mubr.f32.mxu0 0.0
    %v471 = vand.u32 %v101, 4294901760
    %472 = vmatmul.mubr.f32.gmra.mxu0 %v471
    %v473 = vpop.f32.mrf.mxu0
    %v474 = vadd.f32 %v271, %v473
    %v475 = vpop.f32.mrf.mxu0
    %476 = vmatprep.mubr.f32.mxu0 0.0
    %v477 = vand.u32 %v104, 4294901760
    %478 = vmatmul.mubr.f32.gmra.mxu0 %v477
    %v479 = vpop.f32.mrf.mxu0
    %v480 = vadd.f32 %v281, %v479
    %v481 = vpop.f32.mrf.mxu0
    %482 = vmatprep.mubr.f32.mxu0 0.0
    %v483 = vand.u32 %v107, 4294901760
    %484 = vmatmul.mubr.f32.gmra.mxu0 %v483
    %v485 = vpop.f32.mrf.mxu0
    %v486 = vadd.f32 %v291, %v485
    %v487 = vpop.f32.mrf.mxu0
    %488 = vmatprep.mubr.f32.mxu0 0.0
    %v489 = vand.u32 %v110, 4294901760
    %490 = vmatmul.mubr.f32.gmra.mxu0 %v489
    %v491 = vpop.f32.mrf.mxu0
    %v492 = vadd.f32 %v301, %v491
    %v493 = vpop.f32.mrf.mxu0
    %494 = vmatprep.mubr.f32.mxu0 0.0
    %v495 = vand.u32 %v113, 4294901760
    %496 = vmatmul.mubr.f32.gmra.mxu0 %v495
    %v497 = vpop.f32.mrf.mxu0
    %v498 = vadd.f32 %v311, %v497
    %v499 = vpop.f32.mrf.mxu0
    %500 = vmatprep.mubr.f32.mxu0 0.0
    %v501 = vand.u32 %v116, 4294901760
    %502 = vmatmul.mubr.f32.gmra.mxu0 %v501
    %v503 = vpop.f32.mrf.mxu0
    %v504 = vadd.f32 %v321, %v503
    %v505 = vpop.f32.mrf.mxu0
    %506 = vmatprep.mubr.f32.mxu0 0.0
    %v507 = vand.u32 %v119, 4294901760
    %508 = vmatmul.mubr.f32.gmra.mxu0 %v507
    %v509 = vpop.f32.mrf.mxu0
    %v510 = vadd.f32 %v331, %v509
    %v511 = vpop.f32.mrf.mxu0
    %512 = vmatprep.mubr.f32.mxu0 0.0
    %v513 = vand.u32 %v122, 4294901760
    %514 = vmatmul.mubr.f32.gmra.mxu0 %v513
    %v515 = vpop.f32.mrf.mxu0
    %v516 = vadd.f32 %v341, %v515
    %v517 = vpop.f32.mrf.mxu0
    %518 = vmatprep.mubr.f32.mxu0 0.0
    %v519 = vand.u32 %v125, 4294901760
    %520 = vmatmul.mubr.f32.gmra.mxu0 %v519
    %v521 = vpop.f32.mrf.mxu0
    %v522 = vadd.f32 %v351, %v521
    %v523 = vpop.f32.mrf.mxu0
    %524 = vdwg.mxu0
    %525 = vmatprep.subr.mxu0 0.0
    %526 = vmatpush1.msra.mxu0 0.0
    %527 = vmatprep.subr.mxu0 0.0
    %528 = vmatpush1.msra.mxu0 0.0
    %529 = vmatprep.subr.mxu0 0.0
    %530 = vmatpush1.msra.mxu0 0.0
    %531 = vmatprep.subr.mxu0 0.0
    %532 = vmatpush1.msra.mxu0 0.0
    %533 = vmatprep.subr.mxu0 0.0
    %534 = vmatpush1.msra.mxu0 0.0
    %535 = vmatprep.subr.mxu0 0.0
    %536 = vmatpush1.msra.mxu0 0.0
    %537 = vmatprep.subr.mxu0 0.0
    %538 = vmatpush1.msra.mxu0 0.0
    %539 = vmatprep.subr.mxu0 0.0
    %540 = vmatpush1.msra.mxu0 0.0
    %541 = vmatprep.subr.mxu0 0.0
    %542 = vmatpush1.msra.mxu0 0.0
    %543 = vmatprep.subr.mxu0 0.0
    %544 = vmatpush1.msra.mxu0 0.0
    %545 = vmatprep.subr.mxu0 0.0
    %546 = vmatpush1.msra.mxu0 0.0
    %547 = vmatprep.subr.mxu0 0.0
    %548 = vmatpush1.msra.mxu0 0.0
    %549 = vmatprep.subr.mxu0 0.0
    %550 = vmatpush1.msra.mxu0 0.0
    %551 = vmatprep.subr.mxu0 0.0
    %552 = vmatpush1.msra.mxu0 0.0
    %553 = vmatprep.subr.mxu0 0.0
    %v554 = vand.u32 %v59, 4294901760
    %v555 = vsub.f32 %v59, %v554
    %556 = vmatpush1.msra.mxu0 %v555
    %557 = vmatprep.subr.mxu0 0.0
    %v558 = vand.u32 %v58, 4294901760
    %v559 = vsub.f32 %v58, %v558
    %560 = vmatpush1.msra.mxu0 %v559
    %561 = vmatprep.subr.mxu0 0.0
    %562 = vmatpush2.msra.mxu0 0.0
    %563 = vmatprep.subr.mxu0 0.0
    %564 = vmatpush2.msra.mxu0 0.0
    %565 = vmatprep.subr.mxu0 0.0
    %566 = vmatpush2.msra.mxu0 0.0
    %567 = vmatprep.subr.mxu0 0.0
    %568 = vmatpush2.msra.mxu0 0.0
    %569 = vmatprep.subr.mxu0 0.0
    %570 = vmatpush2.msra.mxu0 0.0
    %571 = vmatprep.subr.mxu0 0.0
    %572 = vmatpush2.msra.mxu0 0.0
    %573 = vmatprep.subr.mxu0 0.0
    %574 = vmatpush2.msra.mxu0 0.0
    %575 = vmatprep.subr.mxu0 0.0
    %576 = vmatpush2.msra.mxu0 0.0
    %577 = vmatprep.subr.mxu0 0.0
    %578 = vmatpush2.msra.mxu0 0.0
    %579 = vmatprep.subr.mxu0 0.0
    %580 = vmatpush2.msra.mxu0 0.0
    %581 = vmatprep.subr.mxu0 0.0
    %582 = vmatpush2.msra.mxu0 0.0
    %583 = vmatprep.subr.mxu0 0.0
    %584 = vmatpush2.msra.mxu0 0.0
    %585 = vmatprep.subr.mxu0 0.0
    %586 = vmatpush2.msra.mxu0 0.0
    %587 = vmatprep.subr.mxu0 0.0
    %588 = vmatpush2.msra.mxu0 0.0
    %589 = vmatprep.subr.mxu0 0.0
    %590 = vmatpush2.msra.mxu0 0.0
    %591 = vmatprep.subr.mxu0 0.0
    %592 = vmatpush2.msra.mxu0 0.0
    %593 = vmatprep.mubr.f32.mxu0 0.0
    %v594 = vand.u32 %v80, 4294901760
    %v595 = vsub.f32 %v80, %v594
    %596 = vmatmul.mubr.f32.gmra.mxu0 %v595
    %v597 = vpop.f32.mrf.mxu0
    %v598 = vadd.f32 %v432, %v597
    %v599 = vpop.f32.mrf.mxu0
    %600 = vmatprep.mubr.f32.mxu0 0.0
    %v601 = vand.u32 %v83, 4294901760
    %v602 = vsub.f32 %v83, %v601
    %603 = vmatmul.mubr.f32.gmra.mxu0 %v602
    %v604 = vpop.f32.mrf.mxu0
    %v605 = vadd.f32 %v438, %v604
    %v606 = vpop.f32.mrf.mxu0
    %607 = vmatprep.mubr.f32.mxu0 0.0
    %v608 = vand.u32 %v86, 4294901760
    %v609 = vsub.f32 %v86, %v608
    %610 = vmatmul.mubr.f32.gmra.mxu0 %v609
    %v611 = vpop.f32.mrf.mxu0
    %v612 = vadd.f32 %v444, %v611
    %v613 = vpop.f32.mrf.mxu0
    %614 = vmatprep.mubr.f32.mxu0 0.0
    %v615 = vand.u32 %v89, 4294901760
    %v616 = vsub.f32 %v89, %v615
    %617 = vmatmul.mubr.f32.gmra.mxu0 %v616
    %v618 = vpop.f32.mrf.mxu0
    %v619 = vadd.f32 %v450, %v618
    %v620 = vpop.f32.mrf.mxu0
    %621 = vmatprep.mubr.f32.mxu0 0.0
    %v622 = vand.u32 %v92, 4294901760
    %v623 = vsub.f32 %v92, %v622
    %624 = vmatmul.mubr.f32.gmra.mxu0 %v623
    %v625 = vpop.f32.mrf.mxu0
    %v626 = vadd.f32 %v456, %v625
    %v627 = vpop.f32.mrf.mxu0
    %628 = vmatprep.mubr.f32.mxu0 0.0
    %v629 = vand.u32 %v95, 4294901760
    %v630 = vsub.f32 %v95, %v629
    %631 = vmatmul.mubr.f32.gmra.mxu0 %v630
    %v632 = vpop.f32.mrf.mxu0
    %v633 = vadd.f32 %v462, %v632
    %v634 = vpop.f32.mrf.mxu0
    %635 = vmatprep.mubr.f32.mxu0 0.0
    %v636 = vand.u32 %v98, 4294901760
    %v637 = vsub.f32 %v98, %v636
    %638 = vmatmul.mubr.f32.gmra.mxu0 %v637
    %v639 = vpop.f32.mrf.mxu0
    %v640 = vadd.f32 %v468, %v639
    %v641 = vpop.f32.mrf.mxu0
    %642 = vmatprep.mubr.f32.mxu0 0.0
    %v643 = vand.u32 %v101, 4294901760
    %v644 = vsub.f32 %v101, %v643
    %645 = vmatmul.mubr.f32.gmra.mxu0 %v644
    %v646 = vpop.f32.mrf.mxu0
    %v647 = vadd.f32 %v474, %v646
    %v648 = vpop.f32.mrf.mxu0
    %649 = vmatprep.mubr.f32.mxu0 0.0
    %v650 = vand.u32 %v104, 4294901760
    %v651 = vsub.f32 %v104, %v650
    %652 = vmatmul.mubr.f32.gmra.mxu0 %v651
    %v653 = vpop.f32.mrf.mxu0
    %v654 = vadd.f32 %v480, %v653
    %v655 = vpop.f32.mrf.mxu0
    %656 = vmatprep.mubr.f32.mxu0 0.0
    %v657 = vand.u32 %v107, 4294901760
    %v658 = vsub.f32 %v107, %v657
    %659 = vmatmul.mubr.f32.gmra.mxu0 %v658
    %v660 = vpop.f32.mrf.mxu0
    %v661 = vadd.f32 %v486, %v660
    %v662 = vpop.f32.mrf.mxu0
    %663 = vmatprep.mubr.f32.mxu0 0.0
    %v664 = vand.u32 %v110, 4294901760
    %v665 = vsub.f32 %v110, %v664
    %666 = vmatmul.mubr.f32.gmra.mxu0 %v665
    %v667 = vpop.f32.mrf.mxu0
    %v668 = vadd.f32 %v492, %v667
    %v669 = vpop.f32.mrf.mxu0
    %670 = vmatprep.mubr.f32.mxu0 0.0
    %v671 = vand.u32 %v113, 4294901760
    %v672 = vsub.f32 %v113, %v671
    %673 = vmatmul.mubr.f32.gmra.mxu0 %v672
    %v674 = vpop.f32.mrf.mxu0
    %v675 = vadd.f32 %v498, %v674
    %v676 = vpop.f32.mrf.mxu0
    %677 = vmatprep.mubr.f32.mxu0 0.0
    %v678 = vand.u32 %v116, 4294901760
    %v679 = vsub.f32 %v116, %v678
    %680 = vmatmul.mubr.f32.gmra.mxu0 %v679
    %v681 = vpop.f32.mrf.mxu0
    %v682 = vadd.f32 %v504, %v681
    %v683 = vpop.f32.mrf.mxu0
    %684 = vmatprep.mubr.f32.mxu0 0.0
    %v685 = vand.u32 %v119, 4294901760
    %v686 = vsub.f32 %v119, %v685
    %687 = vmatmul.mubr.f32.gmra.mxu0 %v686
    %v688 = vpop.f32.mrf.mxu0
    %v689 = vadd.f32 %v510, %v688
    %v690 = vpop.f32.mrf.mxu0
    %691 = vmatprep.mubr.f32.mxu0 0.0
    %v692 = vand.u32 %v122, 4294901760
    %v693 = vsub.f32 %v122, %v692
    %694 = vmatmul.mubr.f32.gmra.mxu0 %v693
    %v695 = vpop.f32.mrf.mxu0
    %v696 = vadd.f32 %v516, %v695
    %v697 = vpop.f32.mrf.mxu0
    %698 = vmatprep.mubr.f32.mxu0 0.0
    %v699 = vand.u32 %v125, 4294901760
    %v700 = vsub.f32 %v125, %v699
    %701 = vmatmul.mubr.f32.gmra.mxu0 %v700
    %v702 = vpop.f32.mrf.mxu0
    %v703 = vadd.f32 %v522, %v702
    %v704 = vpop.f32.mrf.mxu0
    %705 = vdwg.mxu0
    %706 = vmatprep.subr.mxu0 0.0
    %707 = vmatpush1.msra.mxu0 0.0
    %708 = vmatprep.subr.mxu0 0.0
    %709 = vmatpush1.msra.mxu0 0.0
    %710 = vmatprep.subr.mxu0 0.0
    %711 = vmatpush1.msra.mxu0 0.0
    %712 = vmatprep.subr.mxu0 0.0
    %713 = vmatpush1.msra.mxu0 0.0
    %714 = vmatprep.subr.mxu0 0.0
    %715 = vmatpush1.msra.mxu0 0.0
    %716 = vmatprep.subr.mxu0 0.0
    %717 = vmatpush1.msra.mxu0 0.0
    %718 = vmatprep.subr.mxu0 0.0
    %719 = vmatpush1.msra.mxu0 0.0
    %720 = vmatprep.subr.mxu0 0.0
    %721 = vmatpush1.msra.mxu0 0.0
    %722 = vmatprep.subr.mxu0 0.0
    %723 = vmatpush1.msra.mxu0 0.0
    %724 = vmatprep.subr.mxu0 0.0
    %725 = vmatpush1.msra.mxu0 0.0
    %726 = vmatprep.subr.mxu0 0.0
    %727 = vmatpush1.msra.mxu0 0.0
    %728 = vmatprep.subr.mxu0 0.0
    %729 = vmatpush1.msra.mxu0 0.0
    %730 = vmatprep.subr.mxu0 0.0
    %731 = vmatpush1.msra.mxu0 0.0
    %732 = vmatprep.subr.mxu0 0.0
    %733 = vmatpush1.msra.mxu0 0.0
    %734 = vmatprep.subr.mxu0 0.0
    %v735 = vand.u32 %v59, 4294901760
    %736 = vmatpush1.msra.mxu0 %v735
    %737 = vmatprep.subr.mxu0 0.0
    %v738 = vand.u32 %v58, 4294901760
    %739 = vmatpush1.msra.mxu0 %v738
    %740 = vmatprep.subr.mxu0 0.0
    %741 = vmatpush2.msra.mxu0 0.0
    %742 = vmatprep.subr.mxu0 0.0
    %743 = vmatpush2.msra.mxu0 0.0
    %744 = vmatprep.subr.mxu0 0.0
    %745 = vmatpush2.msra.mxu0 0.0
    %746 = vmatprep.subr.mxu0 0.0
    %747 = vmatpush2.msra.mxu0 0.0
    %748 = vmatprep.subr.mxu0 0.0
    %749 = vmatpush2.msra.mxu0 0.0
    %750 = vmatprep.subr.mxu0 0.0
    %751 = vmatpush2.msra.mxu0 0.0
    %752 = vmatprep.subr.mxu0 0.0
    %753 = vmatpush2.msra.mxu0 0.0
    %754 = vmatprep.subr.mxu0 0.0
    %755 = vmatpush2.msra.mxu0 0.0
    %756 = vmatprep.subr.mxu0 0.0
    %757 = vmatpush2.msra.mxu0 0.0
    %758 = vmatprep.subr.mxu0 0.0
    %759 = vmatpush2.msra.mxu0 0.0
    %760 = vmatprep.subr.mxu0 0.0
    %761 = vmatpush2.msra.mxu0 0.0
    %762 = vmatprep.subr.mxu0 0.0
    %763 = vmatpush2.msra.mxu0 0.0
    %764 = vmatprep.subr.mxu0 0.0
    %765 = vmatpush2.msra.mxu0 0.0
    %766 = vmatprep.subr.mxu0 0.0
    %767 = vmatpush2.msra.mxu0 0.0
    %768 = vmatprep.subr.mxu0 0.0
    %769 = vmatpush2.msra.mxu0 0.0
    %770 = vmatprep.subr.mxu0 0.0
    %771 = vmatpush2.msra.mxu0 0.0
    %772 = vmatprep.mubr.f32.mxu0 0.0
    %v773 = vand.u32 %v80, 4294901760
    %v774 = vsub.f32 %v80, %v773
    %v775 = vand.u32 %v774, 4294901760
    %776 = vmatmul.mubr.f32.gmra.mxu0 %v775
    %v777 = vpop.f32.mrf.mxu0
    %v778 = vadd.f32 %v598, %v777
    %v779 = vpop.f32.mrf.mxu0
    %780 = vmatprep.mubr.f32.mxu0 0.0
    %v781 = vand.u32 %v83, 4294901760
    %v782 = vsub.f32 %v83, %v781
    %v783 = vand.u32 %v782, 4294901760
    %784 = vmatmul.mubr.f32.gmra.mxu0 %v783
    %v785 = vpop.f32.mrf.mxu0
    %v786 = vadd.f32 %v605, %v785
    %v787 = vpop.f32.mrf.mxu0
    %788 = vmatprep.mubr.f32.mxu0 0.0
    %v789 = vand.u32 %v86, 4294901760
    %v790 = vsub.f32 %v86, %v789
    %v791 = vand.u32 %v790, 4294901760
    %792 = vmatmul.mubr.f32.gmra.mxu0 %v791
    %v793 = vpop.f32.mrf.mxu0
    %v794 = vadd.f32 %v612, %v793
    %v795 = vpop.f32.mrf.mxu0
    %796 = vmatprep.mubr.f32.mxu0 0.0
    %v797 = vand.u32 %v89, 4294901760
    %v798 = vsub.f32 %v89, %v797
    %v799 = vand.u32 %v798, 4294901760
    %800 = vmatmul.mubr.f32.gmra.mxu0 %v799
    %v801 = vpop.f32.mrf.mxu0
    %v802 = vadd.f32 %v619, %v801
    %v803 = vpop.f32.mrf.mxu0
    %804 = vmatprep.mubr.f32.mxu0 0.0
    %v805 = vand.u32 %v92, 4294901760
    %v806 = vsub.f32 %v92, %v805
    %v807 = vand.u32 %v806, 4294901760
    %808 = vmatmul.mubr.f32.gmra.mxu0 %v807
    %v809 = vpop.f32.mrf.mxu0
    %v810 = vadd.f32 %v626, %v809
    %v811 = vpop.f32.mrf.mxu0
    %812 = vmatprep.mubr.f32.mxu0 0.0
    %v813 = vand.u32 %v95, 4294901760
    %v814 = vsub.f32 %v95, %v813
    %v815 = vand.u32 %v814, 4294901760
    %816 = vmatmul.mubr.f32.gmra.mxu0 %v815
    %v817 = vpop.f32.mrf.mxu0
    %v818 = vadd.f32 %v633, %v817
    %v819 = vpop.f32.mrf.mxu0
    %820 = vmatprep.mubr.f32.mxu0 0.0
    %v821 = vand.u32 %v98, 4294901760
    %v822 = vsub.f32 %v98, %v821
    %v823 = vand.u32 %v822, 4294901760
    %824 = vmatmul.mubr.f32.gmra.mxu0 %v823
    %v825 = vpop.f32.mrf.mxu0
    %v826 = vadd.f32 %v640, %v825
    %v827 = vpop.f32.mrf.mxu0
    %828 = vmatprep.mubr.f32.mxu0 0.0
    %v829 = vand.u32 %v101, 4294901760
    %v830 = vsub.f32 %v101, %v829
    %v831 = vand.u32 %v830, 4294901760
    %832 = vmatmul.mubr.f32.gmra.mxu0 %v831
    %v833 = vpop.f32.mrf.mxu0
    %v834 = vadd.f32 %v647, %v833
    %v835 = vpop.f32.mrf.mxu0
    %836 = vmatprep.mubr.f32.mxu0 0.0
    %v837 = vand.u32 %v104, 4294901760
    %v838 = vsub.f32 %v104, %v837
    %v839 = vand.u32 %v838, 4294901760
    %840 = vmatmul.mubr.f32.gmra.mxu0 %v839
    %v841 = vpop.f32.mrf.mxu0
    %v842 = vadd.f32 %v654, %v841
    %v843 = vpop.f32.mrf.mxu0
    %844 = vmatprep.mubr.f32.mxu0 0.0
    %v845 = vand.u32 %v107, 4294901760
    %v846 = vsub.f32 %v107, %v845
    %v847 = vand.u32 %v846, 4294901760
    %848 = vmatmul.mubr.f32.gmra.mxu0 %v847
    %v849 = vpop.f32.mrf.mxu0
    %v850 = vadd.f32 %v661, %v849
    %v851 = vpop.f32.mrf.mxu0
    %852 = vmatprep.mubr.f32.mxu0 0.0
    %v853 = vand.u32 %v110, 4294901760
    %v854 = vsub.f32 %v110, %v853
    %v855 = vand.u32 %v854, 4294901760
    %856 = vmatmul.mubr.f32.gmra.mxu0 %v855
    %v857 = vpop.f32.mrf.mxu0
    %v858 = vadd.f32 %v668, %v857
    %v859 = vpop.f32.mrf.mxu0
    %860 = vmatprep.mubr.f32.mxu0 0.0
    %v861 = vand.u32 %v113, 4294901760
    %v862 = vsub.f32 %v113, %v861
    %v863 = vand.u32 %v862, 4294901760
    %864 = vmatmul.mubr.f32.gmra.mxu0 %v863
    %v865 = vpop.f32.mrf.mxu0
    %v866 = vadd.f32 %v675, %v865
    %v867 = vpop.f32.mrf.mxu0
    %868 = vmatprep.mubr.f32.mxu0 0.0
    %v869 = vand.u32 %v116, 4294901760
    %v870 = vsub.f32 %v116, %v869
    %v871 = vand.u32 %v870, 4294901760
    %872 = vmatmul.mubr.f32.gmra.mxu0 %v871
    %v873 = vpop.f32.mrf.mxu0
    %v874 = vadd.f32 %v682, %v873
    %v875 = vpop.f32.mrf.mxu0
    %876 = vmatprep.mubr.f32.mxu0 0.0
    %v877 = vand.u32 %v119, 4294901760
    %v878 = vsub.f32 %v119, %v877
    %v879 = vand.u32 %v878, 4294901760
    %880 = vmatmul.mubr.f32.gmra.mxu0 %v879
    %v881 = vpop.f32.mrf.mxu0
    %v882 = vadd.f32 %v689, %v881
    %v883 = vpop.f32.mrf.mxu0
    %884 = vmatprep.mubr.f32.mxu0 0.0
    %v885 = vand.u32 %v122, 4294901760
    %v886 = vsub.f32 %v122, %v885
    %v887 = vand.u32 %v886, 4294901760
    %888 = vmatmul.mubr.f32.gmra.mxu0 %v887
    %v889 = vpop.f32.mrf.mxu0
    %v890 = vadd.f32 %v696, %v889
    %v891 = vpop.f32.mrf.mxu0
    %892 = vmatprep.mubr.f32.mxu0 0.0
    %v893 = vand.u32 %v125, 4294901760
    %v894 = vsub.f32 %v125, %v893
    %v895 = vand.u32 %v894, 4294901760
    %896 = vmatmul.mubr.f32.gmra.mxu0 %v895
    %v897 = vpop.f32.mrf.mxu0
    %v898 = vadd.f32 %v703, %v897
    %v899 = vpop.f32.mrf.mxu0
    %900 = vdwg.mxu0
    %901 = vmatprep.subr.mxu0 0.0
    %902 = vmatpush1.msra.mxu0 0.0
    %903 = vmatprep.subr.mxu0 0.0
    %904 = vmatpush1.msra.mxu0 0.0
    %905 = vmatprep.subr.mxu0 0.0
    %906 = vmatpush1.msra.mxu0 0.0
    %907 = vmatprep.subr.mxu0 0.0
    %908 = vmatpush1.msra.mxu0 0.0
    %909 = vmatprep.subr.mxu0 0.0
    %910 = vmatpush1.msra.mxu0 0.0
    %911 = vmatprep.subr.mxu0 0.0
    %912 = vmatpush1.msra.mxu0 0.0
    %913 = vmatprep.subr.mxu0 0.0
    %914 = vmatpush1.msra.mxu0 0.0
    %915 = vmatprep.subr.mxu0 0.0
    %916 = vmatpush1.msra.mxu0 0.0
    %917 = vmatprep.subr.mxu0 0.0
    %918 = vmatpush1.msra.mxu0 0.0
    %919 = vmatprep.subr.mxu0 0.0
    %920 = vmatpush1.msra.mxu0 0.0
    %921 = vmatprep.subr.mxu0 0.0
    %922 = vmatpush1.msra.mxu0 0.0
    %923 = vmatprep.subr.mxu0 0.0
    %924 = vmatpush1.msra.mxu0 0.0
    %925 = vmatprep.subr.mxu0 0.0
    %926 = vmatpush1.msra.mxu0 0.0
    %927 = vmatprep.subr.mxu0 0.0
    %928 = vmatpush1.msra.mxu0 0.0
    %929 = vmatprep.subr.mxu0 0.0
    %v930 = vand.u32 %v59, 4294901760
    %v931 = vsub.f32 %v59, %v930
    %v932 = vand.u32 %v931, 4294901760
    %933 = vmatpush1.msra.mxu0 %v932
    %934 = vmatprep.subr.mxu0 0.0
    %v935 = vand.u32 %v58, 4294901760
    %v936 = vsub.f32 %v58, %v935
    %v937 = vand.u32 %v936, 4294901760
    %938 = vmatpush1.msra.mxu0 %v937
    %939 = vmatprep.subr.mxu0 0.0
    %940 = vmatpush2.msra.mxu0 0.0
    %941 = vmatprep.subr.mxu0 0.0
    %942 = vmatpush2.msra.mxu0 0.0
    %943 = vmatprep.subr.mxu0 0.0
    %944 = vmatpush2.msra.mxu0 0.0
    %945 = vmatprep.subr.mxu0 0.0
    %946 = vmatpush2.msra.mxu0 0.0
    %947 = vmatprep.subr.mxu0 0.0
    %948 = vmatpush2.msra.mxu0 0.0
    %949 = vmatprep.subr.mxu0 0.0
    %950 = vmatpush2.msra.mxu0 0.0
    %951 = vmatprep.subr.mxu0 0.0
    %952 = vmatpush2.msra.mxu0 0.0
    %953 = vmatprep.subr.mxu0 0.0
    %954 = vmatpush2.msra.mxu0 0.0
    %955 = vmatprep.subr.mxu0 0.0
    %956 = vmatpush2.msra.mxu0 0.0
    %957 = vmatprep.subr.mxu0 0.0
    %958 = vmatpush2.msra.mxu0 0.0
    %959 = vmatprep.subr.mxu0 0.0
    %960 = vmatpush2.msra.mxu0 0.0
    %961 = vmatprep.subr.mxu0 0.0
    %962 = vmatpush2.msra.mxu0 0.0
    %963 = vmatprep.subr.mxu0 0.0
    %964 = vmatpush2.msra.mxu0 0.0
    %965 = vmatprep.subr.mxu0 0.0
    %966 = vmatpush2.msra.mxu0 0.0
    %967 = vmatprep.subr.mxu0 0.0
    %968 = vmatpush2.msra.mxu0 0.0
    %969 = vmatprep.subr.mxu0 0.0
    %970 = vmatpush2.msra.mxu0 0.0
    %971 = vmatprep.mubr.f32.mxu0 0.0
    %v972 = vand.u32 %v80, 4294901760
    %973 = vmatmul.mubr.f32.gmra.mxu0 %v972
    %v974 = vpop.f32.mrf.mxu0
    %v975 = vadd.f32 %v778, %v974
    %v976 = vpop.f32.mrf.mxu0
    %977 = vmatprep.mubr.f32.mxu0 0.0
    %v978 = vand.u32 %v83, 4294901760
    %979 = vmatmul.mubr.f32.gmra.mxu0 %v978
    %v980 = vpop.f32.mrf.mxu0
    %v981 = vadd.f32 %v786, %v980
    %v982 = vpop.f32.mrf.mxu0
    %983 = vmatprep.mubr.f32.mxu0 0.0
    %v984 = vand.u32 %v86, 4294901760
    %985 = vmatmul.mubr.f32.gmra.mxu0 %v984
    %v986 = vpop.f32.mrf.mxu0
    %v987 = vadd.f32 %v794, %v986
    %v988 = vpop.f32.mrf.mxu0
    %989 = vmatprep.mubr.f32.mxu0 0.0
    %v990 = vand.u32 %v89, 4294901760
    %991 = vmatmul.mubr.f32.gmra.mxu0 %v990
    %v992 = vpop.f32.mrf.mxu0
    %v993 = vadd.f32 %v802, %v992
    %v994 = vpop.f32.mrf.mxu0
    %995 = vmatprep.mubr.f32.mxu0 0.0
    %v996 = vand.u32 %v92, 4294901760
    %997 = vmatmul.mubr.f32.gmra.mxu0 %v996
    %v998 = vpop.f32.mrf.mxu0
    %v999 = vadd.f32 %v810, %v998
    %v1000 = vpop.f32.mrf.mxu0
    %1001 = vmatprep.mubr.f32.mxu0 0.0
    %v1002 = vand.u32 %v95, 4294901760
    %1003 = vmatmul.mubr.f32.gmra.mxu0 %v1002
    %v1004 = vpop.f32.mrf.mxu0
    %v1005 = vadd.f32 %v818, %v1004
    %v1006 = vpop.f32.mrf.mxu0
    %1007 = vmatprep.mubr.f32.mxu0 0.0
    %v1008 = vand.u32 %v98, 4294901760
    %1009 = vmatmul.mubr.f32.gmra.mxu0 %v1008
    %v1010 = vpop.f32.mrf.mxu0
    %v1011 = vadd.f32 %v826, %v1010
    %v1012 = vpop.f32.mrf.mxu0
    %1013 = vmatprep.mubr.f32.mxu0 0.0
    %v1014 = vand.u32 %v101, 4294901760
    %1015 = vmatmul.mubr.f32.gmra.mxu0 %v1014
    %v1016 = vpop.f32.mrf.mxu0
    %v1017 = vadd.f32 %v834, %v1016
    %v1018 = vpop.f32.mrf.mxu0
    %1019 = vmatprep.mubr.f32.mxu0 0.0
    %v1020 = vand.u32 %v104, 4294901760
    %1021 = vmatmul.mubr.f32.gmra.mxu0 %v1020
    %v1022 = vpop.f32.mrf.mxu0
    %v1023 = vadd.f32 %v842, %v1022
    %v1024 = vpop.f32.mrf.mxu0
    %1025 = vmatprep.mubr.f32.mxu0 0.0
    %v1026 = vand.u32 %v107, 4294901760
    %1027 = vmatmul.mubr.f32.gmra.mxu0 %v1026
    %v1028 = vpop.f32.mrf.mxu0
    %v1029 = vadd.f32 %v850, %v1028
    %v1030 = vpop.f32.mrf.mxu0
    %1031 = vmatprep.mubr.f32.mxu0 0.0
    %v1032 = vand.u32 %v110, 4294901760
    %1033 = vmatmul.mubr.f32.gmra.mxu0 %v1032
    %v1034 = vpop.f32.mrf.mxu0
    %v1035 = vadd.f32 %v858, %v1034
    %v1036 = vpop.f32.mrf.mxu0
    %1037 = vmatprep.mubr.f32.mxu0 0.0
    %v1038 = vand.u32 %v113, 4294901760
    %1039 = vmatmul.mubr.f32.gmra.mxu0 %v1038
    %v1040 = vpop.f32.mrf.mxu0
    %v1041 = vadd.f32 %v866, %v1040
    %v1042 = vpop.f32.mrf.mxu0
    %1043 = vmatprep.mubr.f32.mxu0 0.0
    %v1044 = vand.u32 %v116, 4294901760
    %1045 = vmatmul.mubr.f32.gmra.mxu0 %v1044
    %v1046 = vpop.f32.mrf.mxu0
    %v1047 = vadd.f32 %v874, %v1046
    %v1048 = vpop.f32.mrf.mxu0
    %1049 = vmatprep.mubr.f32.mxu0 0.0
    %v1050 = vand.u32 %v119, 4294901760
    %1051 = vmatmul.mubr.f32.gmra.mxu0 %v1050
    %v1052 = vpop.f32.mrf.mxu0
    %v1053 = vadd.f32 %v882, %v1052
    %v1054 = vpop.f32.mrf.mxu0
    %1055 = vmatprep.mubr.f32.mxu0 0.0
    %v1056 = vand.u32 %v122, 4294901760
    %1057 = vmatmul.mubr.f32.gmra.mxu0 %v1056
    %v1058 = vpop.f32.mrf.mxu0
    %v1059 = vadd.f32 %v890, %v1058
    %v1060 = vpop.f32.mrf.mxu0
    %1061 = vmatprep.mubr.f32.mxu0 0.0
    %v1062 = vand.u32 %v125, 4294901760
    %1063 = vmatmul.mubr.f32.gmra.mxu0 %v1062
    %v1064 = vpop.f32.mrf.mxu0
    %v1065 = vadd.f32 %v898, %v1064
    %v1066 = vpop.f32.mrf.mxu0
    %1067 = vdwg.mxu0
    %1068 = vmatprep.subr.mxu0 0.0
    %1069 = vmatpush1.msra.mxu0 0.0
    %1070 = vmatprep.subr.mxu0 0.0
    %1071 = vmatpush1.msra.mxu0 0.0
    %1072 = vmatprep.subr.mxu0 0.0
    %1073 = vmatpush1.msra.mxu0 0.0
    %1074 = vmatprep.subr.mxu0 0.0
    %1075 = vmatpush1.msra.mxu0 0.0
    %1076 = vmatprep.subr.mxu0 0.0
    %1077 = vmatpush1.msra.mxu0 0.0
    %1078 = vmatprep.subr.mxu0 0.0
    %1079 = vmatpush1.msra.mxu0 0.0
    %1080 = vmatprep.subr.mxu0 0.0
    %1081 = vmatpush1.msra.mxu0 0.0
    %1082 = vmatprep.subr.mxu0 0.0
    %1083 = vmatpush1.msra.mxu0 0.0
    %1084 = vmatprep.subr.mxu0 0.0
    %1085 = vmatpush1.msra.mxu0 0.0
    %1086 = vmatprep.subr.mxu0 0.0
    %1087 = vmatpush1.msra.mxu0 0.0
    %1088 = vmatprep.subr.mxu0 0.0
    %1089 = vmatpush1.msra.mxu0 0.0
    %1090 = vmatprep.subr.mxu0 0.0
    %1091 = vmatpush1.msra.mxu0 0.0
    %1092 = vmatprep.subr.mxu0 0.0
    %1093 = vmatpush1.msra.mxu0 0.0
    %1094 = vmatprep.subr.mxu0 0.0
    %1095 = vmatpush1.msra.mxu0 0.0
    %1096 = vmatprep.subr.mxu0 0.0
    %v1097 = vand.u32 %v59, 4294901760
    %1098 = vmatpush1.msra.mxu0 %v1097
    %1099 = vmatprep.subr.mxu0 0.0
    %v1100 = vand.u32 %v58, 4294901760
    %1101 = vmatpush1.msra.mxu0 %v1100
    %1102 = vmatprep.subr.mxu0 0.0
    %1103 = vmatpush2.msra.mxu0 0.0
    %1104 = vmatprep.subr.mxu0 0.0
    %1105 = vmatpush2.msra.mxu0 0.0
    %1106 = vmatprep.subr.mxu0 0.0
    %1107 = vmatpush2.msra.mxu0 0.0
    %1108 = vmatprep.subr.mxu0 0.0
    %1109 = vmatpush2.msra.mxu0 0.0
    %1110 = vmatprep.subr.mxu0 0.0
    %1111 = vmatpush2.msra.mxu0 0.0
    %1112 = vmatprep.subr.mxu0 0.0
    %1113 = vmatpush2.msra.mxu0 0.0
    %1114 = vmatprep.subr.mxu0 0.0
    %1115 = vmatpush2.msra.mxu0 0.0
    %1116 = vmatprep.subr.mxu0 0.0
    %1117 = vmatpush2.msra.mxu0 0.0
    %1118 = vmatprep.subr.mxu0 0.0
    %1119 = vmatpush2.msra.mxu0 0.0
    %1120 = vmatprep.subr.mxu0 0.0
    %1121 = vmatpush2.msra.mxu0 0.0
    %1122 = vmatprep.subr.mxu0 0.0
    %1123 = vmatpush2.msra.mxu0 0.0
    %1124 = vmatprep.subr.mxu0 0.0
    %1125 = vmatpush2.msra.mxu0 0.0
    %1126 = vmatprep.subr.mxu0 0.0
    %1127 = vmatpush2.msra.mxu0 0.0
    %1128 = vmatprep.subr.mxu0 0.0
    %1129 = vmatpush2.msra.mxu0 0.0
    %1130 = vmatprep.subr.mxu0 0.0
    %1131 = vmatpush2.msra.mxu0 0.0
    %1132 = vmatprep.subr.mxu0 0.0
    %1133 = vmatpush2.msra.mxu0 0.0
    %1134 = vmatprep.mubr.f32.mxu0 0.0
    %v1135 = vand.u32 %v80, 4294901760
    %1136 = vmatmul.mubr.f32.gmra.mxu0 %v1135
    %v1137 = vpop.f32.mrf.mxu0
    %v1138 = vadd.f32 %v975, %v1137
    %v1139 = vpop.f32.mrf.mxu0
    %1140 = vmatprep.mubr.f32.mxu0 0.0
    %v1141 = vand.u32 %v83, 4294901760
    %1142 = vmatmul.mubr.f32.gmra.mxu0 %v1141
    %v1143 = vpop.f32.mrf.mxu0
    %v1144 = vadd.f32 %v981, %v1143
    %v1145 = vpop.f32.mrf.mxu0
    %1146 = vmatprep.mubr.f32.mxu0 0.0
    %v1147 = vand.u32 %v86, 4294901760
    %1148 = vmatmul.mubr.f32.gmra.mxu0 %v1147
    %v1149 = vpop.f32.mrf.mxu0
    %v1150 = vadd.f32 %v987, %v1149
    %v1151 = vpop.f32.mrf.mxu0
    %1152 = vmatprep.mubr.f32.mxu0 0.0
    %v1153 = vand.u32 %v89, 4294901760
    %1154 = vmatmul.mubr.f32.gmra.mxu0 %v1153
    %v1155 = vpop.f32.mrf.mxu0
    %v1156 = vadd.f32 %v993, %v1155
    %v1157 = vpop.f32.mrf.mxu0
    %1158 = vmatprep.mubr.f32.mxu0 0.0
    %v1159 = vand.u32 %v92, 4294901760
    %1160 = vmatmul.mubr.f32.gmra.mxu0 %v1159
    %v1161 = vpop.f32.mrf.mxu0
    %v1162 = vadd.f32 %v999, %v1161
    %v1163 = vpop.f32.mrf.mxu0
    %1164 = vmatprep.mubr.f32.mxu0 0.0
    %v1165 = vand.u32 %v95, 4294901760
    %1166 = vmatmul.mubr.f32.gmra.mxu0 %v1165
    %v1167 = vpop.f32.mrf.mxu0
    %v1168 = vadd.f32 %v1005, %v1167
    %v1169 = vpop.f32.mrf.mxu0
    %1170 = vmatprep.mubr.f32.mxu0 0.0
    %v1171 = vand.u32 %v98, 4294901760
    %1172 = vmatmul.mubr.f32.gmra.mxu0 %v1171
    %v1173 = vpop.f32.mrf.mxu0
    %v1174 = vadd.f32 %v1011, %v1173
    %v1175 = vpop.f32.mrf.mxu0
    %1176 = vmatprep.mubr.f32.mxu0 0.0
    %v1177 = vand.u32 %v101, 4294901760
    %1178 = vmatmul.mubr.f32.gmra.mxu0 %v1177
    %v1179 = vpop.f32.mrf.mxu0
    %v1180 = vadd.f32 %v1017, %v1179
    %v1181 = vpop.f32.mrf.mxu0
    %1182 = vmatprep.mubr.f32.mxu0 0.0
    %v1183 = vand.u32 %v104, 4294901760
    %1184 = vmatmul.mubr.f32.gmra.mxu0 %v1183
    %v1185 = vpop.f32.mrf.mxu0
    %v1186 = vadd.f32 %v1023, %v1185
    %v1187 = vpop.f32.mrf.mxu0
    %1188 = vmatprep.mubr.f32.mxu0 0.0
    %v1189 = vand.u32 %v107, 4294901760
    %1190 = vmatmul.mubr.f32.gmra.mxu0 %v1189
    %v1191 = vpop.f32.mrf.mxu0
    %v1192 = vadd.f32 %v1029, %v1191
    %v1193 = vpop.f32.mrf.mxu0
    %1194 = vmatprep.mubr.f32.mxu0 0.0
    %v1195 = vand.u32 %v110, 4294901760
    %1196 = vmatmul.mubr.f32.gmra.mxu0 %v1195
    %v1197 = vpop.f32.mrf.mxu0
    %v1198 = vadd.f32 %v1035, %v1197
    %v1199 = vpop.f32.mrf.mxu0
    %1200 = vmatprep.mubr.f32.mxu0 0.0
    %v1201 = vand.u32 %v113, 4294901760
    %1202 = vmatmul.mubr.f32.gmra.mxu0 %v1201
    %v1203 = vpop.f32.mrf.mxu0
    %v1204 = vadd.f32 %v1041, %v1203
    %v1205 = vpop.f32.mrf.mxu0
    %1206 = vmatprep.mubr.f32.mxu0 0.0
    %v1207 = vand.u32 %v116, 4294901760
    %1208 = vmatmul.mubr.f32.gmra.mxu0 %v1207
    %v1209 = vpop.f32.mrf.mxu0
    %v1210 = vadd.f32 %v1047, %v1209
    %v1211 = vpop.f32.mrf.mxu0
    %1212 = vmatprep.mubr.f32.mxu0 0.0
    %v1213 = vand.u32 %v119, 4294901760
    %1214 = vmatmul.mubr.f32.gmra.mxu0 %v1213
    %v1215 = vpop.f32.mrf.mxu0
    %v1216 = vadd.f32 %v1053, %v1215
    %v1217 = vpop.f32.mrf.mxu0
    %1218 = vmatprep.mubr.f32.mxu0 0.0
    %v1219 = vand.u32 %v122, 4294901760
    %1220 = vmatmul.mubr.f32.gmra.mxu0 %v1219
    %v1221 = vpop.f32.mrf.mxu0
    %v1222 = vadd.f32 %v1059, %v1221
    %v1223 = vpop.f32.mrf.mxu0
    %1224 = vmatprep.mubr.f32.mxu0 0.0
    %v1225 = vand.u32 %v125, 4294901760
    %1226 = vmatmul.mubr.f32.gmra.mxu0 %v1225
    %v1227 = vpop.f32.mrf.mxu0
    %v1228 = vadd.f32 %v1065, %v1227
    %v1229 = vpop.f32.mrf.mxu0
    %1230 = vdwg.mxu0
    %1231 = vst.msk [vmem:[#allocation2] sm:$0xff] %vm78, %v1138
    %1232 = vst.msk [vmem:[#allocation2 + $0x8] sm:$0xff] %vm78, %v1144
    %1235 = vrot.lane.b32.xlu0 %v1150, 16
    %v1236 = vpop.permute.xlu0 %1235
    %1237 = vrot.lane.b32.xlu0 %v1156, 16
    %v1238 = vpop.permute.xlu0 %1237
    %vm1241 = vcmask 261248
    %1242 = vst.msk [vmem:[#allocation2] sm:$0xff] %vm1241, %v1236
    %1243 = vst.msk [vmem:[#allocation2 + $0x8] sm:$0xff] %vm1241, %v1238
    %1246 = vrot.lane.b32.xlu0 %v1162, 32
    %v1247 = vpop.permute.xlu0 %1246
    %1248 = vrot.lane.b32.xlu0 %v1168, 32
    %v1249 = vpop.permute.xlu0 %1248
    %vm1252 = vcmask 392448
    %1253 = vst.msk [vmem:[#allocation2] sm:$0xff] %vm1252, %v1247
    %1254 = vst.msk [vmem:[#allocation2 + $0x8] sm:$0xff] %vm1252, %v1249
    %1257 = vrot.lane.b32.xlu0 %v1174, 48
    %v1258 = vpop.permute.xlu0 %1257
    %1259 = vrot.lane.b32.xlu0 %v1180, 48
    %v1260 = vpop.permute.xlu0 %1259
    %vm1263 = vcmask 523648
    %1264 = vst.msk [vmem:[#allocation2] sm:$0xff] %vm1263, %v1258
    %1265 = vst.msk [vmem:[#allocation2 + $0x8] sm:$0xff] %vm1263, %v1260
    %1268 = vrot.lane.b32.xlu0 %v1186, 64
    %v1269 = vpop.permute.xlu0 %1268
    %1270 = vrot.lane.b32.xlu0 %v1192, 64
    %v1271 = vpop.permute.xlu0 %1270
    %vm1274 = vcmask 654848
    %1275 = vst.msk [vmem:[#allocation2] sm:$0xff] %vm1274, %v1269
    %1276 = vst.msk [vmem:[#allocation2 + $0x8] sm:$0xff] %vm1274, %v1271
    %1279 = vrot.lane.b32.xlu0 %v1198, 80
    %v1280 = vpop.permute.xlu0 %1279
    %1281 = vrot.lane.b32.xlu0 %v1204, 80
    %v1282 = vpop.permute.xlu0 %1281
    %vm1285 = vcmask 786048
    %1286 = vst.msk [vmem:[#allocation2] sm:$0xff] %vm1285, %v1280
    %1287 = vst.msk [vmem:[#allocation2 + $0x8] sm:$0xff] %vm1285, %v1282
    %1290 = vrot.lane.b32.xlu0 %v1210, 96
    %v1291 = vpop.permute.xlu0 %1290
    %1292 = vrot.lane.b32.xlu0 %v1216, 96
    %v1293 = vpop.permute.xlu0 %1292
    %vm1296 = vcmask 917248
    %1297 = vst.msk [vmem:[#allocation2] sm:$0xff] %vm1296, %v1291
    %1298 = vst.msk [vmem:[#allocation2 + $0x8] sm:$0xff] %vm1296, %v1293
    %1301 = vrot.lane.b32.xlu0 %v1222, 112
    %v1302 = vpop.permute.xlu0 %1301
    %1303 = vrot.lane.b32.xlu0 %v1228, 112
    %v1304 = vpop.permute.xlu0 %1303
    %vm1307 = vcmask 1048448
    %1308 = vst.msk [vmem:[#allocation2] sm:$0xff] %vm1307, %v1302
    %1309 = vst.msk [vmem:[#allocation2 + $0x8] sm:$0xff] %vm1307, %v1304
    %v1310 = vld [vmem:[#allocation2] sm:$0xff]
    %v1311 = vld [vmem:[#allocation2 + $0x8] sm:$0xff]
    %v1313 = vsel %vm78, %v56, 0
    %v1316 = vsel %vm78, %v57, 0
    %1318 = vmatprep.subr.mxu0 0.0
    %1319 = vmatpush1.msra.mxu0 0.0
    %1320 = vmatprep.subr.mxu0 0.0
    %1321 = vmatpush1.msra.mxu0 0.0
    %1322 = vmatprep.subr.mxu0 0.0
    %1323 = vmatpush1.msra.mxu0 0.0
    %1324 = vmatprep.subr.mxu0 0.0
    %1325 = vmatpush1.msra.mxu0 0.0
    %1326 = vmatprep.subr.mxu0 0.0
    %1327 = vmatpush1.msra.mxu0 0.0
    %1328 = vmatprep.subr.mxu0 0.0
    %1329 = vmatpush1.msra.mxu0 0.0
    %1330 = vmatprep.subr.mxu0 0.0
    %1331 = vmatpush1.msra.mxu0 0.0
    %1332 = vmatprep.subr.mxu0 0.0
    %1333 = vmatpush1.msra.mxu0 0.0
    %1334 = vmatprep.subr.mxu0 0.0
    %1335 = vmatpush1.msra.mxu0 0.0
    %1336 = vmatprep.subr.mxu0 0.0
    %1337 = vmatpush1.msra.mxu0 0.0
    %1338 = vmatprep.subr.mxu0 0.0
    %1339 = vmatpush1.msra.mxu0 0.0
    %1340 = vmatprep.subr.mxu0 0.0
    %1341 = vmatpush1.msra.mxu0 0.0
    %1342 = vmatprep.subr.mxu0 0.0
    %1343 = vmatpush1.msra.mxu0 0.0
    %1344 = vmatprep.subr.mxu0 0.0
    %1345 = vmatpush1.msra.mxu0 0.0
    %1346 = vmatprep.subr.mxu0 0.0
    %v1347 = vand.u32 %v1311, 4294901760
    %1348 = vmatpush1.msra.mxu0 %v1347
    %1349 = vmatprep.subr.mxu0 0.0
    %v1350 = vand.u32 %v1310, 4294901760
    %1351 = vmatpush1.msra.mxu0 %v1350
    %1352 = vmatprep.subr.mxu0 0.0
    %1353 = vmatpush2.msra.mxu0 0.0
    %1354 = vmatprep.subr.mxu0 0.0
    %1355 = vmatpush2.msra.mxu0 0.0
    %1356 = vmatprep.subr.mxu0 0.0
    %1357 = vmatpush2.msra.mxu0 0.0
    %1358 = vmatprep.subr.mxu0 0.0
    %1359 = vmatpush2.msra.mxu0 0.0
    %1360 = vmatprep.subr.mxu0 0.0
    %1361 = vmatpush2.msra.mxu0 0.0
    %1362 = vmatprep.subr.mxu0 0.0
    %1363 = vmatpush2.msra.mxu0 0.0
    %1364 = vmatprep.subr.mxu0 0.0
    %1365 = vmatpush2.msra.mxu0 0.0
    %1366 = vmatprep.subr.mxu0 0.0
    %1367 = vmatpush2.msra.mxu0 0.0
    %1368 = vmatprep.subr.mxu0 0.0
    %1369 = vmatpush2.msra.mxu0 0.0
    %1370 = vmatprep.subr.mxu0 0.0
    %1371 = vmatpush2.msra.mxu0 0.0
    %1372 = vmatprep.subr.mxu0 0.0
    %1373 = vmatpush2.msra.mxu0 0.0
    %1374 = vmatprep.subr.mxu0 0.0
    %1375 = vmatpush2.msra.mxu0 0.0
    %1376 = vmatprep.subr.mxu0 0.0
    %1377 = vmatpush2.msra.mxu0 0.0
    %1378 = vmatprep.subr.mxu0 0.0
    %1379 = vmatpush2.msra.mxu0 0.0
    %1380 = vmatprep.subr.mxu0 0.0
    %1381 = vmatpush2.msra.mxu0 0.0
    %1382 = vmatprep.subr.mxu0 0.0
    %1383 = vmatpush2.msra.mxu0 0.0
    %1384 = vmatprep.mubr.f32.mxu0 0.0
    %v1385 = vand.u32 %v1313, 4294901760
    %v1386 = vsub.f32 %v1313, %v1385
    %v1387 = vand.u32 %v1386, 4294901760
    %v1388 = vsub.f32 %v1386, %v1387
    %v1389 = vand.u32 %v1388, 4294901760
    %1390 = vmatmul.mubr.f32.gmra.mxu0 %v1389
    %v1391 = vpop.f32.mrf.mxu0
    %v1392 = vadd.f32 0.0, %v1391
    %v1393 = vpop.f32.mrf.mxu0
    %1394 = vmatprep.mubr.f32.mxu0 0.0
    %v1395 = vand.u32 %v1316, 4294901760
    %v1396 = vsub.f32 %v1316, %v1395
    %v1397 = vand.u32 %v1396, 4294901760
    %v1398 = vsub.f32 %v1396, %v1397
    %v1399 = vand.u32 %v1398, 4294901760
    %1400 = vmatmul.mubr.f32.gmra.mxu0 %v1399
    %v1401 = vpop.f32.mrf.mxu0
    %v1402 = vadd.f32 0.0, %v1401
    %v1403 = vpop.f32.mrf.mxu0
    %1404 = vdwg.mxu0
    %1405 = vmatprep.subr.mxu0 0.0
    %1406 = vmatpush1.msra.mxu0 0.0
    %1407 = vmatprep.subr.mxu0 0.0
    %1408 = vmatpush1.msra.mxu0 0.0
    %1409 = vmatprep.subr.mxu0 0.0
    %1410 = vmatpush1.msra.mxu0 0.0
    %1411 = vmatprep.subr.mxu0 0.0
    %1412 = vmatpush1.msra.mxu0 0.0
    %1413 = vmatprep.subr.mxu0 0.0
    %1414 = vmatpush1.msra.mxu0 0.0
    %1415 = vmatprep.subr.mxu0 0.0
    %1416 = vmatpush1.msra.mxu0 0.0
    %1417 = vmatprep.subr.mxu0 0.0
    %1418 = vmatpush1.msra.mxu0 0.0
    %1419 = vmatprep.subr.mxu0 0.0
    %1420 = vmatpush1.msra.mxu0 0.0
    %1421 = vmatprep.subr.mxu0 0.0
    %1422 = vmatpush1.msra.mxu0 0.0
    %1423 = vmatprep.subr.mxu0 0.0
    %1424 = vmatpush1.msra.mxu0 0.0
    %1425 = vmatprep.subr.mxu0 0.0
    %1426 = vmatpush1.msra.mxu0 0.0
    %1427 = vmatprep.subr.mxu0 0.0
    %1428 = vmatpush1.msra.mxu0 0.0
    %1429 = vmatprep.subr.mxu0 0.0
    %1430 = vmatpush1.msra.mxu0 0.0
    %1431 = vmatprep.subr.mxu0 0.0
    %1432 = vmatpush1.msra.mxu0 0.0
    %1433 = vmatprep.subr.mxu0 0.0
    %v1434 = vand.u32 %v1311, 4294901760
    %v1435 = vsub.f32 %v1311, %v1434
    %v1436 = vand.u32 %v1435, 4294901760
    %v1437 = vsub.f32 %v1435, %v1436
    %v1438 = vand.u32 %v1437, 4294901760
    %1439 = vmatpush1.msra.mxu0 %v1438
    %1440 = vmatprep.subr.mxu0 0.0
    %v1441 = vand.u32 %v1310, 4294901760
    %v1442 = vsub.f32 %v1310, %v1441
    %v1443 = vand.u32 %v1442, 4294901760
    %v1444 = vsub.f32 %v1442, %v1443
    %v1445 = vand.u32 %v1444, 4294901760
    %1446 = vmatpush1.msra.mxu0 %v1445
    %1447 = vmatprep.subr.mxu0 0.0
    %1448 = vmatpush2.msra.mxu0 0.0
    %1449 = vmatprep.subr.mxu0 0.0
    %1450 = vmatpush2.msra.mxu0 0.0
    %1451 = vmatprep.subr.mxu0 0.0
    %1452 = vmatpush2.msra.mxu0 0.0
    %1453 = vmatprep.subr.mxu0 0.0
    %1454 = vmatpush2.msra.mxu0 0.0
    %1455 = vmatprep.subr.mxu0 0.0
    %1456 = vmatpush2.msra.mxu0 0.0
    %1457 = vmatprep.subr.mxu0 0.0
    %1458 = vmatpush2.msra.mxu0 0.0
    %1459 = vmatprep.subr.mxu0 0.0
    %1460 = vmatpush2.msra.mxu0 0.0
    %1461 = vmatprep.subr.mxu0 0.0
    %1462 = vmatpush2.msra.mxu0 0.0
    %1463 = vmatprep.subr.mxu0 0.0
    %1464 = vmatpush2.msra.mxu0 0.0
    %1465 = vmatprep.subr.mxu0 0.0
    %1466 = vmatpush2.msra.mxu0 0.0
    %1467 = vmatprep.subr.mxu0 0.0
    %1468 = vmatpush2.msra.mxu0 0.0
    %1469 = vmatprep.subr.mxu0 0.0
    %1470 = vmatpush2.msra.mxu0 0.0
    %1471 = vmatprep.subr.mxu0 0.0
    %1472 = vmatpush2.msra.mxu0 0.0
    %1473 = vmatprep.subr.mxu0 0.0
    %1474 = vmatpush2.msra.mxu0 0.0
    %1475 = vmatprep.subr.mxu0 0.0
    %1476 = vmatpush2.msra.mxu0 0.0
    %1477 = vmatprep.subr.mxu0 0.0
    %1478 = vmatpush2.msra.mxu0 0.0
    %1479 = vmatprep.mubr.f32.mxu0 0.0
    %v1480 = vand.u32 %v1313, 4294901760
    %1481 = vmatmul.mubr.f32.gmra.mxu0 %v1480
    %v1482 = vpop.f32.mrf.mxu0
    %v1483 = vadd.f32 %v1392, %v1482
    %v1484 = vpop.f32.mrf.mxu0
    %1485 = vmatprep.mubr.f32.mxu0 0.0
    %v1486 = vand.u32 %v1316, 4294901760
    %1487 = vmatmul.mubr.f32.gmra.mxu0 %v1486
    %v1488 = vpop.f32.mrf.mxu0
    %v1489 = vadd.f32 %v1402, %v1488
    %v1490 = vpop.f32.mrf.mxu0
    %1491 = vdwg.mxu0
    %1492 = vmatprep.subr.mxu0 0.0
    %1493 = vmatpush1.msra.mxu0 0.0
    %1494 = vmatprep.subr.mxu0 0.0
    %1495 = vmatpush1.msra.mxu0 0.0
    %1496 = vmatprep.subr.mxu0 0.0
    %1497 = vmatpush1.msra.mxu0 0.0
    %1498 = vmatprep.subr.mxu0 0.0
    %1499 = vmatpush1.msra.mxu0 0.0
    %1500 = vmatprep.subr.mxu0 0.0
    %1501 = vmatpush1.msra.mxu0 0.0
    %1502 = vmatprep.subr.mxu0 0.0
    %1503 = vmatpush1.msra.mxu0 0.0
    %1504 = vmatprep.subr.mxu0 0.0
    %1505 = vmatpush1.msra.mxu0 0.0
    %1506 = vmatprep.subr.mxu0 0.0
    %1507 = vmatpush1.msra.mxu0 0.0
    %1508 = vmatprep.subr.mxu0 0.0
    %1509 = vmatpush1.msra.mxu0 0.0
    %1510 = vmatprep.subr.mxu0 0.0
    %1511 = vmatpush1.msra.mxu0 0.0
    %1512 = vmatprep.subr.mxu0 0.0
    %1513 = vmatpush1.msra.mxu0 0.0
    %1514 = vmatprep.subr.mxu0 0.0
    %1515 = vmatpush1.msra.mxu0 0.0
    %1516 = vmatprep.subr.mxu0 0.0
    %1517 = vmatpush1.msra.mxu0 0.0
    %1518 = vmatprep.subr.mxu0 0.0
    %1519 = vmatpush1.msra.mxu0 0.0
    %1520 = vmatprep.subr.mxu0 0.0
    %v1521 = vand.u32 %v1311, 4294901760
    %v1522 = vsub.f32 %v1311, %v1521
    %1523 = vmatpush1.msra.mxu0 %v1522
    %1524 = vmatprep.subr.mxu0 0.0
    %v1525 = vand.u32 %v1310, 4294901760
    %v1526 = vsub.f32 %v1310, %v1525
    %1527 = vmatpush1.msra.mxu0 %v1526
    %1528 = vmatprep.subr.mxu0 0.0
    %1529 = vmatpush2.msra.mxu0 0.0
    %1530 = vmatprep.subr.mxu0 0.0
    %1531 = vmatpush2.msra.mxu0 0.0
    %1532 = vmatprep.subr.mxu0 0.0
    %1533 = vmatpush2.msra.mxu0 0.0
    %1534 = vmatprep.subr.mxu0 0.0
    %1535 = vmatpush2.msra.mxu0 0.0
    %1536 = vmatprep.subr.mxu0 0.0
    %1537 = vmatpush2.msra.mxu0 0.0
    %1538 = vmatprep.subr.mxu0 0.0
    %1539 = vmatpush2.msra.mxu0 0.0
    %1540 = vmatprep.subr.mxu0 0.0
    %1541 = vmatpush2.msra.mxu0 0.0
    %1542 = vmatprep.subr.mxu0 0.0
    %1543 = vmatpush2.msra.mxu0 0.0
    %1544 = vmatprep.subr.mxu0 0.0
    %1545 = vmatpush2.msra.mxu0 0.0
    %1546 = vmatprep.subr.mxu0 0.0
    %1547 = vmatpush2.msra.mxu0 0.0
    %1548 = vmatprep.subr.mxu0 0.0
    %1549 = vmatpush2.msra.mxu0 0.0
    %1550 = vmatprep.subr.mxu0 0.0
    %1551 = vmatpush2.msra.mxu0 0.0
    %1552 = vmatprep.subr.mxu0 0.0
    %1553 = vmatpush2.msra.mxu0 0.0
    %1554 = vmatprep.subr.mxu0 0.0
    %1555 = vmatpush2.msra.mxu0 0.0
    %1556 = vmatprep.subr.mxu0 0.0
    %1557 = vmatpush2.msra.mxu0 0.0
    %1558 = vmatprep.subr.mxu0 0.0
    %1559 = vmatpush2.msra.mxu0 0.0
    %1560 = vmatprep.mubr.f32.mxu0 0.0
    %v1561 = vand.u32 %v1313, 4294901760
    %v1562 = vsub.f32 %v1313, %v1561
    %1563 = vmatmul.mubr.f32.gmra.mxu0 %v1562
    %v1564 = vpop.f32.mrf.mxu0
    %v1565 = vadd.f32 %v1483, %v1564
    %v1566 = vpop.f32.mrf.mxu0
    %1567 = vmatprep.mubr.f32.mxu0 0.0
    %v1568 = vand.u32 %v1316, 4294901760
    %v1569 = vsub.f32 %v1316, %v1568
    %1570 = vmatmul.mubr.f32.gmra.mxu0 %v1569
    %v1571 = vpop.f32.mrf.mxu0
    %v1572 = vadd.f32 %v1489, %v1571
    %v1573 = vpop.f32.mrf.mxu0
    %1574 = vdwg.mxu0
    %1575 = vmatprep.subr.mxu0 0.0
    %1576 = vmatpush1.msra.mxu0 0.0
    %1577 = vmatprep.subr.mxu0 0.0
    %1578 = vmatpush1.msra.mxu0 0.0
    %1579 = vmatprep.subr.mxu0 0.0
    %1580 = vmatpush1.msra.mxu0 0.0
    %1581 = vmatprep.subr.mxu0 0.0
    %1582 = vmatpush1.msra.mxu0 0.0
    %1583 = vmatprep.subr.mxu0 0.0
    %1584 = vmatpush1.msra.mxu0 0.0
    %1585 = vmatprep.subr.mxu0 0.0
    %1586 = vmatpush1.msra.mxu0 0.0
    %1587 = vmatprep.subr.mxu0 0.0
    %1588 = vmatpush1.msra.mxu0 0.0
    %1589 = vmatprep.subr.mxu0 0.0
    %1590 = vmatpush1.msra.mxu0 0.0
    %1591 = vmatprep.subr.mxu0 0.0
    %1592 = vmatpush1.msra.mxu0 0.0
    %1593 = vmatprep.subr.mxu0 0.0
    %1594 = vmatpush1.msra.mxu0 0.0
    %1595 = vmatprep.subr.mxu0 0.0
    %1596 = vmatpush1.msra.mxu0 0.0
    %1597 = vmatprep.subr.mxu0 0.0
    %1598 = vmatpush1.msra.mxu0 0.0
    %1599 = vmatprep.subr.mxu0 0.0
    %1600 = vmatpush1.msra.mxu0 0.0
    %1601 = vmatprep.subr.mxu0 0.0
    %1602 = vmatpush1.msra.mxu0 0.0
    %1603 = vmatprep.subr.mxu0 0.0
    %v1604 = vand.u32 %v1311, 4294901760
    %1605 = vmatpush1.msra.mxu0 %v1604
    %1606 = vmatprep.subr.mxu0 0.0
    %v1607 = vand.u32 %v1310, 4294901760
    %1608 = vmatpush1.msra.mxu0 %v1607
    %1609 = vmatprep.subr.mxu0 0.0
    %1610 = vmatpush2.msra.mxu0 0.0
    %1611 = vmatprep.subr.mxu0 0.0
    %1612 = vmatpush2.msra.mxu0 0.0
    %1613 = vmatprep.subr.mxu0 0.0
    %1614 = vmatpush2.msra.mxu0 0.0
    %1615 = vmatprep.subr.mxu0 0.0
    %1616 = vmatpush2.msra.mxu0 0.0
    %1617 = vmatprep.subr.mxu0 0.0
    %1618 = vmatpush2.msra.mxu0 0.0
    %1619 = vmatprep.subr.mxu0 0.0
    %1620 = vmatpush2.msra.mxu0 0.0
    %1621 = vmatprep.subr.mxu0 0.0
    %1622 = vmatpush2.msra.mxu0 0.0
    %1623 = vmatprep.subr.mxu0 0.0
    %1624 = vmatpush2.msra.mxu0 0.0
    %1625 = vmatprep.subr.mxu0 0.0
    %1626 = vmatpush2.msra.mxu0 0.0
    %1627 = vmatprep.subr.mxu0 0.0
    %1628 = vmatpush2.msra.mxu0 0.0
    %1629 = vmatprep.subr.mxu0 0.0
    %1630 = vmatpush2.msra.mxu0 0.0
    %1631 = vmatprep.subr.mxu0 0.0
    %1632 = vmatpush2.msra.mxu0 0.0
    %1633 = vmatprep.subr.mxu0 0.0
    %1634 = vmatpush2.msra.mxu0 0.0
    %1635 = vmatprep.subr.mxu0 0.0
    %1636 = vmatpush2.msra.mxu0 0.0
    %1637 = vmatprep.subr.mxu0 0.0
    %1638 = vmatpush2.msra.mxu0 0.0
    %1639 = vmatprep.subr.mxu0 0.0
    %1640 = vmatpush2.msra.mxu0 0.0
    %1641 = vmatprep.mubr.f32.mxu0 0.0
    %v1642 = vand.u32 %v1313, 4294901760
    %v1643 = vsub.f32 %v1313, %v1642
    %v1644 = vand.u32 %v1643, 4294901760
    %1645 = vmatmul.mubr.f32.gmra.mxu0 %v1644
    %v1646 = vpop.f32.mrf.mxu0
    %v1647 = vadd.f32 %v1565, %v1646
    %v1648 = vpop.f32.mrf.mxu0
    %1649 = vmatprep.mubr.f32.mxu0 0.0
    %v1650 = vand.u32 %v1316, 4294901760
    %v1651 = vsub.f32 %v1316, %v1650
    %v1652 = vand.u32 %v1651, 4294901760
    %1653 = vmatmul.mubr.f32.gmra.mxu0 %v1652
    %v1654 = vpop.f32.mrf.mxu0
    %v1655 = vadd.f32 %v1572, %v1654
    %v1656 = vpop.f32.mrf.mxu0
    %1657 = vdwg.mxu0
    %1658 = vmatprep.subr.mxu0 0.0
    %1659 = vmatpush1.msra.mxu0 0.0
    %1660 = vmatprep.subr.mxu0 0.0
    %1661 = vmatpush1.msra.mxu0 0.0
    %1662 = vmatprep.subr.mxu0 0.0
    %1663 = vmatpush1.msra.mxu0 0.0
    %1664 = vmatprep.subr.mxu0 0.0
    %1665 = vmatpush1.msra.mxu0 0.0
    %1666 = vmatprep.subr.mxu0 0.0
    %1667 = vmatpush1.msra.mxu0 0.0
    %1668 = vmatprep.subr.mxu0 0.0
    %1669 = vmatpush1.msra.mxu0 0.0
    %1670 = vmatprep.subr.mxu0 0.0
    %1671 = vmatpush1.msra.mxu0 0.0
    %1672 = vmatprep.subr.mxu0 0.0
    %1673 = vmatpush1.msra.mxu0 0.0
    %1674 = vmatprep.subr.mxu0 0.0
    %1675 = vmatpush1.msra.mxu0 0.0
    %1676 = vmatprep.subr.mxu0 0.0
    %1677 = vmatpush1.msra.mxu0 0.0
    %1678 = vmatprep.subr.mxu0 0.0
    %1679 = vmatpush1.msra.mxu0 0.0
    %1680 = vmatprep.subr.mxu0 0.0
    %1681 = vmatpush1.msra.mxu0 0.0
    %1682 = vmatprep.subr.mxu0 0.0
    %1683 = vmatpush1.msra.mxu0 0.0
    %1684 = vmatprep.subr.mxu0 0.0
    %1685 = vmatpush1.msra.mxu0 0.0
    %1686 = vmatprep.subr.mxu0 0.0
    %v1687 = vand.u32 %v1311, 4294901760
    %v1688 = vsub.f32 %v1311, %v1687
    %v1689 = vand.u32 %v1688, 4294901760
    %1690 = vmatpush1.msra.mxu0 %v1689
    %1691 = vmatprep.subr.mxu0 0.0
    %v1692 = vand.u32 %v1310, 4294901760
    %v1693 = vsub.f32 %v1310, %v1692
    %v1694 = vand.u32 %v1693, 4294901760
    %1695 = vmatpush1.msra.mxu0 %v1694
    %1696 = vmatprep.subr.mxu0 0.0
    %1697 = vmatpush2.msra.mxu0 0.0
    %1698 = vmatprep.subr.mxu0 0.0
    %1699 = vmatpush2.msra.mxu0 0.0
    %1700 = vmatprep.subr.mxu0 0.0
    %1701 = vmatpush2.msra.mxu0 0.0
    %1702 = vmatprep.subr.mxu0 0.0
    %1703 = vmatpush2.msra.mxu0 0.0
    %1704 = vmatprep.subr.mxu0 0.0
    %1705 = vmatpush2.msra.mxu0 0.0
    %1706 = vmatprep.subr.mxu0 0.0
    %1707 = vmatpush2.msra.mxu0 0.0
    %1708 = vmatprep.subr.mxu0 0.0
    %1709 = vmatpush2.msra.mxu0 0.0
    %1710 = vmatprep.subr.mxu0 0.0
    %1711 = vmatpush2.msra.mxu0 0.0
    %1712 = vmatprep.subr.mxu0 0.0
    %1713 = vmatpush2.msra.mxu0 0.0
    %1714 = vmatprep.subr.mxu0 0.0
    %1715 = vmatpush2.msra.mxu0 0.0
    %1716 = vmatprep.subr.mxu0 0.0
    %1717 = vmatpush2.msra.mxu0 0.0
    %1718 = vmatprep.subr.mxu0 0.0
    %1719 = vmatpush2.msra.mxu0 0.0
    %1720 = vmatprep.subr.mxu0 0.0
    %1721 = vmatpush2.msra.mxu0 0.0
    %1722 = vmatprep.subr.mxu0 0.0
    %1723 = vmatpush2.msra.mxu0 0.0
    %1724 = vmatprep.subr.mxu0 0.0
    %1725 = vmatpush2.msra.mxu0 0.0
    %1726 = vmatprep.subr.mxu0 0.0
    %1727 = vmatpush2.msra.mxu0 0.0
    %1728 = vmatprep.mubr.f32.mxu0 0.0
    %v1729 = vand.u32 %v1313, 4294901760
    %1730 = vmatmul.mubr.f32.gmra.mxu0 %v1729
    %v1731 = vpop.f32.mrf.mxu0
    %v1732 = vadd.f32 %v1647, %v1731
    %v1733 = vpop.f32.mrf.mxu0
    %1734 = vmatprep.mubr.f32.mxu0 0.0
    %v1735 = vand.u32 %v1316, 4294901760
    %1736 = vmatmul.mubr.f32.gmra.mxu0 %v1735
    %v1737 = vpop.f32.mrf.mxu0
    %v1738 = vadd.f32 %v1655, %v1737
    %v1739 = vpop.f32.mrf.mxu0
    %1740 = vdwg.mxu0
    %1741 = vmatprep.subr.mxu0 0.0
    %1742 = vmatpush1.msra.mxu0 0.0
    %1743 = vmatprep.subr.mxu0 0.0
    %1744 = vmatpush1.msra.mxu0 0.0
    %1745 = vmatprep.subr.mxu0 0.0
    %1746 = vmatpush1.msra.mxu0 0.0
    %1747 = vmatprep.subr.mxu0 0.0
    %1748 = vmatpush1.msra.mxu0 0.0
    %1749 = vmatprep.subr.mxu0 0.0
    %1750 = vmatpush1.msra.mxu0 0.0
    %1751 = vmatprep.subr.mxu0 0.0
    %1752 = vmatpush1.msra.mxu0 0.0
    %1753 = vmatprep.subr.mxu0 0.0
    %1754 = vmatpush1.msra.mxu0 0.0
    %1755 = vmatprep.subr.mxu0 0.0
    %1756 = vmatpush1.msra.mxu0 0.0
    %1757 = vmatprep.subr.mxu0 0.0
    %1758 = vmatpush1.msra.mxu0 0.0
    %1759 = vmatprep.subr.mxu0 0.0
    %1760 = vmatpush1.msra.mxu0 0.0
    %1761 = vmatprep.subr.mxu0 0.0
    %1762 = vmatpush1.msra.mxu0 0.0
    %1763 = vmatprep.subr.mxu0 0.0
    %1764 = vmatpush1.msra.mxu0 0.0
    %1765 = vmatprep.subr.mxu0 0.0
    %1766 = vmatpush1.msra.mxu0 0.0
    %1767 = vmatprep.subr.mxu0 0.0
    %1768 = vmatpush1.msra.mxu0 0.0
    %1769 = vmatprep.subr.mxu0 0.0
    %v1770 = vand.u32 %v1311, 4294901760
    %1771 = vmatpush1.msra.mxu0 %v1770
    %1772 = vmatprep.subr.mxu0 0.0
    %v1773 = vand.u32 %v1310, 4294901760
    %1774 = vmatpush1.msra.mxu0 %v1773
    %1775 = vmatprep.subr.mxu0 0.0
    %1776 = vmatpush2.msra.mxu0 0.0
    %1777 = vmatprep.subr.mxu0 0.0
    %1778 = vmatpush2.msra.mxu0 0.0
    %1779 = vmatprep.subr.mxu0 0.0
    %1780 = vmatpush2.msra.mxu0 0.0
    %1781 = vmatprep.subr.mxu0 0.0
    %1782 = vmatpush2.msra.mxu0 0.0
    %1783 = vmatprep.subr.mxu0 0.0
    %1784 = vmatpush2.msra.mxu0 0.0
    %1785 = vmatprep.subr.mxu0 0.0
    %1786 = vmatpush2.msra.mxu0 0.0
    %1787 = vmatprep.subr.mxu0 0.0
    %1788 = vmatpush2.msra.mxu0 0.0
    %1789 = vmatprep.subr.mxu0 0.0
    %1790 = vmatpush2.msra.mxu0 0.0
    %1791 = vmatprep.subr.mxu0 0.0
    %1792 = vmatpush2.msra.mxu0 0.0
    %1793 = vmatprep.subr.mxu0 0.0
    %1794 = vmatpush2.msra.mxu0 0.0
    %1795 = vmatprep.subr.mxu0 0.0
    %1796 = vmatpush2.msra.mxu0 0.0
    %1797 = vmatprep.subr.mxu0 0.0
    %1798 = vmatpush2.msra.mxu0 0.0
    %1799 = vmatprep.subr.mxu0 0.0
    %1800 = vmatpush2.msra.mxu0 0.0
    %1801 = vmatprep.subr.mxu0 0.0
    %1802 = vmatpush2.msra.mxu0 0.0
    %1803 = vmatprep.subr.mxu0 0.0
    %1804 = vmatpush2.msra.mxu0 0.0
    %1805 = vmatprep.subr.mxu0 0.0
    %1806 = vmatpush2.msra.mxu0 0.0
    %1807 = vmatprep.mubr.f32.mxu0 0.0
    %v1808 = vand.u32 %v1313, 4294901760
    %1809 = vmatmul.mubr.f32.gmra.mxu0 %v1808
    %v1810 = vpop.f32.mrf.mxu0
    %v1811 = vadd.f32 %v1732, %v1810
    %v1812 = vpop.f32.mrf.mxu0
    %1813 = vmatprep.mubr.f32.mxu0 0.0
    %v1814 = vand.u32 %v1316, 4294901760
    %1815 = vmatmul.mubr.f32.gmra.mxu0 %v1814
    %v1816 = vpop.f32.mrf.mxu0
    %v1817 = vadd.f32 %v1738, %v1816
    %v1818 = vpop.f32.mrf.mxu0
    %1819 = vdwg.mxu0
    %s1820 = scalar_lea.vmem [#allocation9], %s60
    %1821 = vst.msk [vmem:[%s1820] sm:$0xff] %vm78, %v1811
    %1822 = vst.msk [vmem:[%s1820 + $0x8] sm:$0xff] %vm78, %v1817
    %s1823 = sadd.s32 0, 1
    %1826 = vrot.lane.b32.xlu0 %v1811, 112
    %v1827 = vpop.permute.xlu0 %1826
    %1828 = vrot.lane.b32.xlu0 %v1817, 112
    %v1829 = vpop.permute.xlu0 %1828
    %s1832 = smul.u32 %s1823, 16
    %s1833 = scalar_lea.vmem [#allocation9], %s1832
    %1834 = vst.msk [vmem:[%s1833] sm:$0xff] %vm78, %v1827
    %1835 = vst.msk [vmem:[%s1833 + $0x8] sm:$0xff] %vm78, %v1829
    %s1836 = sadd.s32 0, 2
    %1837 = vrot.lane.b32.xlu0 %v1811, 96
    %v1838 = vpop.permute.xlu0 %1837
    %1839 = vrot.lane.b32.xlu0 %v1817, 96
    %v1840 = vpop.permute.xlu0 %1839
    %s1843 = smul.u32 %s1836, 16
    %s1844 = scalar_lea.vmem [#allocation9], %s1843
    %1845 = vst.msk [vmem:[%s1844] sm:$0xff] %vm78, %v1838
    %1846 = vst.msk [vmem:[%s1844 + $0x8] sm:$0xff] %vm78, %v1840
    %s1847 = sadd.s32 0, 3
    %1848 = vrot.lane.b32.xlu0 %v1811, 80
    %v1849 = vpop.permute.xlu0 %1848
    %1850 = vrot.lane.b32.xlu0 %v1817, 80
    %v1851 = vpop.permute.xlu0 %1850
    %s1854 = smul.u32 %s1847, 16
    %s1855 = scalar_lea.vmem [#allocation9], %s1854
    %1856 = vst.msk [vmem:[%s1855] sm:$0xff] %vm78, %v1849
    %1857 = vst.msk [vmem:[%s1855 + $0x8] sm:$0xff] %vm78, %v1851
    %s1858 = sadd.s32 0, 4
    %1859 = vrot.lane.b32.xlu0 %v1811, 64
    %v1860 = vpop.permute.xlu0 %1859
    %1861 = vrot.lane.b32.xlu0 %v1817, 64
    %v1862 = vpop.permute.xlu0 %1861
    %s1865 = smul.u32 %s1858, 16
    %s1866 = scalar_lea.vmem [#allocation9], %s1865
    %1867 = vst.msk [vmem:[%s1866] sm:$0xff] %vm78, %v1860
    %1868 = vst.msk [vmem:[%s1866 + $0x8] sm:$0xff] %vm78, %v1862
    %s1869 = sadd.s32 0, 5
    %1870 = vrot.lane.b32.xlu0 %v1811, 48
    %v1871 = vpop.permute.xlu0 %1870
    %1872 = vrot.lane.b32.xlu0 %v1817, 48
    %v1873 = vpop.permute.xlu0 %1872
    %s1876 = smul.u32 %s1869, 16
    %s1877 = scalar_lea.vmem [#allocation9], %s1876
    %1878 = vst.msk [vmem:[%s1877] sm:$0xff] %vm78, %v1871
    %1879 = vst.msk [vmem:[%s1877 + $0x8] sm:$0xff] %vm78, %v1873
    %s1880 = sadd.s32 0, 6
    %1881 = vrot.lane.b32.xlu0 %v1811, 32
    %v1882 = vpop.permute.xlu0 %1881
    %1883 = vrot.lane.b32.xlu0 %v1817, 32
    %v1884 = vpop.permute.xlu0 %1883
    %s1887 = smul.u32 %s1880, 16
    %s1888 = scalar_lea.vmem [#allocation9], %s1887
    %1889 = vst.msk [vmem:[%s1888] sm:$0xff] %vm78, %v1882
    %1890 = vst.msk [vmem:[%s1888 + $0x8] sm:$0xff] %vm78, %v1884
    %s1891 = sadd.s32 0, 7
    %1892 = vrot.lane.b32.xlu0 %v1811, 16
    %v1893 = vpop.permute.xlu0 %1892
    %1894 = vrot.lane.b32.xlu0 %v1817, 16
    %v1895 = vpop.permute.xlu0 %1894
    %s1898 = smul.u32 %s1891, 16
    %s1899 = scalar_lea.vmem [#allocation9], %s1898
    %1900 = vst.msk [vmem:[%s1899] sm:$0xff] %vm78, %v1893
    %1901 = vst.msk [vmem:[%s1899 + $0x8] sm:$0xff] %vm78, %v1895
    // Predicated region
    $region26: #{tpu_custom_call.1} parent=1 // pred_check
      _
    $region27: #{tpu_custom_call.1} parent=1 // pred_check_branch
      %1903 = sbr.rel (0) target = $region29
    $region28: #{tpu_custom_call.1} parent=1 // pred_region
      %s1905 = ssub.s32 2048, 2048
      %1906 = vsyncadd [#allocation5], %s1905
      %s1907 = sshll.u32 [#allocation9], 4
      %s1908 = int_to_ptr.vmem [resolvable:$true] %s1907
      %1913 = dma.vmem_to_hbm [thread:$0]  %s1908, 2048, %s3, [#allocation5], 128, 128, 8
    $region29: #{tpu_custom_call.1} parent=1 // pred_fallthru
      _
    // Predicated region
    $region30: #{tpu_custom_call.1} parent=1 // pred_check
      _
    $region31: #{tpu_custom_call.1} parent=1 // pred_check_branch
      %1915 = sbr.rel (0) target = $region33
    $region32: #{tpu_custom_call.1} parent=1 // pred_region
      %1916 = dma.done [#allocation5], 2048
    $region33: #{tpu_custom_call.1} parent=1 // pred_fallthru
      _
    %1917 = vsyncpa [#allocation4], 1
    %1918 = vsyncpa [#allocation7], 1
    %1919 = vsyncpa [#allocation5], 1

</llo_original>
